<compile_context>
chip_gen: v7x
topology: tpu7x:2x2x1
jax: 0.10.0
libtpu: 0.0.40
codegen_flags: <defaults>
</compile_context>

<pallas_src>
import functools
import math

import jax
import jax.numpy as jnp
from jax.experimental import pallas as pl
from jax.experimental.pallas import tpu as pltpu


# ----------------------------------------------------------------------------- config

VOCAB = 100
VOCAB_PAD = 128          # pad vocab so the in-kernel one-hot gather matmul is lane-aligned
MAX_POS = 16
HIDDEN = 32
NUM_HEADS = 2
HEAD_DIM = HIDDEN // NUM_HEADS
INTERMEDIATE = 64
NUM_LAYERS = 2
NUM_CLASSES_LIST = [3, 5]
CLS_PAD = 128            # pad fused classifier output to a full 128-lane vreg
LN_EPS = 1e-12

VMEM = pltpu.MemorySpace.VMEM


# ----------------------------------------------------------------------------- kernel

def _fused_bert_kernel(
    # per-batch inputs
    ids_ref, pos_te_ref, mask_ref,
    # resident weights (bf16 matmul weights, f32 biases / LN params)
    word_emb_ref, emb_g_ref, emb_b_ref,
    wqkv_ref, bqkv_ref, wo_ref, bo_ref,
    ln1g_ref, ln1b_ref, w1_ref, b1_ref, w2_ref, b2_ref, ln2g_ref, ln2b_ref,
    pool_w_ref, pool_b_ref, cls_w_ref, cls_b_ref,
    # output
    proba_ref,
    *, seq, hidden, num_heads, head_dim, num_layers, class_sizes, eps):
    """Whole MultiTaskBERT forward for ONE batch element (grid axis = batch)."""

    f32 = jnp.float32
    bf16 = jnp.bfloat16

    def ln(x, g, b):                                   # f32 VPU math
        mu = jnp.mean(x, axis=-1, keepdims=True)
        var = jnp.mean((x - mu) * (x - mu), axis=-1, keepdims=True)
        return (x - mu) * jax.lax.rsqrt(var + eps) * g + b

    def gelu(x):
        # TODO(synk): HF BERT uses erf-GELU; tanh approximation used for TPU lowering.
        return 0.5 * x * (1.0 + jnp.tanh(0.7978845608028654 * (x + 0.044715 * x * x * x)))

    def mxu(a, w_bf16):                                # bf16 inputs, f32 accumulate
        return jnp.dot(a.astype(bf16), w_bf16, preferred_element_type=f32)

    # ---- embeddings: gather via one-hot matmul (lookup stays on the MXU, in VMEM) ----
    ids = ids_ref[...]                                                    # (S, 1) int32
    vocab_iota = jax.lax.broadcasted_iota(jnp.int32, (seq, word_emb_ref.shape[0]), 1)
    onehot = (vocab_iota == ids).astype(bf16)                             # (S, VOCAB_PAD)
    h = jnp.dot(onehot, word_emb_ref[...], preferred_element_type=f32)    # (S, H)
    h = h + pos_te_ref[...]                                               # + pos + type-0 emb
    h = ln(h, emb_g_ref[...], emb_b_ref[...])                             # (S, H) f32

    # additive mask broadcast hoisted: once per program, not per layer / head
    mask_sq = jnp.broadcast_to(mask_ref[...], (num_heads, seq, seq))      # (NH, S, S)

    def split_heads(x2d):                              # (S, H) -> (NH, S, D); lane-slice + stack
        return jnp.stack(
            [x2d[:, i * head_dim:(i + 1) * head_dim] for i in range(num_heads)], axis=0)

    # ---- encoder layers (statically unrolled) ----
    for layer in range(num_layers):
        # fused QKV projection: one (S, H) x (H, 3H) bf16 matmul (Q pre-scaled at pack time)
        qkv = mxu(h, wqkv_ref[layer]) + bqkv_ref[layer]                   # (S, 3H) f32

        q = split_heads(qkv[:, 0:hidden])                                 # (NH, S, D)
        k = split_heads(qkv[:, hidden:2 * hidden])
        v = split_heads(qkv[:, 2 * hidden:3 * hidden])

        # batched attention over all heads: 2 MXU einsums per layer, no per-head transposes
        s = jnp.einsum('hqd,hkd->hqk', q.astype(bf16), k.astype(bf16),
                       preferred_element_type=f32)                        # (NH, S, S)
        s = s + mask_sq
        s = s - jnp.max(s, axis=-1, keepdims=True)
        p = jnp.exp(s)
        p = p / jnp.sum(p, axis=-1, keepdims=True)                        # exact normalization
        ctx = jnp.einsum('hqk,hkd->hqd', p.astype(bf16), v.astype(bf16),
                         preferred_element_type=f32)                      # (NH, S, D)
        ctx = jnp.concatenate([ctx[i] for i in range(num_heads)], axis=-1)  # (S, H)

        # attention output dense + residual + LayerNorm
        attn_out = mxu(ctx, wo_ref[layer]) + bo_ref[layer]
        h1 = ln(attn_out + h, ln1g_ref[layer], ln1b_ref[layer])

        # fused FFN: w1 -> GELU -> w2, intermediate stays in vregs (f32 elementwise)
        ff = mxu(h1, w1_ref[layer]) + b1_ref[layer]
        ff = gelu(ff)
        ff = mxu(ff, w2_ref[layer]) + b2_ref[layer]
        h = ln(ff + h1, ln2g_ref[layer], ln2b_ref[layer])

    # ---- pooler: tanh(W @ h[CLS] + b) on the first row of this batch element ----
    pooled = jnp.tanh(mxu(h[0:1, :], pool_w_ref[...]) + pool_b_ref[...])  # (1, H)

    # ---- both task classifiers in one lane-padded matmul + per-task masked softmax ----
    logits = mxu(pooled, cls_w_ref[...]) + cls_b_ref[...]                 # (1, CLS_PAD)
    cols = jax.lax.broadcasted_iota(jnp.int32, logits.shape, 1)
    out = jnp.zeros_like(logits)
    off = 0
    for c in class_sizes:
        sel = jnp.logical_and(cols >= off, cols < off + c)
        ml = jnp.where(sel, logits, -1e30)
        ml = ml - jnp.max(ml, axis=-1, keepdims=True)
        e = jnp.where(sel, jnp.exp(ml), 0.0)
        out = jnp.where(sel, e / jnp.sum(e, axis=-1, keepdims=True), out)
        off += c
    proba_ref[...] = out.reshape(proba_ref.shape)                         # (1, 1, CLS_PAD)


# ----------------------------------------------------------------------------- params

def init_params(key):
    def nrm(k, shape):
        return 0.02 * jax.random.normal(k, shape, dtype=jnp.float32)

    keys = iter(jax.random.split(key, 128))
    p = {
        "word_emb": nrm(next(keys), (VOCAB, HIDDEN)),
        "pos_emb": nrm(next(keys), (MAX_POS, HIDDEN)),
        "type_emb": nrm(next(keys), (2, HIDDEN)),
        "emb_ln_g": jnp.ones((HIDDEN,), jnp.float32),
        "emb_ln_b": jnp.zeros((HIDDEN,), jnp.float32),
        "pool_w": nrm(next(keys), (HIDDEN, HIDDEN)),
        "pool_b": jnp.zeros((HIDDEN,), jnp.float32),
        "layers": [],
        "cls": [],
    }
    for _ in range(NUM_LAYERS):
        p["layers"].append({
            "wq": nrm(next(keys), (HIDDEN, HIDDEN)), "bq": jnp.zeros((HIDDEN,), jnp.float32),
            "wk": nrm(next(keys), (HIDDEN, HIDDEN)), "bk": jnp.zeros((HIDDEN,), jnp.float32),
            "wv": nrm(next(keys), (HIDDEN, HIDDEN)), "bv": jnp.zeros((HIDDEN,), jnp.float32),
            "wo": nrm(next(keys), (HIDDEN, HIDDEN)), "bo": jnp.zeros((HIDDEN,), jnp.float32),
            "ln1_g": jnp.ones((HIDDEN,), jnp.float32), "ln1_b": jnp.zeros((HIDDEN,), jnp.float32),
            "w1": nrm(next(keys), (HIDDEN, INTERMEDIATE)), "b1": jnp.zeros((INTERMEDIATE,), jnp.float32),
            "w2": nrm(next(keys), (INTERMEDIATE, HIDDEN)), "b2": jnp.zeros((HIDDEN,), jnp.float32),
            "ln2_g": jnp.ones((HIDDEN,), jnp.float32), "ln2_b": jnp.zeros((HIDDEN,), jnp.float32),
        })
    for c in NUM_CLASSES_LIST:
        p["cls"].append({"w": nrm(next(keys), (HIDDEN, c)),
                         "b": jnp.zeros((c,), jnp.float32)})
    return p


def pack_params(params):
    """One-time repack: bf16 matmul weights, fused QKV (Q pre-scaled), stacked layers,
    padded vocab, padded classifier, folded pos+type embedding table."""
    layers = params["layers"]
    scale = 1.0 / math.sqrt(HEAD_DIM)
    bf16 = jnp.bfloat16

    def stack_w(name):                         # (L, K, N) bf16
        return jnp.stack([lp[name] for lp in layers]).astype(bf16)

    def stack_b(name):                         # (L, 1, N) f32
        return jnp.stack([lp[name].reshape(1, -1) for lp in layers]).astype(jnp.float32)

    cls_w = jnp.concatenate([cp["w"] for cp in params["cls"]], axis=1)      # (H, 8)
    cls_b = jnp.concatenate([cp["b"] for cp in params["cls"]]).reshape(1, -1)
    cls_w_pad = jnp.zeros((HIDDEN, CLS_PAD), jnp.float32).at[:, :cls_w.shape[1]].set(cls_w)
    cls_b_pad = jnp.zeros((1, CLS_PAD), jnp.float32).at[:, :cls_b.shape[1]].set(cls_b)

    packed = {
        "word_emb": jnp.zeros((VOCAB_PAD, HIDDEN), jnp.float32)
                       .at[:VOCAB].set(params["word_emb"]).astype(bf16),
        # position + token-type(=0) embeddings folded once at pack time: (MAX_POS, H) f32
        "pos_te": params["pos_emb"] + params["type_emb"][0][None, :],
        "emb_ln_g": params["emb_ln_g"].reshape(1, HIDDEN),
        "emb_ln_b": params["emb_ln_b"].reshape(1, HIDDEN),
        # fused QKV with 1/sqrt(D) folded into Q weight + bias
        "wqkv": jnp.stack([jnp.concatenate([lp["wq"] * scale, lp["wk"], lp["wv"]], axis=1)
                           for lp in layers]).astype(bf16),
        "bqkv": jnp.stack([jnp.concatenate([lp["bq"] * scale, lp["bk"], lp["bv"]]).reshape(1, -1)
                           for lp in layers]).astype(jnp.float32),
        "wo": stack_w("wo"), "bo": stack_b("bo"),
        "ln1_g": stack_b("ln1_g"), "ln1_b": stack_b("ln1_b"),
        "w1": stack_w("w1"), "b1": stack_b("b1"),
        "w2": stack_w("w2"), "b2": stack_b("b2"),
        "ln2_g": stack_b("ln2_g"), "ln2_b": stack_b("ln2_b"),
        "pool_w": params["pool_w"].astype(bf16),
        "pool_b": params["pool_b"].reshape(1, HIDDEN),
        "cls_w": cls_w_pad.astype(bf16),
        "cls_b": cls_b_pad,
    }
    return packed


# ----------------------------------------------------------------------------- forward

_WEIGHT_KEYS = ("word_emb", "emb_ln_g", "emb_ln_b",
                "wqkv", "bqkv", "wo", "bo",
                "ln1_g", "ln1_b", "w1", "b1", "w2", "b2", "ln2_g", "ln2_b",
                "pool_w", "pool_b", "cls_w", "cls_b")


def _resident_spec(arr):
    """Whole-array VMEM block, same block for every grid step (no re-DMA)."""
    n = arr.ndim
    return pl.BlockSpec(arr.shape, lambda b, _n=n: (0,) * _n, memory_space=VMEM)


def multitask_bert_forward(packed, input_ids, attention_mask):
    B, S = input_ids.shape
    ids2d = input_ids.reshape(B * S, 1).astype(jnp.int32)
    pos_te = packed["pos_te"][:S]                                           # (S, H) f32
    # additive attention mask: 0 where attended, -1e9 where padded, shaped (B, 1, S)
    add_mask = ((1.0 - attention_mask.astype(jnp.float32)) * -1e9).reshape(B, 1, S)

    kernel = functools.partial(
        _fused_bert_kernel,
        seq=S, hidden=HIDDEN, num_heads=NUM_HEADS, head_dim=HEAD_DIM,
        num_layers=NUM_LAYERS, class_sizes=tuple(NUM_CLASSES_LIST), eps=LN_EPS)

    in_specs = [
        pl.BlockSpec((S, 1), lambda b: (b, 0), memory_space=VMEM),          # ids rows of batch b
        _resident_spec(pos_te),                                             # (S, H)
        pl.BlockSpec((1, 1, S), lambda b: (b, 0, 0), memory_space=VMEM),    # mask of batch b
    ] + [_resident_spec(packed[k]) for k in _WEIGHT_KEYS]

    proba_pad = pl.pallas_call(
        kernel,
        grid=(B,),                                                          # one program per batch elem
        in_specs=in_specs,
        out_specs=pl.BlockSpec((1, 1, CLS_PAD), lambda b: (b, 0, 0), memory_space=VMEM),
        out_shape=jax.ShapeDtypeStruct((B, 1, CLS_PAD), jnp.float32),
        compiler_params=pltpu.CompilerParams(
            dimension_semantics=("parallel",),                              # shards over TCs on v7x
            vmem_limit_bytes=4 * 1024 * 1024),
    )(ids2d, pos_te, add_mask, *(packed[k] for k in _WEIGHT_KEYS))

    proba_cat = proba_pad.reshape(B, CLS_PAD)
    proba, off = [], 0
    for c in NUM_CLASSES_LIST:
        proba.append(proba_cat[:, off:off + c])
        off += c
    return proba


# ----------------------------------------------------------------------------- main

if __name__ == "__main__":
    B, S = 2, 8
    key = jax.random.PRNGKey(0)
    k_params, k_ids = jax.random.split(key)

    params = init_params(k_params)
    packed = pack_params(params)

    input_ids = jax.random.randint(k_ids, (B, S), 0, VOCAB, dtype=jnp.int32)
    attention_mask = jnp.ones((B, S), dtype=jnp.int32)
    attention_mask = attention_mask.at[1, 6:].set(0)  # pad last 2 tokens of batch 1

    fwd = jax.jit(multitask_bert_forward)
    proba = fwd(packed, input_ids, attention_mask)
    proba = jax.block_until_ready(proba)

    # sanity: each task head's probabilities sum to 1
    for p, c in zip(proba, NUM_CLASSES_LIST):
        assert p.shape == (B, c)
        assert jnp.allclose(jnp.sum(p, axis=1), 1.0, atol=1e-5)

    print("KERNEL_OK")
</pallas_src>

<mosaic_0001>
module attributes {stable_mosaic.version = 11 : i64} {
  func.func @_fused_bert_kernel(%arg0: i32, %arg1: memref<8x1xi32, #tpu.memory_space<vmem>>, %arg2: memref<8x32xf32, #tpu.memory_space<vmem>>, %arg3: memref<1x1x8xf32, #tpu.memory_space<vmem>>, %arg4: memref<128x32xbf16, #tpu.memory_space<vmem>>, %arg5: memref<1x32xf32, #tpu.memory_space<vmem>>, %arg6: memref<1x32xf32, #tpu.memory_space<vmem>>, %arg7: memref<2x32x96xbf16, #tpu.memory_space<vmem>>, %arg8: memref<2x1x96xf32, #tpu.memory_space<vmem>>, %arg9: memref<2x32x32xbf16, #tpu.memory_space<vmem>>, %arg10: memref<2x1x32xf32, #tpu.memory_space<vmem>>, %arg11: memref<2x1x32xf32, #tpu.memory_space<vmem>>, %arg12: memref<2x1x32xf32, #tpu.memory_space<vmem>>, %arg13: memref<2x32x64xbf16, #tpu.memory_space<vmem>>, %arg14: memref<2x1x64xf32, #tpu.memory_space<vmem>>, %arg15: memref<2x64x32xbf16, #tpu.memory_space<vmem>>, %arg16: memref<2x1x32xf32, #tpu.memory_space<vmem>>, %arg17: memref<2x1x32xf32, #tpu.memory_space<vmem>>, %arg18: memref<2x1x32xf32, #tpu.memory_space<vmem>>, %arg19: memref<32x32xbf16, #tpu.memory_space<vmem>>, %arg20: memref<1x32xf32, #tpu.memory_space<vmem>>, %arg21: memref<32x128xbf16, #tpu.memory_space<vmem>>, %arg22: memref<1x128xf32, #tpu.memory_space<vmem>>, %arg23: memref<1x1x128xf32, #tpu.memory_space<vmem>>) attributes {dimension_semantics = [#tpu.dimension_semantics<parallel>], iteration_bounds = array<i64: 2>, scalar_prefetch = 0 : i64, scratch_operands = 0 : i64, tpu.core_type = #tpu.core_type<tc>, window_params = [{transform_indices = @transform_0, window_bounds = array<i64: 8, 1>}, {pipeline_mode = #tpu.pipeline_mode<synchronous>, transform_indices = @transform_1, window_bounds = array<i64: 8, 32>}, {transform_indices = @transform_2, window_bounds = array<i64: 1, 1, 8>}, {pipeline_mode = #tpu.pipeline_mode<synchronous>, transform_indices = @transform_3, window_bounds = array<i64: 128, 32>}, {pipeline_mode = #tpu.pipeline_mode<synchronous>, transform_indices = @transform_4, window_bounds = array<i64: 1, 32>}, {pipeline_mode = #tpu.pipeline_mode<synchronous>, transform_indices = @transform_5, window_bounds = array<i64: 1, 32>}, {pipeline_mode = #tpu.pipeline_mode<synchronous>, transform_indices = @transform_6, window_bounds = array<i64: 2, 32, 96>}, {pipeline_mode = #tpu.pipeline_mode<synchronous>, transform_indices = @transform_7, window_bounds = array<i64: 2, 1, 96>}, {pipeline_mode = #tpu.pipeline_mode<synchronous>, transform_indices = @transform_8, window_bounds = array<i64: 2, 32, 32>}, {pipeline_mode = #tpu.pipeline_mode<synchronous>, transform_indices = @transform_9, window_bounds = array<i64: 2, 1, 32>}, {pipeline_mode = #tpu.pipeline_mode<synchronous>, transform_indices = @transform_10, window_bounds = array<i64: 2, 1, 32>}, {pipeline_mode = #tpu.pipeline_mode<synchronous>, transform_indices = @transform_11, window_bounds = array<i64: 2, 1, 32>}, {pipeline_mode = #tpu.pipeline_mode<synchronous>, transform_indices = @transform_12, window_bounds = array<i64: 2, 32, 64>}, {pipeline_mode = #tpu.pipeline_mode<synchronous>, transform_indices = @transform_13, window_bounds = array<i64: 2, 1, 64>}, {pipeline_mode = #tpu.pipeline_mode<synchronous>, transform_indices = @transform_14, window_bounds = array<i64: 2, 64, 32>}, {pipeline_mode = #tpu.pipeline_mode<synchronous>, transform_indices = @transform_15, window_bounds = array<i64: 2, 1, 32>}, {pipeline_mode = #tpu.pipeline_mode<synchronous>, transform_indices = @transform_16, window_bounds = array<i64: 2, 1, 32>}, {pipeline_mode = #tpu.pipeline_mode<synchronous>, transform_indices = @transform_17, window_bounds = array<i64: 2, 1, 32>}, {pipeline_mode = #tpu.pipeline_mode<synchronous>, transform_indices = @transform_18, window_bounds = array<i64: 32, 32>}, {pipeline_mode = #tpu.pipeline_mode<synchronous>, transform_indices = @transform_19, window_bounds = array<i64: 1, 32>}, {pipeline_mode = #tpu.pipeline_mode<synchronous>, transform_indices = @transform_20, window_bounds = array<i64: 32, 128>}, {pipeline_mode = #tpu.pipeline_mode<synchronous>, transform_indices = @transform_21, window_bounds = array<i64: 1, 128>}, {transform_indices = @transform_22, window_bounds = array<i64: 1, 1, 128>}]} {
    %c0 = arith.constant 0 : index
    %c0_0 = arith.constant 0 : index
    %0 = vector.load %arg1[%c0, %c0_0] : memref<8x1xi32, #tpu.memory_space<vmem>>, vector<8x1xi32>
    %1 = tpu.iota {dimensions = array<i32: 1>} : vector<8x128xi32>
    %2 = vector.broadcast %0 : vector<8x1xi32> to vector<8x128xi32>
    %3 = arith.cmpi eq, %1, %2 : vector<8x128xi32>
    %4 = arith.extui %3 : vector<8x128xi1> to vector<8x128xi32>
    %5 = arith.sitofp %4 : vector<8x128xi32> to vector<8x128xf32>
    %6 = arith.truncf %5 : vector<8x128xf32> to vector<8x128xbf16>
    %c0_1 = arith.constant 0 : index
    %c0_2 = arith.constant 0 : index
    %7 = vector.load %arg4[%c0_1, %c0_2] : memref<128x32xbf16, #tpu.memory_space<vmem>>, vector<128x32xbf16>
    %cst = arith.constant dense<0.000000e+00> : vector<8x32xf32>
    %8 = tpu.matmul %6, %7, %cst {dimension_numbers = #tpu.dot_dimension_numbers<[1], [0], [0], [1], [0, 0, 1, 1], [], []>} : vector<8x128xbf16>, vector<128x32xbf16>, vector<8x32xf32> -> vector<8x32xf32>
    %c0_3 = arith.constant 0 : index
    %c0_4 = arith.constant 0 : index
    %9 = vector.load %arg2[%c0_3, %c0_4] : memref<8x32xf32, #tpu.memory_space<vmem>>, vector<8x32xf32>
    %10 = arith.addf %8, %9 : vector<8x32xf32>
    %c0_5 = arith.constant 0 : index
    %c0_6 = arith.constant 0 : index
    %11 = vector.load %arg5[%c0_5, %c0_6] : memref<1x32xf32, #tpu.memory_space<vmem>>, vector<1x32xf32>
    %c0_7 = arith.constant 0 : index
    %c0_8 = arith.constant 0 : index
    %12 = vector.load %arg6[%c0_7, %c0_8] : memref<1x32xf32, #tpu.memory_space<vmem>>, vector<1x32xf32>
    %cst_9 = arith.constant dense<0.000000e+00> : vector<8xf32>
    %13 = vector.multi_reduction <add>, %10, %cst_9 [1] : vector<8x32xf32> to vector<8xf32>
    %14 = vector.shape_cast %13 : vector<8xf32> to vector<8x1xf32>
    %cst_10 = arith.constant 3.200000e+01 : f32
    %15 = vector.broadcast %cst_10 : f32 to vector<8x1xf32>
    %16 = arith.divf %14, %15 : vector<8x1xf32>
    %17 = vector.broadcast %16 : vector<8x1xf32> to vector<8x32xf32>
    %18 = arith.subf %10, %17 : vector<8x32xf32>
    %19 = vector.broadcast %16 : vector<8x1xf32> to vector<8x32xf32>
    %20 = arith.subf %10, %19 : vector<8x32xf32>
    %21 = arith.mulf %18, %20 : vector<8x32xf32>
    %cst_11 = arith.constant dense<0.000000e+00> : vector<8xf32>
    %22 = vector.multi_reduction <add>, %21, %cst_11 [1] : vector<8x32xf32> to vector<8xf32>
    %23 = vector.shape_cast %22 : vector<8xf32> to vector<8x1xf32>
    %cst_12 = arith.constant 3.200000e+01 : f32
    %24 = vector.broadcast %cst_12 : f32 to vector<8x1xf32>
    %25 = arith.divf %23, %24 : vector<8x1xf32>
    %26 = vector.broadcast %16 : vector<8x1xf32> to vector<8x32xf32>
    %27 = arith.subf %10, %26 : vector<8x32xf32>
    %cst_13 = arith.constant 9.99999996E-13 : f32
    %28 = vector.broadcast %cst_13 : f32 to vector<8x1xf32>
    %29 = arith.addf %25, %28 : vector<8x1xf32>
    %30 = math.rsqrt %29 : vector<8x1xf32>
    %31 = vector.broadcast %30 : vector<8x1xf32> to vector<8x32xf32>
    %32 = arith.mulf %27, %31 : vector<8x32xf32>
    %33 = vector.broadcast %11 : vector<1x32xf32> to vector<8x32xf32>
    %34 = arith.mulf %32, %33 : vector<8x32xf32>
    %35 = vector.broadcast %12 : vector<1x32xf32> to vector<8x32xf32>
    %36 = arith.addf %34, %35 : vector<8x32xf32>
    %c0_14 = arith.constant 0 : index
    %c0_15 = arith.constant 0 : index
    %c0_16 = arith.constant 0 : index
    %37 = vector.load %arg3[%c0_14, %c0_15, %c0_16] : memref<1x1x8xf32, #tpu.memory_space<vmem>>, vector<1x1x8xf32>
    %38 = vector.shape_cast %37 : vector<1x1x8xf32> to vector<1x1x8xf32>
    %39 = vector.broadcast %38 : vector<1x1x8xf32> to vector<2x8x8xf32>
    %c0_17 = arith.constant 0 : index
    %c0_18 = arith.constant 0 : index
    %c0_19 = arith.constant 0 : index
    %40 = vector.load %arg7[%c0_17, %c0_18, %c0_19] : memref<2x32x96xbf16, #tpu.memory_space<vmem>>, vector<1x32x96xbf16>
    %41 = vector.shape_cast %40 : vector<1x32x96xbf16> to vector<32x96xbf16>
    %42 = arith.truncf %36 : vector<8x32xf32> to vector<8x32xbf16>
    %cst_20 = arith.constant dense<0.000000e+00> : vector<8x96xf32>
    %43 = tpu.matmul %42, %41, %cst_20 {dimension_numbers = #tpu.dot_dimension_numbers<[1], [0], [0], [1], [0, 0, 1, 1], [], []>} : vector<8x32xbf16>, vector<32x96xbf16>, vector<8x96xf32> -> vector<8x96xf32>
    %c0_21 = arith.constant 0 : index
    %c0_22 = arith.constant 0 : index
    %c0_23 = arith.constant 0 : index
    %44 = vector.load %arg8[%c0_21, %c0_22, %c0_23] : memref<2x1x96xf32, #tpu.memory_space<vmem>>, vector<1x1x96xf32>
    %45 = vector.shape_cast %44 : vector<1x1x96xf32> to vector<1x96xf32>
    %46 = vector.broadcast %45 : vector<1x96xf32> to vector<8x96xf32>
    %47 = arith.addf %43, %46 : vector<8x96xf32>
    %48 = vector.extract_strided_slice %47 {offsets = [0, 0], sizes = [8, 32], strides = [1, 1]} : vector<8x96xf32> to vector<8x32xf32>
    %49 = vector.extract_strided_slice %48 {offsets = [0, 0], sizes = [8, 16], strides = [1, 1]} : vector<8x32xf32> to vector<8x16xf32>
    %50 = vector.extract_strided_slice %48 {offsets = [0, 16], sizes = [8, 16], strides = [1, 1]} : vector<8x32xf32> to vector<8x16xf32>
    %51 = vector.shape_cast %49 : vector<8x16xf32> to vector<1x8x16xf32>
    %52 = vector.shape_cast %50 : vector<8x16xf32> to vector<1x8x16xf32>
    %53 = tpu.concatenate %51, %52 in 0 : vector<1x8x16xf32>, vector<1x8x16xf32> -> vector<2x8x16xf32>
    %54 = vector.extract_strided_slice %47 {offsets = [0, 32], sizes = [8, 32], strides = [1, 1]} : vector<8x96xf32> to vector<8x32xf32>
    %55 = vector.extract_strided_slice %54 {offsets = [0, 0], sizes = [8, 16], strides = [1, 1]} : vector<8x32xf32> to vector<8x16xf32>
    %56 = vector.extract_strided_slice %54 {offsets = [0, 16], sizes = [8, 16], strides = [1, 1]} : vector<8x32xf32> to vector<8x16xf32>
    %57 = vector.shape_cast %55 : vector<8x16xf32> to vector<1x8x16xf32>
    %58 = vector.shape_cast %56 : vector<8x16xf32> to vector<1x8x16xf32>
    %59 = tpu.concatenate %57, %58 in 0 : vector<1x8x16xf32>, vector<1x8x16xf32> -> vector<2x8x16xf32>
    %60 = vector.extract_strided_slice %47 {offsets = [0, 64], sizes = [8, 32], strides = [1, 1]} : vector<8x96xf32> to vector<8x32xf32>
    %61 = vector.extract_strided_slice %60 {offsets = [0, 0], sizes = [8, 16], strides = [1, 1]} : vector<8x32xf32> to vector<8x16xf32>
    %62 = vector.extract_strided_slice %60 {offsets = [0, 16], sizes = [8, 16], strides = [1, 1]} : vector<8x32xf32> to vector<8x16xf32>
    %63 = vector.shape_cast %61 : vector<8x16xf32> to vector<1x8x16xf32>
    %64 = vector.shape_cast %62 : vector<8x16xf32> to vector<1x8x16xf32>
    %65 = tpu.concatenate %63, %64 in 0 : vector<1x8x16xf32>, vector<1x8x16xf32> -> vector<2x8x16xf32>
    %66 = arith.truncf %53 : vector<2x8x16xf32> to vector<2x8x16xbf16>
    %67 = arith.truncf %59 : vector<2x8x16xf32> to vector<2x8x16xbf16>
    "tpu.trace_start"() <{level = 10 : i32, message = "hqd,hkd->hqk"}> : () -> ()
    %cst_24 = arith.constant dense<0.000000e+00> : vector<2x8x8xf32>
    %68 = tpu.matmul %66, %67, %cst_24 {dimension_numbers = #tpu.dot_dimension_numbers<[2], [2], [1], [1], [0, 0, 0, 1, 1, 1], [0], [0]>} : vector<2x8x16xbf16>, vector<2x8x16xbf16>, vector<2x8x8xf32> -> vector<2x8x8xf32>
    "tpu.trace_stop"() : () -> ()
    %69 = arith.addf %68, %39 : vector<2x8x8xf32>
    %cst_25 = arith.constant dense<0xFF800000> : vector<2x8xf32>
    %70 = vector.multi_reduction <maximumf>, %69, %cst_25 [2] : vector<2x8x8xf32> to vector<2x8xf32>
    %71 = vector.shape_cast %70 : vector<2x8xf32> to vector<2x8x1xf32>
    %72 = vector.broadcast %71 : vector<2x8x1xf32> to vector<2x8x8xf32>
    %73 = arith.subf %69, %72 : vector<2x8x8xf32>
    %74 = math.exp %73 : vector<2x8x8xf32>
    %cst_26 = arith.constant dense<0.000000e+00> : vector<2x8xf32>
    %75 = vector.multi_reduction <add>, %74, %cst_26 [2] : vector<2x8x8xf32> to vector<2x8xf32>
    %76 = vector.shape_cast %75 : vector<2x8xf32> to vector<2x8x1xf32>
    %77 = vector.broadcast %76 : vector<2x8x1xf32> to vector<2x8x8xf32>
    %78 = arith.divf %74, %77 : vector<2x8x8xf32>
    %79 = arith.truncf %78 : vector<2x8x8xf32> to vector<2x8x8xbf16>
    %80 = arith.truncf %65 : vector<2x8x16xf32> to vector<2x8x16xbf16>
    "tpu.trace_start"() <{level = 10 : i32, message = "hqk,hkd->hqd"}> : () -> ()
    %cst_27 = arith.constant dense<0.000000e+00> : vector<2x8x16xf32>
    %81 = tpu.matmul %79, %80, %cst_27 {dimension_numbers = #tpu.dot_dimension_numbers<[2], [1], [1], [2], [0, 0, 0, 1, 1, 2], [0], [0]>} : vector<2x8x8xbf16>, vector<2x8x16xbf16>, vector<2x8x16xf32> -> vector<2x8x16xf32>
    "tpu.trace_stop"() : () -> ()
    %82 = vector.extract_strided_slice %81 {offsets = [0, 0, 0], sizes = [1, 8, 16], strides = [1, 1, 1]} : vector<2x8x16xf32> to vector<1x8x16xf32>
    %83 = vector.shape_cast %82 : vector<1x8x16xf32> to vector<8x16xf32>
    %84 = vector.extract_strided_slice %81 {offsets = [1, 0, 0], sizes = [1, 8, 16], strides = [1, 1, 1]} : vector<2x8x16xf32> to vector<1x8x16xf32>
    %85 = vector.shape_cast %84 : vector<1x8x16xf32> to vector<8x16xf32>
    %86 = tpu.concatenate %83, %85 in 1 : vector<8x16xf32>, vector<8x16xf32> -> vector<8x32xf32>
    %c0_28 = arith.constant 0 : index
    %c0_29 = arith.constant 0 : index
    %c0_30 = arith.constant 0 : index
    %87 = vector.load %arg9[%c0_28, %c0_29, %c0_30] : memref<2x32x32xbf16, #tpu.memory_space<vmem>>, vector<1x32x32xbf16>
    %88 = vector.shape_cast %87 : vector<1x32x32xbf16> to vector<32x32xbf16>
    %89 = arith.truncf %86 : vector<8x32xf32> to vector<8x32xbf16>
    %cst_31 = arith.constant dense<0.000000e+00> : vector<8x32xf32>
    %90 = tpu.matmul %89, %88, %cst_31 {dimension_numbers = #tpu.dot_dimension_numbers<[1], [0], [0], [1], [0, 0, 1, 1], [], []>} : vector<8x32xbf16>, vector<32x32xbf16>, vector<8x32xf32> -> vector<8x32xf32>
    %c0_32 = arith.constant 0 : index
    %c0_33 = arith.constant 0 : index
    %c0_34 = arith.constant 0 : index
    %91 = vector.load %arg10[%c0_32, %c0_33, %c0_34] : memref<2x1x32xf32, #tpu.memory_space<vmem>>, vector<1x1x32xf32>
    %92 = vector.shape_cast %91 : vector<1x1x32xf32> to vector<1x32xf32>
    %93 = vector.broadcast %92 : vector<1x32xf32> to vector<8x32xf32>
    %94 = arith.addf %90, %93 : vector<8x32xf32>
    %95 = arith.addf %94, %36 : vector<8x32xf32>
    %c0_35 = arith.constant 0 : index
    %c0_36 = arith.constant 0 : index
    %c0_37 = arith.constant 0 : index
    %96 = vector.load %arg11[%c0_35, %c0_36, %c0_37] : memref<2x1x32xf32, #tpu.memory_space<vmem>>, vector<1x1x32xf32>
    %97 = vector.shape_cast %96 : vector<1x1x32xf32> to vector<1x32xf32>
    %c0_38 = arith.constant 0 : index
    %c0_39 = arith.constant 0 : index
    %c0_40 = arith.constant 0 : index
    %98 = vector.load %arg12[%c0_38, %c0_39, %c0_40] : memref<2x1x32xf32, #tpu.memory_space<vmem>>, vector<1x1x32xf32>
    %99 = vector.shape_cast %98 : vector<1x1x32xf32> to vector<1x32xf32>
    %cst_41 = arith.constant dense<0.000000e+00> : vector<8xf32>
    %100 = vector.multi_reduction <add>, %95, %cst_41 [1] : vector<8x32xf32> to vector<8xf32>
    %101 = vector.shape_cast %100 : vector<8xf32> to vector<8x1xf32>
    %cst_42 = arith.constant 3.200000e+01 : f32
    %102 = vector.broadcast %cst_42 : f32 to vector<8x1xf32>
    %103 = arith.divf %101, %102 : vector<8x1xf32>
    %104 = vector.broadcast %103 : vector<8x1xf32> to vector<8x32xf32>
    %105 = arith.subf %95, %104 : vector<8x32xf32>
    %106 = vector.broadcast %103 : vector<8x1xf32> to vector<8x32xf32>
    %107 = arith.subf %95, %106 : vector<8x32xf32>
    %108 = arith.mulf %105, %107 : vector<8x32xf32>
    %cst_43 = arith.constant dense<0.000000e+00> : vector<8xf32>
    %109 = vector.multi_reduction <add>, %108, %cst_43 [1] : vector<8x32xf32> to vector<8xf32>
    %110 = vector.shape_cast %109 : vector<8xf32> to vector<8x1xf32>
    %cst_44 = arith.constant 3.200000e+01 : f32
    %111 = vector.broadcast %cst_44 : f32 to vector<8x1xf32>
    %112 = arith.divf %110, %111 : vector<8x1xf32>
    %113 = vector.broadcast %103 : vector<8x1xf32> to vector<8x32xf32>
    %114 = arith.subf %95, %113 : vector<8x32xf32>
    %cst_45 = arith.constant 9.99999996E-13 : f32
    %115 = vector.broadcast %cst_45 : f32 to vector<8x1xf32>
    %116 = arith.addf %112, %115 : vector<8x1xf32>
    %117 = math.rsqrt %116 : vector<8x1xf32>
    %118 = vector.broadcast %117 : vector<8x1xf32> to vector<8x32xf32>
    %119 = arith.mulf %114, %118 : vector<8x32xf32>
    %120 = vector.broadcast %97 : vector<1x32xf32> to vector<8x32xf32>
    %121 = arith.mulf %119, %120 : vector<8x32xf32>
    %122 = vector.broadcast %99 : vector<1x32xf32> to vector<8x32xf32>
    %123 = arith.addf %121, %122 : vector<8x32xf32>
    %c0_46 = arith.constant 0 : index
    %c0_47 = arith.constant 0 : index
    %c0_48 = arith.constant 0 : index
    %124 = vector.load %arg13[%c0_46, %c0_47, %c0_48] : memref<2x32x64xbf16, #tpu.memory_space<vmem>>, vector<1x32x64xbf16>
    %125 = vector.shape_cast %124 : vector<1x32x64xbf16> to vector<32x64xbf16>
    %126 = arith.truncf %123 : vector<8x32xf32> to vector<8x32xbf16>
    %cst_49 = arith.constant dense<0.000000e+00> : vector<8x64xf32>
    %127 = tpu.matmul %126, %125, %cst_49 {dimension_numbers = #tpu.dot_dimension_numbers<[1], [0], [0], [1], [0, 0, 1, 1], [], []>} : vector<8x32xbf16>, vector<32x64xbf16>, vector<8x64xf32> -> vector<8x64xf32>
    %c0_50 = arith.constant 0 : index
    %c0_51 = arith.constant 0 : index
    %c0_52 = arith.constant 0 : index
    %128 = vector.load %arg14[%c0_50, %c0_51, %c0_52] : memref<2x1x64xf32, #tpu.memory_space<vmem>>, vector<1x1x64xf32>
    %129 = vector.shape_cast %128 : vector<1x1x64xf32> to vector<1x64xf32>
    %130 = vector.broadcast %129 : vector<1x64xf32> to vector<8x64xf32>
    %131 = arith.addf %127, %130 : vector<8x64xf32>
    %cst_53 = arith.constant 5.000000e-01 : f32
    %132 = vector.broadcast %cst_53 : f32 to vector<8x64xf32>
    %133 = arith.mulf %132, %131 : vector<8x64xf32>
    %cst_54 = arith.constant 4.471500e-02 : f32
    %134 = vector.broadcast %cst_54 : f32 to vector<8x64xf32>
    %135 = arith.mulf %134, %131 : vector<8x64xf32>
    %136 = arith.mulf %135, %131 : vector<8x64xf32>
    %137 = arith.mulf %136, %131 : vector<8x64xf32>
    %138 = arith.addf %131, %137 : vector<8x64xf32>
    %cst_55 = arith.constant 0.797884583 : f32
    %139 = vector.broadcast %cst_55 : f32 to vector<8x64xf32>
    %140 = arith.mulf %139, %138 : vector<8x64xf32>
    %141 = math.tanh %140 : vector<8x64xf32>
    %cst_56 = arith.constant 1.000000e+00 : f32
    %142 = vector.broadcast %cst_56 : f32 to vector<8x64xf32>
    %143 = arith.addf %142, %141 : vector<8x64xf32>
    %144 = arith.mulf %133, %143 : vector<8x64xf32>
    %c0_57 = arith.constant 0 : index
    %c0_58 = arith.constant 0 : index
    %c0_59 = arith.constant 0 : index
    %145 = vector.load %arg15[%c0_57, %c0_58, %c0_59] : memref<2x64x32xbf16, #tpu.memory_space<vmem>>, vector<1x64x32xbf16>
    %146 = vector.shape_cast %145 : vector<1x64x32xbf16> to vector<64x32xbf16>
    %147 = arith.truncf %144 : vector<8x64xf32> to vector<8x64xbf16>
    %cst_60 = arith.constant dense<0.000000e+00> : vector<8x32xf32>
    %148 = tpu.matmul %147, %146, %cst_60 {dimension_numbers = #tpu.dot_dimension_numbers<[1], [0], [0], [1], [0, 0, 1, 1], [], []>} : vector<8x64xbf16>, vector<64x32xbf16>, vector<8x32xf32> -> vector<8x32xf32>
    %c0_61 = arith.constant 0 : index
    %c0_62 = arith.constant 0 : index
    %c0_63 = arith.constant 0 : index
    %149 = vector.load %arg16[%c0_61, %c0_62, %c0_63] : memref<2x1x32xf32, #tpu.memory_space<vmem>>, vector<1x1x32xf32>
    %150 = vector.shape_cast %149 : vector<1x1x32xf32> to vector<1x32xf32>
    %151 = vector.broadcast %150 : vector<1x32xf32> to vector<8x32xf32>
    %152 = arith.addf %148, %151 : vector<8x32xf32>
    %153 = arith.addf %152, %123 : vector<8x32xf32>
    %c0_64 = arith.constant 0 : index
    %c0_65 = arith.constant 0 : index
    %c0_66 = arith.constant 0 : index
    %154 = vector.load %arg17[%c0_64, %c0_65, %c0_66] : memref<2x1x32xf32, #tpu.memory_space<vmem>>, vector<1x1x32xf32>
    %155 = vector.shape_cast %154 : vector<1x1x32xf32> to vector<1x32xf32>
    %c0_67 = arith.constant 0 : index
    %c0_68 = arith.constant 0 : index
    %c0_69 = arith.constant 0 : index
    %156 = vector.load %arg18[%c0_67, %c0_68, %c0_69] : memref<2x1x32xf32, #tpu.memory_space<vmem>>, vector<1x1x32xf32>
    %157 = vector.shape_cast %156 : vector<1x1x32xf32> to vector<1x32xf32>
    %cst_70 = arith.constant dense<0.000000e+00> : vector<8xf32>
    %158 = vector.multi_reduction <add>, %153, %cst_70 [1] : vector<8x32xf32> to vector<8xf32>
    %159 = vector.shape_cast %158 : vector<8xf32> to vector<8x1xf32>
    %cst_71 = arith.constant 3.200000e+01 : f32
    %160 = vector.broadcast %cst_71 : f32 to vector<8x1xf32>
    %161 = arith.divf %159, %160 : vector<8x1xf32>
    %162 = vector.broadcast %161 : vector<8x1xf32> to vector<8x32xf32>
    %163 = arith.subf %153, %162 : vector<8x32xf32>
    %164 = vector.broadcast %161 : vector<8x1xf32> to vector<8x32xf32>
    %165 = arith.subf %153, %164 : vector<8x32xf32>
    %166 = arith.mulf %163, %165 : vector<8x32xf32>
    %cst_72 = arith.constant dense<0.000000e+00> : vector<8xf32>
    %167 = vector.multi_reduction <add>, %166, %cst_72 [1] : vector<8x32xf32> to vector<8xf32>
    %168 = vector.shape_cast %167 : vector<8xf32> to vector<8x1xf32>
    %cst_73 = arith.constant 3.200000e+01 : f32
    %169 = vector.broadcast %cst_73 : f32 to vector<8x1xf32>
    %170 = arith.divf %168, %169 : vector<8x1xf32>
    %171 = vector.broadcast %161 : vector<8x1xf32> to vector<8x32xf32>
    %172 = arith.subf %153, %171 : vector<8x32xf32>
    %cst_74 = arith.constant 9.99999996E-13 : f32
    %173 = vector.broadcast %cst_74 : f32 to vector<8x1xf32>
    %174 = arith.addf %170, %173 : vector<8x1xf32>
    %175 = math.rsqrt %174 : vector<8x1xf32>
    %176 = vector.broadcast %175 : vector<8x1xf32> to vector<8x32xf32>
    %177 = arith.mulf %172, %176 : vector<8x32xf32>
    %178 = vector.broadcast %155 : vector<1x32xf32> to vector<8x32xf32>
    %179 = arith.mulf %177, %178 : vector<8x32xf32>
    %180 = vector.broadcast %157 : vector<1x32xf32> to vector<8x32xf32>
    %181 = arith.addf %179, %180 : vector<8x32xf32>
    %c1 = arith.constant 1 : index
    %c0_75 = arith.constant 0 : index
    %c0_76 = arith.constant 0 : index
    %182 = vector.load %arg7[%c1, %c0_75, %c0_76] : memref<2x32x96xbf16, #tpu.memory_space<vmem>>, vector<1x32x96xbf16>
    %183 = vector.shape_cast %182 : vector<1x32x96xbf16> to vector<32x96xbf16>
    %184 = arith.truncf %181 : vector<8x32xf32> to vector<8x32xbf16>
    %cst_77 = arith.constant dense<0.000000e+00> : vector<8x96xf32>
    %185 = tpu.matmul %184, %183, %cst_77 {dimension_numbers = #tpu.dot_dimension_numbers<[1], [0], [0], [1], [0, 0, 1, 1], [], []>} : vector<8x32xbf16>, vector<32x96xbf16>, vector<8x96xf32> -> vector<8x96xf32>
    %c1_78 = arith.constant 1 : index
    %c0_79 = arith.constant 0 : index
    %c0_80 = arith.constant 0 : index
    %186 = vector.load %arg8[%c1_78, %c0_79, %c0_80] : memref<2x1x96xf32, #tpu.memory_space<vmem>>, vector<1x1x96xf32>
    %187 = vector.shape_cast %186 : vector<1x1x96xf32> to vector<1x96xf32>
    %188 = vector.broadcast %187 : vector<1x96xf32> to vector<8x96xf32>
    %189 = arith.addf %185, %188 : vector<8x96xf32>
    %190 = vector.extract_strided_slice %189 {offsets = [0, 0], sizes = [8, 32], strides = [1, 1]} : vector<8x96xf32> to vector<8x32xf32>
    %191 = vector.extract_strided_slice %190 {offsets = [0, 0], sizes = [8, 16], strides = [1, 1]} : vector<8x32xf32> to vector<8x16xf32>
    %192 = vector.extract_strided_slice %190 {offsets = [0, 16], sizes = [8, 16], strides = [1, 1]} : vector<8x32xf32> to vector<8x16xf32>
    %193 = vector.shape_cast %191 : vector<8x16xf32> to vector<1x8x16xf32>
    %194 = vector.shape_cast %192 : vector<8x16xf32> to vector<1x8x16xf32>
    %195 = tpu.concatenate %193, %194 in 0 : vector<1x8x16xf32>, vector<1x8x16xf32> -> vector<2x8x16xf32>
    %196 = vector.extract_strided_slice %189 {offsets = [0, 32], sizes = [8, 32], strides = [1, 1]} : vector<8x96xf32> to vector<8x32xf32>
    %197 = vector.extract_strided_slice %196 {offsets = [0, 0], sizes = [8, 16], strides = [1, 1]} : vector<8x32xf32> to vector<8x16xf32>
    %198 = vector.extract_strided_slice %196 {offsets = [0, 16], sizes = [8, 16], strides = [1, 1]} : vector<8x32xf32> to vector<8x16xf32>
    %199 = vector.shape_cast %197 : vector<8x16xf32> to vector<1x8x16xf32>
    %200 = vector.shape_cast %198 : vector<8x16xf32> to vector<1x8x16xf32>
    %201 = tpu.concatenate %199, %200 in 0 : vector<1x8x16xf32>, vector<1x8x16xf32> -> vector<2x8x16xf32>
    %202 = vector.extract_strided_slice %189 {offsets = [0, 64], sizes = [8, 32], strides = [1, 1]} : vector<8x96xf32> to vector<8x32xf32>
    %203 = vector.extract_strided_slice %202 {offsets = [0, 0], sizes = [8, 16], strides = [1, 1]} : vector<8x32xf32> to vector<8x16xf32>
    %204 = vector.extract_strided_slice %202 {offsets = [0, 16], sizes = [8, 16], strides = [1, 1]} : vector<8x32xf32> to vector<8x16xf32>
    %205 = vector.shape_cast %203 : vector<8x16xf32> to vector<1x8x16xf32>
    %206 = vector.shape_cast %204 : vector<8x16xf32> to vector<1x8x16xf32>
    %207 = tpu.concatenate %205, %206 in 0 : vector<1x8x16xf32>, vector<1x8x16xf32> -> vector<2x8x16xf32>
    %208 = arith.truncf %195 : vector<2x8x16xf32> to vector<2x8x16xbf16>
    %209 = arith.truncf %201 : vector<2x8x16xf32> to vector<2x8x16xbf16>
    "tpu.trace_start"() <{level = 10 : i32, message = "hqd,hkd->hqk"}> : () -> ()
    %cst_81 = arith.constant dense<0.000000e+00> : vector<2x8x8xf32>
    %210 = tpu.matmul %208, %209, %cst_81 {dimension_numbers = #tpu.dot_dimension_numbers<[2], [2], [1], [1], [0, 0, 0, 1, 1, 1], [0], [0]>} : vector<2x8x16xbf16>, vector<2x8x16xbf16>, vector<2x8x8xf32> -> vector<2x8x8xf32>
    "tpu.trace_stop"() : () -> ()
    %211 = arith.addf %210, %39 : vector<2x8x8xf32>
    %cst_82 = arith.constant dense<0xFF800000> : vector<2x8xf32>
    %212 = vector.multi_reduction <maximumf>, %211, %cst_82 [2] : vector<2x8x8xf32> to vector<2x8xf32>
    %213 = vector.shape_cast %212 : vector<2x8xf32> to vector<2x8x1xf32>
    %214 = vector.broadcast %213 : vector<2x8x1xf32> to vector<2x8x8xf32>
    %215 = arith.subf %211, %214 : vector<2x8x8xf32>
    %216 = math.exp %215 : vector<2x8x8xf32>
    %cst_83 = arith.constant dense<0.000000e+00> : vector<2x8xf32>
    %217 = vector.multi_reduction <add>, %216, %cst_83 [2] : vector<2x8x8xf32> to vector<2x8xf32>
    %218 = vector.shape_cast %217 : vector<2x8xf32> to vector<2x8x1xf32>
    %219 = vector.broadcast %218 : vector<2x8x1xf32> to vector<2x8x8xf32>
    %220 = arith.divf %216, %219 : vector<2x8x8xf32>
    %221 = arith.truncf %220 : vector<2x8x8xf32> to vector<2x8x8xbf16>
    %222 = arith.truncf %207 : vector<2x8x16xf32> to vector<2x8x16xbf16>
    "tpu.trace_start"() <{level = 10 : i32, message = "hqk,hkd->hqd"}> : () -> ()
    %cst_84 = arith.constant dense<0.000000e+00> : vector<2x8x16xf32>
    %223 = tpu.matmul %221, %222, %cst_84 {dimension_numbers = #tpu.dot_dimension_numbers<[2], [1], [1], [2], [0, 0, 0, 1, 1, 2], [0], [0]>} : vector<2x8x8xbf16>, vector<2x8x16xbf16>, vector<2x8x16xf32> -> vector<2x8x16xf32>
    "tpu.trace_stop"() : () -> ()
    %224 = vector.extract_strided_slice %223 {offsets = [0, 0, 0], sizes = [1, 8, 16], strides = [1, 1, 1]} : vector<2x8x16xf32> to vector<1x8x16xf32>
    %225 = vector.shape_cast %224 : vector<1x8x16xf32> to vector<8x16xf32>
    %226 = vector.extract_strided_slice %223 {offsets = [1, 0, 0], sizes = [1, 8, 16], strides = [1, 1, 1]} : vector<2x8x16xf32> to vector<1x8x16xf32>
    %227 = vector.shape_cast %226 : vector<1x8x16xf32> to vector<8x16xf32>
    %228 = tpu.concatenate %225, %227 in 1 : vector<8x16xf32>, vector<8x16xf32> -> vector<8x32xf32>
    %c1_85 = arith.constant 1 : index
    %c0_86 = arith.constant 0 : index
    %c0_87 = arith.constant 0 : index
    %229 = vector.load %arg9[%c1_85, %c0_86, %c0_87] : memref<2x32x32xbf16, #tpu.memory_space<vmem>>, vector<1x32x32xbf16>
    %230 = vector.shape_cast %229 : vector<1x32x32xbf16> to vector<32x32xbf16>
    %231 = arith.truncf %228 : vector<8x32xf32> to vector<8x32xbf16>
    %cst_88 = arith.constant dense<0.000000e+00> : vector<8x32xf32>
    %232 = tpu.matmul %231, %230, %cst_88 {dimension_numbers = #tpu.dot_dimension_numbers<[1], [0], [0], [1], [0, 0, 1, 1], [], []>} : vector<8x32xbf16>, vector<32x32xbf16>, vector<8x32xf32> -> vector<8x32xf32>
    %c1_89 = arith.constant 1 : index
    %c0_90 = arith.constant 0 : index
    %c0_91 = arith.constant 0 : index
    %233 = vector.load %arg10[%c1_89, %c0_90, %c0_91] : memref<2x1x32xf32, #tpu.memory_space<vmem>>, vector<1x1x32xf32>
    %234 = vector.shape_cast %233 : vector<1x1x32xf32> to vector<1x32xf32>
    %235 = vector.broadcast %234 : vector<1x32xf32> to vector<8x32xf32>
    %236 = arith.addf %232, %235 : vector<8x32xf32>
    %237 = arith.addf %236, %181 : vector<8x32xf32>
    %c1_92 = arith.constant 1 : index
    %c0_93 = arith.constant 0 : index
    %c0_94 = arith.constant 0 : index
    %238 = vector.load %arg11[%c1_92, %c0_93, %c0_94] : memref<2x1x32xf32, #tpu.memory_space<vmem>>, vector<1x1x32xf32>
    %239 = vector.shape_cast %238 : vector<1x1x32xf32> to vector<1x32xf32>
    %c1_95 = arith.constant 1 : index
    %c0_96 = arith.constant 0 : index
    %c0_97 = arith.constant 0 : index
    %240 = vector.load %arg12[%c1_95, %c0_96, %c0_97] : memref<2x1x32xf32, #tpu.memory_space<vmem>>, vector<1x1x32xf32>
    %241 = vector.shape_cast %240 : vector<1x1x32xf32> to vector<1x32xf32>
    %cst_98 = arith.constant dense<0.000000e+00> : vector<8xf32>
    %242 = vector.multi_reduction <add>, %237, %cst_98 [1] : vector<8x32xf32> to vector<8xf32>
    %243 = vector.shape_cast %242 : vector<8xf32> to vector<8x1xf32>
    %cst_99 = arith.constant 3.200000e+01 : f32
    %244 = vector.broadcast %cst_99 : f32 to vector<8x1xf32>
    %245 = arith.divf %243, %244 : vector<8x1xf32>
    %246 = vector.broadcast %245 : vector<8x1xf32> to vector<8x32xf32>
    %247 = arith.subf %237, %246 : vector<8x32xf32>
    %248 = vector.broadcast %245 : vector<8x1xf32> to vector<8x32xf32>
    %249 = arith.subf %237, %248 : vector<8x32xf32>
    %250 = arith.mulf %247, %249 : vector<8x32xf32>
    %cst_100 = arith.constant dense<0.000000e+00> : vector<8xf32>
    %251 = vector.multi_reduction <add>, %250, %cst_100 [1] : vector<8x32xf32> to vector<8xf32>
    %252 = vector.shape_cast %251 : vector<8xf32> to vector<8x1xf32>
    %cst_101 = arith.constant 3.200000e+01 : f32
    %253 = vector.broadcast %cst_101 : f32 to vector<8x1xf32>
    %254 = arith.divf %252, %253 : vector<8x1xf32>
    %255 = vector.broadcast %245 : vector<8x1xf32> to vector<8x32xf32>
    %256 = arith.subf %237, %255 : vector<8x32xf32>
    %cst_102 = arith.constant 9.99999996E-13 : f32
    %257 = vector.broadcast %cst_102 : f32 to vector<8x1xf32>
    %258 = arith.addf %254, %257 : vector<8x1xf32>
    %259 = math.rsqrt %258 : vector<8x1xf32>
    %260 = vector.broadcast %259 : vector<8x1xf32> to vector<8x32xf32>
    %261 = arith.mulf %256, %260 : vector<8x32xf32>
    %262 = vector.broadcast %239 : vector<1x32xf32> to vector<8x32xf32>
    %263 = arith.mulf %261, %262 : vector<8x32xf32>
    %264 = vector.broadcast %241 : vector<1x32xf32> to vector<8x32xf32>
    %265 = arith.addf %263, %264 : vector<8x32xf32>
    %c1_103 = arith.constant 1 : index
    %c0_104 = arith.constant 0 : index
    %c0_105 = arith.constant 0 : index
    %266 = vector.load %arg13[%c1_103, %c0_104, %c0_105] : memref<2x32x64xbf16, #tpu.memory_space<vmem>>, vector<1x32x64xbf16>
    %267 = vector.shape_cast %266 : vector<1x32x64xbf16> to vector<32x64xbf16>
    %268 = arith.truncf %265 : vector<8x32xf32> to vector<8x32xbf16>
    %cst_106 = arith.constant dense<0.000000e+00> : vector<8x64xf32>
    %269 = tpu.matmul %268, %267, %cst_106 {dimension_numbers = #tpu.dot_dimension_numbers<[1], [0], [0], [1], [0, 0, 1, 1], [], []>} : vector<8x32xbf16>, vector<32x64xbf16>, vector<8x64xf32> -> vector<8x64xf32>
    %c1_107 = arith.constant 1 : index
    %c0_108 = arith.constant 0 : index
    %c0_109 = arith.constant 0 : index
    %270 = vector.load %arg14[%c1_107, %c0_108, %c0_109] : memref<2x1x64xf32, #tpu.memory_space<vmem>>, vector<1x1x64xf32>
    %271 = vector.shape_cast %270 : vector<1x1x64xf32> to vector<1x64xf32>
    %272 = vector.broadcast %271 : vector<1x64xf32> to vector<8x64xf32>
    %273 = arith.addf %269, %272 : vector<8x64xf32>
    %cst_110 = arith.constant 5.000000e-01 : f32
    %274 = vector.broadcast %cst_110 : f32 to vector<8x64xf32>
    %275 = arith.mulf %274, %273 : vector<8x64xf32>
    %cst_111 = arith.constant 4.471500e-02 : f32
    %276 = vector.broadcast %cst_111 : f32 to vector<8x64xf32>
    %277 = arith.mulf %276, %273 : vector<8x64xf32>
    %278 = arith.mulf %277, %273 : vector<8x64xf32>
    %279 = arith.mulf %278, %273 : vector<8x64xf32>
    %280 = arith.addf %273, %279 : vector<8x64xf32>
    %cst_112 = arith.constant 0.797884583 : f32
    %281 = vector.broadcast %cst_112 : f32 to vector<8x64xf32>
    %282 = arith.mulf %281, %280 : vector<8x64xf32>
    %283 = math.tanh %282 : vector<8x64xf32>
    %cst_113 = arith.constant 1.000000e+00 : f32
    %284 = vector.broadcast %cst_113 : f32 to vector<8x64xf32>
    %285 = arith.addf %284, %283 : vector<8x64xf32>
    %286 = arith.mulf %275, %285 : vector<8x64xf32>
    %c1_114 = arith.constant 1 : index
    %c0_115 = arith.constant 0 : index
    %c0_116 = arith.constant 0 : index
    %287 = vector.load %arg15[%c1_114, %c0_115, %c0_116] : memref<2x64x32xbf16, #tpu.memory_space<vmem>>, vector<1x64x32xbf16>
    %288 = vector.shape_cast %287 : vector<1x64x32xbf16> to vector<64x32xbf16>
    %289 = arith.truncf %286 : vector<8x64xf32> to vector<8x64xbf16>
    %cst_117 = arith.constant dense<0.000000e+00> : vector<8x32xf32>
    %290 = tpu.matmul %289, %288, %cst_117 {dimension_numbers = #tpu.dot_dimension_numbers<[1], [0], [0], [1], [0, 0, 1, 1], [], []>} : vector<8x64xbf16>, vector<64x32xbf16>, vector<8x32xf32> -> vector<8x32xf32>
    %c1_118 = arith.constant 1 : index
    %c0_119 = arith.constant 0 : index
    %c0_120 = arith.constant 0 : index
    %291 = vector.load %arg16[%c1_118, %c0_119, %c0_120] : memref<2x1x32xf32, #tpu.memory_space<vmem>>, vector<1x1x32xf32>
    %292 = vector.shape_cast %291 : vector<1x1x32xf32> to vector<1x32xf32>
    %293 = vector.broadcast %292 : vector<1x32xf32> to vector<8x32xf32>
    %294 = arith.addf %290, %293 : vector<8x32xf32>
    %295 = arith.addf %294, %265 : vector<8x32xf32>
    %c1_121 = arith.constant 1 : index
    %c0_122 = arith.constant 0 : index
    %c0_123 = arith.constant 0 : index
    %296 = vector.load %arg17[%c1_121, %c0_122, %c0_123] : memref<2x1x32xf32, #tpu.memory_space<vmem>>, vector<1x1x32xf32>
    %297 = vector.shape_cast %296 : vector<1x1x32xf32> to vector<1x32xf32>
    %c1_124 = arith.constant 1 : index
    %c0_125 = arith.constant 0 : index
    %c0_126 = arith.constant 0 : index
    %298 = vector.load %arg18[%c1_124, %c0_125, %c0_126] : memref<2x1x32xf32, #tpu.memory_space<vmem>>, vector<1x1x32xf32>
    %299 = vector.shape_cast %298 : vector<1x1x32xf32> to vector<1x32xf32>
    %cst_127 = arith.constant dense<0.000000e+00> : vector<8xf32>
    %300 = vector.multi_reduction <add>, %295, %cst_127 [1] : vector<8x32xf32> to vector<8xf32>
    %301 = vector.shape_cast %300 : vector<8xf32> to vector<8x1xf32>
    %cst_128 = arith.constant 3.200000e+01 : f32
    %302 = vector.broadcast %cst_128 : f32 to vector<8x1xf32>
    %303 = arith.divf %301, %302 : vector<8x1xf32>
    %304 = vector.broadcast %303 : vector<8x1xf32> to vector<8x32xf32>
    %305 = arith.subf %295, %304 : vector<8x32xf32>
    %306 = vector.broadcast %303 : vector<8x1xf32> to vector<8x32xf32>
    %307 = arith.subf %295, %306 : vector<8x32xf32>
    %308 = arith.mulf %305, %307 : vector<8x32xf32>
    %cst_129 = arith.constant dense<0.000000e+00> : vector<8xf32>
    %309 = vector.multi_reduction <add>, %308, %cst_129 [1] : vector<8x32xf32> to vector<8xf32>
    %310 = vector.shape_cast %309 : vector<8xf32> to vector<8x1xf32>
    %cst_130 = arith.constant 3.200000e+01 : f32
    %311 = vector.broadcast %cst_130 : f32 to vector<8x1xf32>
    %312 = arith.divf %310, %311 : vector<8x1xf32>
    %313 = vector.broadcast %303 : vector<8x1xf32> to vector<8x32xf32>
    %314 = arith.subf %295, %313 : vector<8x32xf32>
    %cst_131 = arith.constant 9.99999996E-13 : f32
    %315 = vector.broadcast %cst_131 : f32 to vector<8x1xf32>
    %316 = arith.addf %312, %315 : vector<8x1xf32>
    %317 = math.rsqrt %316 : vector<8x1xf32>
    %318 = vector.broadcast %317 : vector<8x1xf32> to vector<8x32xf32>
    %319 = arith.mulf %314, %318 : vector<8x32xf32>
    %320 = vector.broadcast %297 : vector<1x32xf32> to vector<8x32xf32>
    %321 = arith.mulf %319, %320 : vector<8x32xf32>
    %322 = vector.broadcast %299 : vector<1x32xf32> to vector<8x32xf32>
    %323 = arith.addf %321, %322 : vector<8x32xf32>
    %324 = vector.extract_strided_slice %323 {offsets = [0, 0], sizes = [1, 32], strides = [1, 1]} : vector<8x32xf32> to vector<1x32xf32>
    %c0_132 = arith.constant 0 : index
    %c0_133 = arith.constant 0 : index
    %325 = vector.load %arg19[%c0_132, %c0_133] : memref<32x32xbf16, #tpu.memory_space<vmem>>, vector<32x32xbf16>
    %326 = arith.truncf %324 : vector<1x32xf32> to vector<1x32xbf16>
    %cst_134 = arith.constant dense<0.000000e+00> : vector<1x32xf32>
    %327 = tpu.matmul %326, %325, %cst_134 {dimension_numbers = #tpu.dot_dimension_numbers<[1], [0], [0], [1], [0, 0, 1, 1], [], []>} : vector<1x32xbf16>, vector<32x32xbf16>, vector<1x32xf32> -> vector<1x32xf32>
    %c0_135 = arith.constant 0 : index
    %c0_136 = arith.constant 0 : index
    %328 = vector.load %arg20[%c0_135, %c0_136] : memref<1x32xf32, #tpu.memory_space<vmem>>, vector<1x32xf32>
    %329 = arith.addf %327, %328 : vector<1x32xf32>
    %330 = math.tanh %329 : vector<1x32xf32>
    %c0_137 = arith.constant 0 : index
    %c0_138 = arith.constant 0 : index
    %331 = vector.load %arg21[%c0_137, %c0_138] : memref<32x128xbf16, #tpu.memory_space<vmem>>, vector<32x128xbf16>
    %332 = arith.truncf %330 : vector<1x32xf32> to vector<1x32xbf16>
    %cst_139 = arith.constant dense<0.000000e+00> : vector<1x128xf32>
    %333 = tpu.matmul %332, %331, %cst_139 {dimension_numbers = #tpu.dot_dimension_numbers<[1], [0], [0], [1], [0, 0, 1, 1], [], []>} : vector<1x32xbf16>, vector<32x128xbf16>, vector<1x128xf32> -> vector<1x128xf32>
    %c0_140 = arith.constant 0 : index
    %c0_141 = arith.constant 0 : index
    %334 = vector.load %arg22[%c0_140, %c0_141] : memref<1x128xf32, #tpu.memory_space<vmem>>, vector<1x128xf32>
    %335 = arith.addf %333, %334 : vector<1x128xf32>
    %336 = tpu.iota {dimensions = array<i32: 1>} : vector<1x128xi32>
    %cst_142 = arith.constant 0.000000e+00 : f32
    %337 = vector.broadcast %cst_142 : f32 to vector<1x128xf32>
    %c0_i32 = arith.constant 0 : i32
    %338 = vector.broadcast %c0_i32 : i32 to vector<1x128xi32>
    %339 = arith.cmpi sge, %336, %338 : vector<1x128xi32>
    %c3_i32 = arith.constant 3 : i32
    %340 = vector.broadcast %c3_i32 : i32 to vector<1x128xi32>
    %341 = arith.cmpi slt, %336, %340 : vector<1x128xi32>
    %342 = arith.andi %339, %341 : vector<1x128xi1>
    %cst_143 = arith.constant -1.000000e+30 : f32
    %343 = vector.broadcast %cst_143 : f32 to vector<1x128xf32>
    %344 = arith.select %342, %335, %343 : vector<1x128xi1>, vector<1x128xf32>
    %cst_144 = arith.constant dense<0xFF800000> : vector<1xf32>
    %345 = vector.multi_reduction <maximumf>, %344, %cst_144 [1] : vector<1x128xf32> to vector<1xf32>
    %346 = vector.shape_cast %345 : vector<1xf32> to vector<1x1xf32>
    %347 = vector.broadcast %346 : vector<1x1xf32> to vector<1x128xf32>
    %348 = arith.subf %344, %347 : vector<1x128xf32>
    %349 = math.exp %348 : vector<1x128xf32>
    %cst_145 = arith.constant 0.000000e+00 : f32
    %350 = vector.broadcast %cst_145 : f32 to vector<1x128xf32>
    %351 = arith.select %342, %349, %350 : vector<1x128xi1>, vector<1x128xf32>
    %cst_146 = arith.constant dense<0.000000e+00> : vector<1xf32>
    %352 = vector.multi_reduction <add>, %351, %cst_146 [1] : vector<1x128xf32> to vector<1xf32>
    %353 = vector.shape_cast %352 : vector<1xf32> to vector<1x1xf32>
    %354 = vector.broadcast %353 : vector<1x1xf32> to vector<1x128xf32>
    %355 = arith.divf %351, %354 : vector<1x128xf32>
    %356 = arith.select %342, %355, %337 : vector<1x128xi1>, vector<1x128xf32>
    %c3_i32_147 = arith.constant 3 : i32
    %357 = vector.broadcast %c3_i32_147 : i32 to vector<1x128xi32>
    %358 = arith.cmpi sge, %336, %357 : vector<1x128xi32>
    %c8_i32 = arith.constant 8 : i32
    %359 = vector.broadcast %c8_i32 : i32 to vector<1x128xi32>
    %360 = arith.cmpi slt, %336, %359 : vector<1x128xi32>
    %361 = arith.andi %358, %360 : vector<1x128xi1>
    %cst_148 = arith.constant -1.000000e+30 : f32
    %362 = vector.broadcast %cst_148 : f32 to vector<1x128xf32>
    %363 = arith.select %361, %335, %362 : vector<1x128xi1>, vector<1x128xf32>
    %cst_149 = arith.constant dense<0xFF800000> : vector<1xf32>
    %364 = vector.multi_reduction <maximumf>, %363, %cst_149 [1] : vector<1x128xf32> to vector<1xf32>
    %365 = vector.shape_cast %364 : vector<1xf32> to vector<1x1xf32>
    %366 = vector.broadcast %365 : vector<1x1xf32> to vector<1x128xf32>
    %367 = arith.subf %363, %366 : vector<1x128xf32>
    %368 = math.exp %367 : vector<1x128xf32>
    %cst_150 = arith.constant 0.000000e+00 : f32
    %369 = vector.broadcast %cst_150 : f32 to vector<1x128xf32>
    %370 = arith.select %361, %368, %369 : vector<1x128xi1>, vector<1x128xf32>
    %cst_151 = arith.constant dense<0.000000e+00> : vector<1xf32>
    %371 = vector.multi_reduction <add>, %370, %cst_151 [1] : vector<1x128xf32> to vector<1xf32>
    %372 = vector.shape_cast %371 : vector<1xf32> to vector<1x1xf32>
    %373 = vector.broadcast %372 : vector<1x1xf32> to vector<1x128xf32>
    %374 = arith.divf %370, %373 : vector<1x128xf32>
    %375 = arith.select %361, %374, %356 : vector<1x128xi1>, vector<1x128xf32>
    %376 = vector.shape_cast %375 : vector<1x128xf32> to vector<1x1x128xf32>
    %c0_152 = arith.constant 0 : index
    %c0_153 = arith.constant 0 : index
    %c0_154 = arith.constant 0 : index
    %377 = vector.load %arg23[%c0_152, %c0_153, %c0_154] : memref<1x1x128xf32, #tpu.memory_space<vmem>>, vector<1x1x128xf32>
    tpu.vector_store %arg23[%c0_152, %c0_153, %c0_154], %376 {strides = array<i32>} : memref<1x1x128xf32, #tpu.memory_space<vmem>>, vector<1x1x128xf32>,
    return
  }
  func.func @transform_0(%arg0: i32) -> (i32, i32) {
    %c0_i32 = arith.constant 0 : i32
    %c0_i32_0 = arith.constant 0 : i32
    return %arg0, %c0_i32 : i32, i32
  }
  func.func @transform_1(%arg0: i32) -> (i32, i32) {
    %c0_i32 = arith.constant 0 : i32
    %c0_i32_0 = arith.constant 0 : i32
    %c0_i32_1 = arith.constant 0 : i32
    return %c0_i32, %c0_i32_0 : i32, i32
  }
  func.func @transform_2(%arg0: i32) -> (i32, i32, i32) {
    %c0_i32 = arith.constant 0 : i32
    %c0_i32_0 = arith.constant 0 : i32
    %c0_i32_1 = arith.constant 0 : i32
    return %arg0, %c0_i32, %c0_i32_0 : i32, i32, i32
  }
  func.func @transform_3(%arg0: i32) -> (i32, i32) {
    %c0_i32 = arith.constant 0 : i32
    %c0_i32_0 = arith.constant 0 : i32
    %c0_i32_1 = arith.constant 0 : i32
    return %c0_i32, %c0_i32_0 : i32, i32
  }
  func.func @transform_4(%arg0: i32) -> (i32, i32) {
    %c0_i32 = arith.constant 0 : i32
    %c0_i32_0 = arith.constant 0 : i32
    %c0_i32_1 = arith.constant 0 : i32
    return %c0_i32, %c0_i32_0 : i32, i32
  }
  func.func @transform_5(%arg0: i32) -> (i32, i32) {
    %c0_i32 = arith.constant 0 : i32
    %c0_i32_0 = arith.constant 0 : i32
    %c0_i32_1 = arith.constant 0 : i32
    return %c0_i32, %c0_i32_0 : i32, i32
  }
  func.func @transform_6(%arg0: i32) -> (i32, i32, i32) {
    %c0_i32 = arith.constant 0 : i32
    %c0_i32_0 = arith.constant 0 : i32
    %c0_i32_1 = arith.constant 0 : i32
    %c0_i32_2 = arith.constant 0 : i32
    return %c0_i32, %c0_i32_0, %c0_i32_1 : i32, i32, i32
  }
  func.func @transform_7(%arg0: i32) -> (i32, i32, i32) {
    %c0_i32 = arith.constant 0 : i32
    %c0_i32_0 = arith.constant 0 : i32
    %c0_i32_1 = arith.constant 0 : i32
    %c0_i32_2 = arith.constant 0 : i32
    return %c0_i32, %c0_i32_0, %c0_i32_1 : i32, i32, i32
  }
  func.func @transform_8(%arg0: i32) -> (i32, i32, i32) {
    %c0_i32 = arith.constant 0 : i32
    %c0_i32_0 = arith.constant 0 : i32
    %c0_i32_1 = arith.constant 0 : i32
    %c0_i32_2 = arith.constant 0 : i32
    return %c0_i32, %c0_i32_0, %c0_i32_1 : i32, i32, i32
  }
  func.func @transform_9(%arg0: i32) -> (i32, i32, i32) {
    %c0_i32 = arith.constant 0 : i32
    %c0_i32_0 = arith.constant 0 : i32
    %c0_i32_1 = arith.constant 0 : i32
    %c0_i32_2 = arith.constant 0 : i32
    return %c0_i32, %c0_i32_0, %c0_i32_1 : i32, i32, i32
  }
  func.func @transform_10(%arg0: i32) -> (i32, i32, i32) {
    %c0_i32 = arith.constant 0 : i32
    %c0_i32_0 = arith.constant 0 : i32
    %c0_i32_1 = arith.constant 0 : i32
    %c0_i32_2 = arith.constant 0 : i32
    return %c0_i32, %c0_i32_0, %c0_i32_1 : i32, i32, i32
  }
  func.func @transform_11(%arg0: i32) -> (i32, i32, i32) {
    %c0_i32 = arith.constant 0 : i32
    %c0_i32_0 = arith.constant 0 : i32
    %c0_i32_1 = arith.constant 0 : i32
    %c0_i32_2 = arith.constant 0 : i32
    return %c0_i32, %c0_i32_0, %c0_i32_1 : i32, i32, i32
  }
  func.func @transform_12(%arg0: i32) -> (i32, i32, i32) {
    %c0_i32 = arith.constant 0 : i32
    %c0_i32_0 = arith.constant 0 : i32
    %c0_i32_1 = arith.constant 0 : i32
    %c0_i32_2 = arith.constant 0 : i32
    return %c0_i32, %c0_i32_0, %c0_i32_1 : i32, i32, i32
  }
  func.func @transform_13(%arg0: i32) -> (i32, i32, i32) {
    %c0_i32 = arith.constant 0 : i32
    %c0_i32_0 = arith.constant 0 : i32
    %c0_i32_1 = arith.constant 0 : i32
    %c0_i32_2 = arith.constant 0 : i32
    return %c0_i32, %c0_i32_0, %c0_i32_1 : i32, i32, i32
  }
  func.func @transform_14(%arg0: i32) -> (i32, i32, i32) {
    %c0_i32 = arith.constant 0 : i32
    %c0_i32_0 = arith.constant 0 : i32
    %c0_i32_1 = arith.constant 0 : i32
    %c0_i32_2 = arith.constant 0 : i32
    return %c0_i32, %c0_i32_0, %c0_i32_1 : i32, i32, i32
  }
  func.func @transform_15(%arg0: i32) -> (i32, i32, i32) {
    %c0_i32 = arith.constant 0 : i32
    %c0_i32_0 = arith.constant 0 : i32
    %c0_i32_1 = arith.constant 0 : i32
    %c0_i32_2 = arith.constant 0 : i32
    return %c0_i32, %c0_i32_0, %c0_i32_1 : i32, i32, i32
  }
  func.func @transform_16(%arg0: i32) -> (i32, i32, i32) {
    %c0_i32 = arith.constant 0 : i32
    %c0_i32_0 = arith.constant 0 : i32
    %c0_i32_1 = arith.constant 0 : i32
    %c0_i32_2 = arith.constant 0 : i32
    return %c0_i32, %c0_i32_0, %c0_i32_1 : i32, i32, i32
  }
  func.func @transform_17(%arg0: i32) -> (i32, i32, i32) {
    %c0_i32 = arith.constant 0 : i32
    %c0_i32_0 = arith.constant 0 : i32
    %c0_i32_1 = arith.constant 0 : i32
    %c0_i32_2 = arith.constant 0 : i32
    return %c0_i32, %c0_i32_0, %c0_i32_1 : i32, i32, i32
  }
  func.func @transform_18(%arg0: i32) -> (i32, i32) {
    %c0_i32 = arith.constant 0 : i32
    %c0_i32_0 = arith.constant 0 : i32
    %c0_i32_1 = arith.constant 0 : i32
    return %c0_i32, %c0_i32_0 : i32, i32
  }
  func.func @transform_19(%arg0: i32) -> (i32, i32) {
    %c0_i32 = arith.constant 0 : i32
    %c0_i32_0 = arith.constant 0 : i32
    %c0_i32_1 = arith.constant 0 : i32
    return %c0_i32, %c0_i32_0 : i32, i32
  }
  func.func @transform_20(%arg0: i32) -> (i32, i32) {
    %c0_i32 = arith.constant 0 : i32
    %c0_i32_0 = arith.constant 0 : i32
    %c0_i32_1 = arith.constant 0 : i32
    return %c0_i32, %c0_i32_0 : i32, i32
  }
  func.func @transform_21(%arg0: i32) -> (i32, i32) {
    %c0_i32 = arith.constant 0 : i32
    %c0_i32_0 = arith.constant 0 : i32
    %c0_i32_1 = arith.constant 0 : i32
    return %c0_i32, %c0_i32_0 : i32, i32
  }
  func.func @transform_22(%arg0: i32) -> (i32, i32, i32) {
    %c0_i32 = arith.constant 0 : i32
    %c0_i32_0 = arith.constant 0 : i32
    %c0_i32_1 = arith.constant 0 : i32
    return %arg0, %c0_i32, %c0_i32_0 : i32, i32, i32
  }
}

</mosaic_0001>

<llo_original>
// kernel: multitask_bert_forward.1
$region0: #{multitask_bert_forward.1}
  #allocation0 [shape = 'u32[]', space=smem, size = 0x4, offset = 0x4, fixed_abs, tag = 'smem constant byte address 0x4 - core index']
  #allocation1 [shape = 'u32[144,128]{1,0:T(1,128)}', space=vmem, size = 0x12000, scoped, tag = 'internal scratch']
  %s0 = inlined_call_operand.vmem [shape: s32[16,1], index: 0, kind: input, shape index: {}]
  %s1 = inlined_call_operand.vmem [shape: f32[8,32], index: 1, kind: input, shape index: {}]
  %s2 = inlined_call_operand.vmem [shape: f32[2,1,8], index: 2, kind: input, shape index: {}]
  %s3 = inlined_call_operand.vmem [shape: bf16[128,32], index: 3, kind: input, shape index: {}]
  %s4 = inlined_call_operand.vmem [shape: f32[1,32], index: 4, kind: input, shape index: {}]
  %s5 = inlined_call_operand.vmem [shape: f32[1,32], index: 5, kind: input, shape index: {}]
  %s6 = inlined_call_operand.vmem [shape: bf16[2,32,96], index: 6, kind: input, shape index: {}]
  %s7 = inlined_call_operand.vmem [shape: f32[2,1,96], index: 7, kind: input, shape index: {}]
  %s8 = inlined_call_operand.vmem [shape: bf16[2,32,32], index: 8, kind: input, shape index: {}]
  %s9 = inlined_call_operand.vmem [shape: f32[2,1,32], index: 9, kind: input, shape index: {}]
  %s10 = inlined_call_operand.vmem [shape: f32[2,1,32], index: 10, kind: input, shape index: {}]
  %s11 = inlined_call_operand.vmem [shape: f32[2,1,32], index: 11, kind: input, shape index: {}]
  %s12 = inlined_call_operand.vmem [shape: bf16[2,32,64], index: 12, kind: input, shape index: {}]
  %s13 = inlined_call_operand.vmem [shape: f32[2,1,64], index: 13, kind: input, shape index: {}]
  %s14 = inlined_call_operand.vmem [shape: bf16[2,64,32], index: 14, kind: input, shape index: {}]
  %s15 = inlined_call_operand.vmem [shape: f32[2,1,32], index: 15, kind: input, shape index: {}]
  %s16 = inlined_call_operand.vmem [shape: f32[2,1,32], index: 16, kind: input, shape index: {}]
  %s17 = inlined_call_operand.vmem [shape: f32[2,1,32], index: 17, kind: input, shape index: {}]
  %s18 = inlined_call_operand.vmem [shape: bf16[32,32], index: 18, kind: input, shape index: {}]
  %s19 = inlined_call_operand.vmem [shape: f32[1,32], index: 19, kind: input, shape index: {}]
  %s20 = inlined_call_operand.vmem [shape: bf16[32,128], index: 20, kind: input, shape index: {}]
  %s21 = inlined_call_operand.vmem [shape: f32[1,128], index: 21, kind: input, shape index: {}]
  %s22 = inlined_call_operand.vmem [shape: f32[2,1,128], index: 22, kind: output, shape index: {}]
  %s23 = sld [smem:[#allocation0]]
  $region121: #{multitask_bert_forward.1} parent=0
    _
  %s25 = ssub.s32 1, %s23
  %s26 = scalar_select 0, %s25, %s23
  loop: start=0, step=1, limit=4
  $region2: #{multitask_bert_forward.1} parent=0 // loop_pre_header
    _
  $region3: #{multitask_bert_forward.1} parent=0 // loop_header
    %s28 = sphi 0, %s32
    %p29 = scmp.ge.s32.totalorder %s28, 4
    %s38 = sphi 0, %s40
    %s41 = sphi 0, %s38
    %s42 = sphi 0, %s41
    %s58 = sphi 0, %s42
    %s62 = sphi 0, %s62
    %s64 = sphi 0, %s62
    %s65 = sphi 0, %s64
    %s79 = sphi 0, %s65
    %s85 = sphi 0, %s87
    %s88 = sphi 0, %s85
    %s89 = sphi 0, %s88
    %s105 = sphi 0, %s89
    %s109 = sphi 0, %s109
    %s111 = sphi 0, %s109
    %s112 = sphi 0, %s111
    %s126 = sphi 0, %s112
    %s130 = sphi 0, %s130
    %s132 = sphi 0, %s130
    %s133 = sphi 0, %s132
    %s147 = sphi 0, %s133
    %s151 = sphi 0, %s151
    %s153 = sphi 0, %s151
    %s154 = sphi 0, %s153
    %s168 = sphi 0, %s154
    %s172 = sphi 0, %s172
    %s174 = sphi 0, %s172
    %s175 = sphi 0, %s174
    %s189 = sphi 0, %s175
    %s193 = sphi 0, %s193
    %s195 = sphi 0, %s193
    %s196 = sphi 0, %s195
    %s210 = sphi 0, %s196
    %s214 = sphi 0, %s214
    %s216 = sphi 0, %s214
    %s217 = sphi 0, %s216
    %s231 = sphi 0, %s217
    %s235 = sphi 0, %s235
    %s237 = sphi 0, %s235
    %s238 = sphi 0, %s237
    %s252 = sphi 0, %s238
    %s256 = sphi 0, %s256
    %s258 = sphi 0, %s256
    %s259 = sphi 0, %s258
    %s273 = sphi 0, %s259
    %s277 = sphi 0, %s277
    %s279 = sphi 0, %s277
    %s280 = sphi 0, %s279
    %s294 = sphi 0, %s280
    %s298 = sphi 0, %s298
    %s300 = sphi 0, %s298
    %s301 = sphi 0, %s300
    %s315 = sphi 0, %s301
    %s319 = sphi 0, %s319
    %s321 = sphi 0, %s319
    %s322 = sphi 0, %s321
    %s336 = sphi 0, %s322
    %s340 = sphi 0, %s340
    %s342 = sphi 0, %s340
    %s343 = sphi 0, %s342
    %s357 = sphi 0, %s343
    %s361 = sphi 0, %s361
    %s363 = sphi 0, %s361
    %s364 = sphi 0, %s363
    %s378 = sphi 0, %s364
    %s382 = sphi 0, %s382
    %s384 = sphi 0, %s382
    %s385 = sphi 0, %s384
    %s399 = sphi 0, %s385
    %s403 = sphi 0, %s403
    %s405 = sphi 0, %s403
    %s406 = sphi 0, %s405
    %s420 = sphi 0, %s406
    %s424 = sphi 0, %s424
    %s426 = sphi 0, %s424
    %s427 = sphi 0, %s426
    %s441 = sphi 0, %s427
    %s445 = sphi 0, %s445
    %s447 = sphi 0, %s445
    %s448 = sphi 0, %s447
    %s462 = sphi 0, %s448
    %s466 = sphi 0, %s466
    %s468 = sphi 0, %s466
    %s469 = sphi 0, %s468
    %s483 = sphi 0, %s469
    %s487 = sphi 0, %s487
    %s489 = sphi 0, %s487
    %s490 = sphi 0, %s489
    %s504 = sphi 0, %s490
    %s510 = sphi 0, %s512
    %s513 = sphi 0, %s510
    %s514 = sphi 0, %s513
    %s530 = sphi 0, %s514
  $region4: #{multitask_bert_forward.1} parent=0 // loop_header_branch
    %31 = sbr.rel (%p29) target = $region8
  $region5: #{multitask_bert_forward.1} parent=0 // loop_body
    %s33 = ssub.s32 %s28, 1
    %s34 = ssub.s32 %s28, 2
    %s35 = sadd.s32 %s28, 1
    %s36 = ssub.s32 %s28, %s35
    %p37 = scmp.eq.s32.totalorder %s36, 0
    %s39 = sadd.s32 %s38, 1
    %s40 = scalar_select %p37, %s38, %s39
    %p43 = pneg %p37
    %p44 = scmp.eq.s32.totalorder %s28, 1
    %p45 = por %p43, %p44
    %p46 = scmp.ne.s32.totalorder %s38, %s41
    %p47 = scmp.eq.s32.totalorder %s28, 0
    %p48 = por %p46, %p47
    %p49 = scmp.ne.s32.totalorder %s38, %s41
    %p50 = scmp.eq.s32.totalorder %s33, 1
    %p51 = por %p49, %p50
    %p52 = scmp.ne.s32.totalorder %s41, %s42
    %p53 = scmp.eq.s32.totalorder %s33, 0
    %p54 = por %p52, %p53
    %p55 = scmp.ne.s32.totalorder %s41, %s42
    %p56 = scmp.eq.s32.totalorder %s34, 1
    %p57 = por %p55, %p56
    %p59 = scmp.ne.s32.totalorder %s42, %s58
    %p60 = scmp.eq.s32.totalorder %s34, 0
    %p61 = por %p59, %p60
    %s63 = sadd.s32 %s62, 1
    %p66 = scmp.eq.s32.totalorder %s28, 1
    %p67 = scmp.ne.s32.totalorder %s62, %s64
    %p68 = scmp.eq.s32.totalorder %s28, 0
    %p69 = por %p67, %p68
    %p70 = scmp.ne.s32.totalorder %s62, %s64
    %p71 = scmp.eq.s32.totalorder %s33, 1
    %p72 = por %p70, %p71
    %p73 = scmp.ne.s32.totalorder %s64, %s65
    %p74 = scmp.eq.s32.totalorder %s33, 0
    %p75 = por %p73, %p74
    %p76 = scmp.ne.s32.totalorder %s64, %s65
    %p77 = scmp.eq.s32.totalorder %s34, 1
    %p78 = por %p76, %p77
    %p80 = scmp.ne.s32.totalorder %s65, %s79
    %p81 = scmp.eq.s32.totalorder %s34, 0
    %p82 = por %p80, %p81
    %s83 = ssub.s32 %s28, %s35
    %p84 = scmp.eq.s32.totalorder %s83, 0
    %s86 = sadd.s32 %s85, 1
    %s87 = scalar_select %p84, %s85, %s86
    %p90 = pneg %p84
    %p91 = scmp.eq.s32.totalorder %s28, 1
    %p92 = por %p90, %p91
    %p93 = scmp.ne.s32.totalorder %s85, %s88
    %p94 = scmp.eq.s32.totalorder %s28, 0
    %p95 = por %p93, %p94
    %p96 = scmp.ne.s32.totalorder %s85, %s88
    %p97 = scmp.eq.s32.totalorder %s33, 1
    %p98 = por %p96, %p97
    %p99 = scmp.ne.s32.totalorder %s88, %s89
    %p100 = scmp.eq.s32.totalorder %s33, 0
    %p101 = por %p99, %p100
    %p102 = scmp.ne.s32.totalorder %s88, %s89
    %p103 = scmp.eq.s32.totalorder %s34, 1
    %p104 = por %p102, %p103
    %p106 = scmp.ne.s32.totalorder %s89, %s105
    %p107 = scmp.eq.s32.totalorder %s34, 0
    %p108 = por %p106, %p107
    %s110 = sadd.s32 %s109, 1
    %p113 = scmp.eq.s32.totalorder %s28, 1
    %p114 = scmp.ne.s32.totalorder %s109, %s111
    %p115 = scmp.eq.s32.totalorder %s28, 0
    %p116 = por %p114, %p115
    %p117 = scmp.ne.s32.totalorder %s109, %s111
    %p118 = scmp.eq.s32.totalorder %s33, 1
    %p119 = por %p117, %p118
    %p120 = scmp.ne.s32.totalorder %s111, %s112
    %p121 = scmp.eq.s32.totalorder %s33, 0
    %p122 = por %p120, %p121
    %p123 = scmp.ne.s32.totalorder %s111, %s112
    %p124 = scmp.eq.s32.totalorder %s34, 1
    %p125 = por %p123, %p124
    %p127 = scmp.ne.s32.totalorder %s112, %s126
    %p128 = scmp.eq.s32.totalorder %s34, 0
    %p129 = por %p127, %p128
    %s131 = sadd.s32 %s130, 1
    %p134 = scmp.eq.s32.totalorder %s28, 1
    %p135 = scmp.ne.s32.totalorder %s130, %s132
    %p136 = scmp.eq.s32.totalorder %s28, 0
    %p137 = por %p135, %p136
    %p138 = scmp.ne.s32.totalorder %s130, %s132
    %p139 = scmp.eq.s32.totalorder %s33, 1
    %p140 = por %p138, %p139
    %p141 = scmp.ne.s32.totalorder %s132, %s133
    %p142 = scmp.eq.s32.totalorder %s33, 0
    %p143 = por %p141, %p142
    %p144 = scmp.ne.s32.totalorder %s132, %s133
    %p145 = scmp.eq.s32.totalorder %s34, 1
    %p146 = por %p144, %p145
    %p148 = scmp.ne.s32.totalorder %s133, %s147
    %p149 = scmp.eq.s32.totalorder %s34, 0
    %p150 = por %p148, %p149
    %s152 = sadd.s32 %s151, 1
    %p155 = scmp.eq.s32.totalorder %s28, 1
    %p156 = scmp.ne.s32.totalorder %s151, %s153
    %p157 = scmp.eq.s32.totalorder %s28, 0
    %p158 = por %p156, %p157
    %p159 = scmp.ne.s32.totalorder %s151, %s153
    %p160 = scmp.eq.s32.totalorder %s33, 1
    %p161 = por %p159, %p160
    %p162 = scmp.ne.s32.totalorder %s153, %s154
    %p163 = scmp.eq.s32.totalorder %s33, 0
    %p164 = por %p162, %p163
    %p165 = scmp.ne.s32.totalorder %s153, %s154
    %p166 = scmp.eq.s32.totalorder %s34, 1
    %p167 = por %p165, %p166
    %p169 = scmp.ne.s32.totalorder %s154, %s168
    %p170 = scmp.eq.s32.totalorder %s34, 0
    %p171 = por %p169, %p170
    %s173 = sadd.s32 %s172, 1
    %p176 = scmp.eq.s32.totalorder %s28, 1
    %p177 = scmp.ne.s32.totalorder %s172, %s174
    %p178 = scmp.eq.s32.totalorder %s28, 0
    %p179 = por %p177, %p178
    %p180 = scmp.ne.s32.totalorder %s172, %s174
    %p181 = scmp.eq.s32.totalorder %s33, 1
    %p182 = por %p180, %p181
    %p183 = scmp.ne.s32.totalorder %s174, %s175
    %p184 = scmp.eq.s32.totalorder %s33, 0
    %p185 = por %p183, %p184
    %p186 = scmp.ne.s32.totalorder %s174, %s175
    %p187 = scmp.eq.s32.totalorder %s34, 1
    %p188 = por %p186, %p187
    %p190 = scmp.ne.s32.totalorder %s175, %s189
    %p191 = scmp.eq.s32.totalorder %s34, 0
    %p192 = por %p190, %p191
    %s194 = sadd.s32 %s193, 1
    %p197 = scmp.eq.s32.totalorder %s28, 1
    %p198 = scmp.ne.s32.totalorder %s193, %s195
    %p199 = scmp.eq.s32.totalorder %s28, 0
    %p200 = por %p198, %p199
    %p201 = scmp.ne.s32.totalorder %s193, %s195
    %p202 = scmp.eq.s32.totalorder %s33, 1
    %p203 = por %p201, %p202
    %p204 = scmp.ne.s32.totalorder %s195, %s196
    %p205 = scmp.eq.s32.totalorder %s33, 0
    %p206 = por %p204, %p205
    %p207 = scmp.ne.s32.totalorder %s195, %s196
    %p208 = scmp.eq.s32.totalorder %s34, 1
    %p209 = por %p207, %p208
    %p211 = scmp.ne.s32.totalorder %s196, %s210
    %p212 = scmp.eq.s32.totalorder %s34, 0
    %p213 = por %p211, %p212
    %s215 = sadd.s32 %s214, 1
    %p218 = scmp.eq.s32.totalorder %s28, 1
    %p219 = scmp.ne.s32.totalorder %s214, %s216
    %p220 = scmp.eq.s32.totalorder %s28, 0
    %p221 = por %p219, %p220
    %p222 = scmp.ne.s32.totalorder %s214, %s216
    %p223 = scmp.eq.s32.totalorder %s33, 1
    %p224 = por %p222, %p223
    %p225 = scmp.ne.s32.totalorder %s216, %s217
    %p226 = scmp.eq.s32.totalorder %s33, 0
    %p227 = por %p225, %p226
    %p228 = scmp.ne.s32.totalorder %s216, %s217
    %p229 = scmp.eq.s32.totalorder %s34, 1
    %p230 = por %p228, %p229
    %p232 = scmp.ne.s32.totalorder %s217, %s231
    %p233 = scmp.eq.s32.totalorder %s34, 0
    %p234 = por %p232, %p233
    %s236 = sadd.s32 %s235, 1
    %p239 = scmp.eq.s32.totalorder %s28, 1
    %p240 = scmp.ne.s32.totalorder %s235, %s237
    %p241 = scmp.eq.s32.totalorder %s28, 0
    %p242 = por %p240, %p241
    %p243 = scmp.ne.s32.totalorder %s235, %s237
    %p244 = scmp.eq.s32.totalorder %s33, 1
    %p245 = por %p243, %p244
    %p246 = scmp.ne.s32.totalorder %s237, %s238
    %p247 = scmp.eq.s32.totalorder %s33, 0
    %p248 = por %p246, %p247
    %p249 = scmp.ne.s32.totalorder %s237, %s238
    %p250 = scmp.eq.s32.totalorder %s34, 1
    %p251 = por %p249, %p250
    %p253 = scmp.ne.s32.totalorder %s238, %s252
    %p254 = scmp.eq.s32.totalorder %s34, 0
    %p255 = por %p253, %p254
    %s257 = sadd.s32 %s256, 1
    %p260 = scmp.eq.s32.totalorder %s28, 1
    %p261 = scmp.ne.s32.totalorder %s256, %s258
    %p262 = scmp.eq.s32.totalorder %s28, 0
    %p263 = por %p261, %p262
    %p264 = scmp.ne.s32.totalorder %s256, %s258
    %p265 = scmp.eq.s32.totalorder %s33, 1
    %p266 = por %p264, %p265
    %p267 = scmp.ne.s32.totalorder %s258, %s259
    %p268 = scmp.eq.s32.totalorder %s33, 0
    %p269 = por %p267, %p268
    %p270 = scmp.ne.s32.totalorder %s258, %s259
    %p271 = scmp.eq.s32.totalorder %s34, 1
    %p272 = por %p270, %p271
    %p274 = scmp.ne.s32.totalorder %s259, %s273
    %p275 = scmp.eq.s32.totalorder %s34, 0
    %p276 = por %p274, %p275
    %s278 = sadd.s32 %s277, 1
    %p281 = scmp.eq.s32.totalorder %s28, 1
    %p282 = scmp.ne.s32.totalorder %s277, %s279
    %p283 = scmp.eq.s32.totalorder %s28, 0
    %p284 = por %p282, %p283
    %p285 = scmp.ne.s32.totalorder %s277, %s279
    %p286 = scmp.eq.s32.totalorder %s33, 1
    %p287 = por %p285, %p286
    %p288 = scmp.ne.s32.totalorder %s279, %s280
    %p289 = scmp.eq.s32.totalorder %s33, 0
    %p290 = por %p288, %p289
    %p291 = scmp.ne.s32.totalorder %s279, %s280
    %p292 = scmp.eq.s32.totalorder %s34, 1
    %p293 = por %p291, %p292
    %p295 = scmp.ne.s32.totalorder %s280, %s294
    %p296 = scmp.eq.s32.totalorder %s34, 0
    %p297 = por %p295, %p296
    %s299 = sadd.s32 %s298, 1
    %p302 = scmp.eq.s32.totalorder %s28, 1
    %p303 = scmp.ne.s32.totalorder %s298, %s300
    %p304 = scmp.eq.s32.totalorder %s28, 0
    %p305 = por %p303, %p304
    %p306 = scmp.ne.s32.totalorder %s298, %s300
    %p307 = scmp.eq.s32.totalorder %s33, 1
    %p308 = por %p306, %p307
    %p309 = scmp.ne.s32.totalorder %s300, %s301
    %p310 = scmp.eq.s32.totalorder %s33, 0
    %p311 = por %p309, %p310
    %p312 = scmp.ne.s32.totalorder %s300, %s301
    %p313 = scmp.eq.s32.totalorder %s34, 1
    %p314 = por %p312, %p313
    %p316 = scmp.ne.s32.totalorder %s301, %s315
    %p317 = scmp.eq.s32.totalorder %s34, 0
    %p318 = por %p316, %p317
    %s320 = sadd.s32 %s319, 1
    %p323 = scmp.eq.s32.totalorder %s28, 1
    %p324 = scmp.ne.s32.totalorder %s319, %s321
    %p325 = scmp.eq.s32.totalorder %s28, 0
    %p326 = por %p324, %p325
    %p327 = scmp.ne.s32.totalorder %s319, %s321
    %p328 = scmp.eq.s32.totalorder %s33, 1
    %p329 = por %p327, %p328
    %p330 = scmp.ne.s32.totalorder %s321, %s322
    %p331 = scmp.eq.s32.totalorder %s33, 0
    %p332 = por %p330, %p331
    %p333 = scmp.ne.s32.totalorder %s321, %s322
    %p334 = scmp.eq.s32.totalorder %s34, 1
    %p335 = por %p333, %p334
    %p337 = scmp.ne.s32.totalorder %s322, %s336
    %p338 = scmp.eq.s32.totalorder %s34, 0
    %p339 = por %p337, %p338
    %s341 = sadd.s32 %s340, 1
    %p344 = scmp.eq.s32.totalorder %s28, 1
    %p345 = scmp.ne.s32.totalorder %s340, %s342
    %p346 = scmp.eq.s32.totalorder %s28, 0
    %p347 = por %p345, %p346
    %p348 = scmp.ne.s32.totalorder %s340, %s342
    %p349 = scmp.eq.s32.totalorder %s33, 1
    %p350 = por %p348, %p349
    %p351 = scmp.ne.s32.totalorder %s342, %s343
    %p352 = scmp.eq.s32.totalorder %s33, 0
    %p353 = por %p351, %p352
    %p354 = scmp.ne.s32.totalorder %s342, %s343
    %p355 = scmp.eq.s32.totalorder %s34, 1
    %p356 = por %p354, %p355
    %p358 = scmp.ne.s32.totalorder %s343, %s357
    %p359 = scmp.eq.s32.totalorder %s34, 0
    %p360 = por %p358, %p359
    %s362 = sadd.s32 %s361, 1
    %p365 = scmp.eq.s32.totalorder %s28, 1
    %p366 = scmp.ne.s32.totalorder %s361, %s363
    %p367 = scmp.eq.s32.totalorder %s28, 0
    %p368 = por %p366, %p367
    %p369 = scmp.ne.s32.totalorder %s361, %s363
    %p370 = scmp.eq.s32.totalorder %s33, 1
    %p371 = por %p369, %p370
    %p372 = scmp.ne.s32.totalorder %s363, %s364
    %p373 = scmp.eq.s32.totalorder %s33, 0
    %p374 = por %p372, %p373
    %p375 = scmp.ne.s32.totalorder %s363, %s364
    %p376 = scmp.eq.s32.totalorder %s34, 1
    %p377 = por %p375, %p376
    %p379 = scmp.ne.s32.totalorder %s364, %s378
    %p380 = scmp.eq.s32.totalorder %s34, 0
    %p381 = por %p379, %p380
    %s383 = sadd.s32 %s382, 1
    %p386 = scmp.eq.s32.totalorder %s28, 1
    %p387 = scmp.ne.s32.totalorder %s382, %s384
    %p388 = scmp.eq.s32.totalorder %s28, 0
    %p389 = por %p387, %p388
    %p390 = scmp.ne.s32.totalorder %s382, %s384
    %p391 = scmp.eq.s32.totalorder %s33, 1
    %p392 = por %p390, %p391
    %p393 = scmp.ne.s32.totalorder %s384, %s385
    %p394 = scmp.eq.s32.totalorder %s33, 0
    %p395 = por %p393, %p394
    %p396 = scmp.ne.s32.totalorder %s384, %s385
    %p397 = scmp.eq.s32.totalorder %s34, 1
    %p398 = por %p396, %p397
    %p400 = scmp.ne.s32.totalorder %s385, %s399
    %p401 = scmp.eq.s32.totalorder %s34, 0
    %p402 = por %p400, %p401
    %s404 = sadd.s32 %s403, 1
    %p407 = scmp.eq.s32.totalorder %s28, 1
    %p408 = scmp.ne.s32.totalorder %s403, %s405
    %p409 = scmp.eq.s32.totalorder %s28, 0
    %p410 = por %p408, %p409
    %p411 = scmp.ne.s32.totalorder %s403, %s405
    %p412 = scmp.eq.s32.totalorder %s33, 1
    %p413 = por %p411, %p412
    %p414 = scmp.ne.s32.totalorder %s405, %s406
    %p415 = scmp.eq.s32.totalorder %s33, 0
    %p416 = por %p414, %p415
    %p417 = scmp.ne.s32.totalorder %s405, %s406
    %p418 = scmp.eq.s32.totalorder %s34, 1
    %p419 = por %p417, %p418
    %p421 = scmp.ne.s32.totalorder %s406, %s420
    %p422 = scmp.eq.s32.totalorder %s34, 0
    %p423 = por %p421, %p422
    %s425 = sadd.s32 %s424, 1
    %p428 = scmp.eq.s32.totalorder %s28, 1
    %p429 = scmp.ne.s32.totalorder %s424, %s426
    %p430 = scmp.eq.s32.totalorder %s28, 0
    %p431 = por %p429, %p430
    %p432 = scmp.ne.s32.totalorder %s424, %s426
    %p433 = scmp.eq.s32.totalorder %s33, 1
    %p434 = por %p432, %p433
    %p435 = scmp.ne.s32.totalorder %s426, %s427
    %p436 = scmp.eq.s32.totalorder %s33, 0
    %p437 = por %p435, %p436
    %p438 = scmp.ne.s32.totalorder %s426, %s427
    %p439 = scmp.eq.s32.totalorder %s34, 1
    %p440 = por %p438, %p439
    %p442 = scmp.ne.s32.totalorder %s427, %s441
    %p443 = scmp.eq.s32.totalorder %s34, 0
    %p444 = por %p442, %p443
    %s446 = sadd.s32 %s445, 1
    %p449 = scmp.eq.s32.totalorder %s28, 1
    %p450 = scmp.ne.s32.totalorder %s445, %s447
    %p451 = scmp.eq.s32.totalorder %s28, 0
    %p452 = por %p450, %p451
    %p453 = scmp.ne.s32.totalorder %s445, %s447
    %p454 = scmp.eq.s32.totalorder %s33, 1
    %p455 = por %p453, %p454
    %p456 = scmp.ne.s32.totalorder %s447, %s448
    %p457 = scmp.eq.s32.totalorder %s33, 0
    %p458 = por %p456, %p457
    %p459 = scmp.ne.s32.totalorder %s447, %s448
    %p460 = scmp.eq.s32.totalorder %s34, 1
    %p461 = por %p459, %p460
    %p463 = scmp.ne.s32.totalorder %s448, %s462
    %p464 = scmp.eq.s32.totalorder %s34, 0
    %p465 = por %p463, %p464
    %s467 = sadd.s32 %s466, 1
    %p470 = scmp.eq.s32.totalorder %s28, 1
    %p471 = scmp.ne.s32.totalorder %s466, %s468
    %p472 = scmp.eq.s32.totalorder %s28, 0
    %p473 = por %p471, %p472
    %p474 = scmp.ne.s32.totalorder %s466, %s468
    %p475 = scmp.eq.s32.totalorder %s33, 1
    %p476 = por %p474, %p475
    %p477 = scmp.ne.s32.totalorder %s468, %s469
    %p478 = scmp.eq.s32.totalorder %s33, 0
    %p479 = por %p477, %p478
    %p480 = scmp.ne.s32.totalorder %s468, %s469
    %p481 = scmp.eq.s32.totalorder %s34, 1
    %p482 = por %p480, %p481
    %p484 = scmp.ne.s32.totalorder %s469, %s483
    %p485 = scmp.eq.s32.totalorder %s34, 0
    %p486 = por %p484, %p485
    %s488 = sadd.s32 %s487, 1
    %p491 = scmp.eq.s32.totalorder %s28, 1
    %p492 = scmp.ne.s32.totalorder %s487, %s489
    %p493 = scmp.eq.s32.totalorder %s28, 0
    %p494 = por %p492, %p493
    %p495 = scmp.ne.s32.totalorder %s487, %s489
    %p496 = scmp.eq.s32.totalorder %s33, 1
    %p497 = por %p495, %p496
    %p498 = scmp.ne.s32.totalorder %s489, %s490
    %p499 = scmp.eq.s32.totalorder %s33, 0
    %p500 = por %p498, %p499
    %p501 = scmp.ne.s32.totalorder %s489, %s490
    %p502 = scmp.eq.s32.totalorder %s34, 1
    %p503 = por %p501, %p502
    %p505 = scmp.ne.s32.totalorder %s490, %s504
    %p506 = scmp.eq.s32.totalorder %s34, 0
    %p507 = por %p505, %p506
    %s508 = ssub.s32 %s28, %s35
    %p509 = scmp.eq.s32.totalorder %s508, 0
    %s511 = sadd.s32 %s510, 1
    %s512 = scalar_select %p509, %s510, %s511
    %p515 = pneg %p509
    %p516 = scmp.eq.s32.totalorder %s28, 1
    %p517 = por %p515, %p516
    %p518 = scmp.ne.s32.totalorder %s510, %s513
    %p519 = scmp.eq.s32.totalorder %s28, 0
    %p520 = por %p518, %p519
    %p521 = scmp.ne.s32.totalorder %s510, %s513
    %p522 = scmp.eq.s32.totalorder %s33, 1
    %p523 = por %p521, %p522
    %p524 = scmp.ne.s32.totalorder %s513, %s514
    %p525 = scmp.eq.s32.totalorder %s33, 0
    %p526 = por %p524, %p525
    %p527 = scmp.ne.s32.totalorder %s513, %s514
    %p528 = scmp.eq.s32.totalorder %s34, 1
    %p529 = por %p527, %p528
    %p531 = scmp.ne.s32.totalorder %s514, %s530
    %p532 = scmp.eq.s32.totalorder %s34, 0
    %p533 = por %p531, %p532
    %p534 = scmp.le.s32.totalorder 1, %s28
    %p535 = scmp.lt.s32.totalorder %s28, 3
    %p536 = pnand %p534, %p535
    %p537 = pneg %p536
    // Predicated region
    $region9: #{multitask_bert_forward.1} parent=5 // pred_check
      _
    $region10: #{multitask_bert_forward.1} parent=5 // pred_check_branch
      %539 = sbr.rel (%p536) target = $region12
    $region11: #{multitask_bert_forward.1} parent=5 // pred_region
      %s540 = ssub.s32 %s28, 1
      // Predicated region
      $region13: #{multitask_bert_forward.1} parent=11 // pred_check
        %p541 = pneg %p75
      $region14: #{multitask_bert_forward.1} parent=11 // pred_check_branch
        %543 = sbr.rel (%p541) target = $region16
      $region15: #{multitask_bert_forward.1} parent=11 // pred_region
        _
      $region16: #{multitask_bert_forward.1} parent=11 // pred_fallthru
        _
      // Predicated region
      $region17: #{multitask_bert_forward.1} parent=11 // pred_check
        %p544 = pneg %p122
      $region18: #{multitask_bert_forward.1} parent=11 // pred_check_branch
        %546 = sbr.rel (%p544) target = $region20
      $region19: #{multitask_bert_forward.1} parent=11 // pred_region
        _
      $region20: #{multitask_bert_forward.1} parent=11 // pred_fallthru
        _
      // Predicated region
      $region21: #{multitask_bert_forward.1} parent=11 // pred_check
        %p547 = pneg %p143
      $region22: #{multitask_bert_forward.1} parent=11 // pred_check_branch
        %549 = sbr.rel (%p547) target = $region24
      $region23: #{multitask_bert_forward.1} parent=11 // pred_region
        _
      $region24: #{multitask_bert_forward.1} parent=11 // pred_fallthru
        _
      // Predicated region
      $region25: #{multitask_bert_forward.1} parent=11 // pred_check
        %p550 = pneg %p164
      $region26: #{multitask_bert_forward.1} parent=11 // pred_check_branch
        %552 = sbr.rel (%p550) target = $region28
      $region27: #{multitask_bert_forward.1} parent=11 // pred_region
        _
      $region28: #{multitask_bert_forward.1} parent=11 // pred_fallthru
        _
      // Predicated region
      $region29: #{multitask_bert_forward.1} parent=11 // pred_check
        %p553 = pneg %p185
      $region30: #{multitask_bert_forward.1} parent=11 // pred_check_branch
        %555 = sbr.rel (%p553) target = $region32
      $region31: #{multitask_bert_forward.1} parent=11 // pred_region
        _
      $region32: #{multitask_bert_forward.1} parent=11 // pred_fallthru
        _
      // Predicated region
      $region33: #{multitask_bert_forward.1} parent=11 // pred_check
        %p556 = pneg %p206
      $region34: #{multitask_bert_forward.1} parent=11 // pred_check_branch
        %558 = sbr.rel (%p556) target = $region36
      $region35: #{multitask_bert_forward.1} parent=11 // pred_region
        _
      $region36: #{multitask_bert_forward.1} parent=11 // pred_fallthru
        _
      // Predicated region
      $region37: #{multitask_bert_forward.1} parent=11 // pred_check
        %p559 = pneg %p227
      $region38: #{multitask_bert_forward.1} parent=11 // pred_check_branch
        %561 = sbr.rel (%p559) target = $region40
      $region39: #{multitask_bert_forward.1} parent=11 // pred_region
        _
      $region40: #{multitask_bert_forward.1} parent=11 // pred_fallthru
        _
      // Predicated region
      $region41: #{multitask_bert_forward.1} parent=11 // pred_check
        %p562 = pneg %p248
      $region42: #{multitask_bert_forward.1} parent=11 // pred_check_branch
        %564 = sbr.rel (%p562) target = $region44
      $region43: #{multitask_bert_forward.1} parent=11 // pred_region
        _
      $region44: #{multitask_bert_forward.1} parent=11 // pred_fallthru
        _
      // Predicated region
      $region45: #{multitask_bert_forward.1} parent=11 // pred_check
        %p565 = pneg %p269
      $region46: #{multitask_bert_forward.1} parent=11 // pred_check_branch
        %567 = sbr.rel (%p565) target = $region48
      $region47: #{multitask_bert_forward.1} parent=11 // pred_region
        _
      $region48: #{multitask_bert_forward.1} parent=11 // pred_fallthru
        _
      // Predicated region
      $region49: #{multitask_bert_forward.1} parent=11 // pred_check
        %p568 = pneg %p290
      $region50: #{multitask_bert_forward.1} parent=11 // pred_check_branch
        %570 = sbr.rel (%p568) target = $region52
      $region51: #{multitask_bert_forward.1} parent=11 // pred_region
        _
      $region52: #{multitask_bert_forward.1} parent=11 // pred_fallthru
        _
      // Predicated region
      $region53: #{multitask_bert_forward.1} parent=11 // pred_check
        %p571 = pneg %p311
      $region54: #{multitask_bert_forward.1} parent=11 // pred_check_branch
        %573 = sbr.rel (%p571) target = $region56
      $region55: #{multitask_bert_forward.1} parent=11 // pred_region
        _
      $region56: #{multitask_bert_forward.1} parent=11 // pred_fallthru
        _
      // Predicated region
      $region57: #{multitask_bert_forward.1} parent=11 // pred_check
        %p574 = pneg %p332
      $region58: #{multitask_bert_forward.1} parent=11 // pred_check_branch
        %576 = sbr.rel (%p574) target = $region60
      $region59: #{multitask_bert_forward.1} parent=11 // pred_region
        _
      $region60: #{multitask_bert_forward.1} parent=11 // pred_fallthru
        _
      // Predicated region
      $region61: #{multitask_bert_forward.1} parent=11 // pred_check
        %p577 = pneg %p353
      $region62: #{multitask_bert_forward.1} parent=11 // pred_check_branch
        %579 = sbr.rel (%p577) target = $region64
      $region63: #{multitask_bert_forward.1} parent=11 // pred_region
        _
      $region64: #{multitask_bert_forward.1} parent=11 // pred_fallthru
        _
      // Predicated region
      $region65: #{multitask_bert_forward.1} parent=11 // pred_check
        %p580 = pneg %p374
      $region66: #{multitask_bert_forward.1} parent=11 // pred_check_branch
        %582 = sbr.rel (%p580) target = $region68
      $region67: #{multitask_bert_forward.1} parent=11 // pred_region
        _
      $region68: #{multitask_bert_forward.1} parent=11 // pred_fallthru
        _
      // Predicated region
      $region69: #{multitask_bert_forward.1} parent=11 // pred_check
        %p583 = pneg %p395
      $region70: #{multitask_bert_forward.1} parent=11 // pred_check_branch
        %585 = sbr.rel (%p583) target = $region72
      $region71: #{multitask_bert_forward.1} parent=11 // pred_region
        _
      $region72: #{multitask_bert_forward.1} parent=11 // pred_fallthru
        _
      // Predicated region
      $region73: #{multitask_bert_forward.1} parent=11 // pred_check
        %p586 = pneg %p416
      $region74: #{multitask_bert_forward.1} parent=11 // pred_check_branch
        %588 = sbr.rel (%p586) target = $region76
      $region75: #{multitask_bert_forward.1} parent=11 // pred_region
        _
      $region76: #{multitask_bert_forward.1} parent=11 // pred_fallthru
        _
      // Predicated region
      $region77: #{multitask_bert_forward.1} parent=11 // pred_check
        %p589 = pneg %p437
      $region78: #{multitask_bert_forward.1} parent=11 // pred_check_branch
        %591 = sbr.rel (%p589) target = $region80
      $region79: #{multitask_bert_forward.1} parent=11 // pred_region
        _
      $region80: #{multitask_bert_forward.1} parent=11 // pred_fallthru
        _
      // Predicated region
      $region81: #{multitask_bert_forward.1} parent=11 // pred_check
        %p592 = pneg %p458
      $region82: #{multitask_bert_forward.1} parent=11 // pred_check_branch
        %594 = sbr.rel (%p592) target = $region84
      $region83: #{multitask_bert_forward.1} parent=11 // pred_region
        _
      $region84: #{multitask_bert_forward.1} parent=11 // pred_fallthru
        _
      // Predicated region
      $region85: #{multitask_bert_forward.1} parent=11 // pred_check
        %p595 = pneg %p479
      $region86: #{multitask_bert_forward.1} parent=11 // pred_check_branch
        %597 = sbr.rel (%p595) target = $region88
      $region87: #{multitask_bert_forward.1} parent=11 // pred_region
        _
      $region88: #{multitask_bert_forward.1} parent=11 // pred_fallthru
        _
      // Predicated region
      $region89: #{multitask_bert_forward.1} parent=11 // pred_check
        %p598 = pneg %p500
      $region90: #{multitask_bert_forward.1} parent=11 // pred_check_branch
        %600 = sbr.rel (%p598) target = $region92
      $region91: #{multitask_bert_forward.1} parent=11 // pred_region
        _
      $region92: #{multitask_bert_forward.1} parent=11 // pred_fallthru
        _
    $region12: #{multitask_bert_forward.1} parent=5 // pred_fallthru
      _
    %p601 = scmp.lt.s32.totalorder %s28, 2
    // Predicated region
    $region93: #{multitask_bert_forward.1} parent=5 // pred_check
      %p602 = pneg %p601
    $region94: #{multitask_bert_forward.1} parent=5 // pred_check_branch
      %604 = sbr.rel (%p602) target = $region96
    $region95: #{multitask_bert_forward.1} parent=5 // pred_region
      // Predicated region
      $region97: #{multitask_bert_forward.1} parent=95 // pred_check
        %p605 = pneg %p48
      $region98: #{multitask_bert_forward.1} parent=95 // pred_check_branch
        %607 = sbr.rel (%p605) target = $region100
      $region99: #{multitask_bert_forward.1} parent=95 // pred_region
        %p608 = scmp.lt.s32.totalorder %s28, 1
        %s609 = scalar_select %p608, %s28, 1
        %s610 = smul.addr %s609, 8
        %s611 = scalar_lea.vmem %s0, %s610
      $region100: #{multitask_bert_forward.1} parent=95 // pred_fallthru
        _
      // Predicated region
      $region101: #{multitask_bert_forward.1} parent=95 // pred_check
        %p612 = pneg %p95
      $region102: #{multitask_bert_forward.1} parent=95 // pred_check_branch
        %614 = sbr.rel (%p612) target = $region104
      $region103: #{multitask_bert_forward.1} parent=95 // pred_region
        %p615 = scmp.lt.s32.totalorder %s28, 1
        %s616 = scalar_select %p615, %s28, 1
        %s617 = scalar_lea.vmem %s2, %s616
      $region104: #{multitask_bert_forward.1} parent=95 // pred_fallthru
        _
    $region96: #{multitask_bert_forward.1} parent=5 // pred_fallthru
      _
    %p618 = scmp.le.s32.totalorder 1, %s28
    %p619 = scmp.lt.s32.totalorder %s28, 3
    %p620 = pnand %p618, %p619
    %p621 = pneg %p620
    // Predicated region
    $region105: #{multitask_bert_forward.1} parent=5 // pred_check
      _
    $region106: #{multitask_bert_forward.1} parent=5 // pred_check_branch
      %623 = sbr.rel (%p620) target = $region108
    $region107: #{multitask_bert_forward.1} parent=5 // pred_region
      %s624 = ssub.s32 %s28, 1
      %p625 = scmp.lt.s32.totalorder %s33, 1
      %s626 = scalar_select %p625, %s33, 1
      %s627 = smul.addr %s626, 8
      %s628 = scalar_lea.vmem %s0, %s627
      %p629 = pneg %p54
      %p630 = pneg %p51
      %p631 = pneg %p75
      %p632 = pneg %p72
      %p633 = scmp.lt.s32.totalorder %s33, 1
      %s634 = scalar_select %p633, %s33, 1
      %s635 = scalar_lea.vmem %s2, %s634
      %p636 = pneg %p101
      %p637 = pneg %p98
      %p638 = pneg %p122
      %p639 = pneg %p119
      %p640 = pneg %p143
      %p641 = pneg %p140
      %p642 = pneg %p164
      %p643 = pneg %p161
      %p644 = pneg %p185
      %p645 = pneg %p182
      %p646 = pneg %p206
      %p647 = pneg %p203
      %p648 = pneg %p227
      %p649 = pneg %p224
      %p650 = pneg %p248
      %p651 = pneg %p245
      %p652 = pneg %p269
      %p653 = pneg %p266
      %p654 = pneg %p290
      %p655 = pneg %p287
      %p656 = pneg %p311
      %p657 = pneg %p308
      %p658 = pneg %p332
      %p659 = pneg %p329
      %p660 = pneg %p353
      %p661 = pneg %p350
      %p662 = pneg %p374
      %p663 = pneg %p371
      %p664 = pneg %p395
      %p665 = pneg %p392
      %p666 = pneg %p416
      %p667 = pneg %p413
      %p668 = pneg %p437
      %p669 = pneg %p434
      %p670 = pneg %p458
      %p671 = pneg %p455
      %p672 = pneg %p479
      %p673 = pneg %p476
      %p674 = pneg %p500
      %p675 = pneg %p497
      %p676 = pneg %p526
      %p677 = pneg %p523
      %p678 = scmp.lt.s32.totalorder %s33, 1
      %s679 = scalar_select %p678, %s33, 1
      %s680 = scalar_lea.vmem %s22, %s679
      %p681 = scmp.lt.s32.totalorder %s33, 1
      %s682 = scalar_select %p681, %s33, 1
      %s683 = smul.addr %s682, 8
      %s684 = scalar_lea.vmem %s0, %s683
      %p685 = scmp.lt.s32.totalorder %s33, 1
      %s686 = scalar_select %p685, %s33, 1
      %s687 = scalar_lea.vmem %s2, %s686
      %p688 = scmp.lt.s32.totalorder %s33, 1
      %s689 = scalar_select %p688, %s33, 1
      %s690 = scalar_lea.vmem %s22, %s689
      %v692 = vld [vmem:[%s684] sm:$0xff]
      %v693 = vlaneseq
      %v694 = vand.u32 %v693, 127
      %695 = vset.pattern.permute.xlu0 0
      %696 = vperm.xlu0 %695, %v692
      %v697 = vpop.permute.xlu0 %696
      %vm698 = vcmp.eq.s32.totalorder %v694, %v697
      %v699 = vsel %vm698, 1, 0
      %v700 = vcvt.s32.f32 %v699
      %v701 = vpack.c.bf16 %v700, %v700
      %v702 = vld [vmem:[%s3] sm:$0xf]
      %v703 = vld [vmem:[%s3 + $0x4] sm:$0xf]
      %v704 = vld [vmem:[%s3 + $0x8] sm:$0xf]
      %v705 = vld [vmem:[%s3 + $0xc] sm:$0xf]
      %v706 = vld [vmem:[%s3 + $0x10] sm:$0xf]
      %v707 = vld [vmem:[%s3 + $0x14] sm:$0xf]
      %v708 = vld [vmem:[%s3 + $0x18] sm:$0xf]
      %v709 = vld [vmem:[%s3 + $0x1c] sm:$0xf]
      %v710 = vld [vmem:[%s3 + $0x20] sm:$0xf]
      %v711 = vld [vmem:[%s3 + $0x24] sm:$0xf]
      %v712 = vld [vmem:[%s3 + $0x28] sm:$0xf]
      %v713 = vld [vmem:[%s3 + $0x2c] sm:$0xf]
      %v714 = vld [vmem:[%s3 + $0x30] sm:$0xf]
      %v715 = vld [vmem:[%s3 + $0x34] sm:$0xf]
      %v716 = vld [vmem:[%s3 + $0x38] sm:$0xf]
      %v717 = vld [vmem:[%s3 + $0x3c] sm:$0xf]
      %v718 = vld [vmem:[%s1] sm:$0xff]
      %v735 = vunpack.c.l.b16 %v702
      %v736 = vunpack.c.l.b16 %v703
      %v737 = vunpack.c.l.b16 %v704
      %v738 = vunpack.c.l.b16 %v705
      %v739 = vunpack.c.l.b16 %v706
      %v740 = vunpack.c.l.b16 %v707
      %v741 = vunpack.c.l.b16 %v708
      %v742 = vunpack.c.l.b16 %v709
      %v743 = vunpack.c.l.b16 %v710
      %v744 = vunpack.c.l.b16 %v711
      %v745 = vunpack.c.l.b16 %v712
      %v746 = vunpack.c.l.b16 %v713
      %v747 = vunpack.c.l.b16 %v714
      %v748 = vunpack.c.l.b16 %v715
      %v749 = vunpack.c.l.b16 %v716
      %v750 = vunpack.c.l.b16 %v717
      %v751 = vpack.c.b16 %v736, %v735
      %v752 = vpack.c.b16 %v738, %v737
      %v753 = vpack.c.b16 %v740, %v739
      %v754 = vpack.c.b16 %v742, %v741
      %v755 = vpack.c.b16 %v744, %v743
      %v756 = vpack.c.b16 %v746, %v745
      %v757 = vpack.c.b16 %v748, %v747
      %v758 = vpack.c.b16 %v750, %v749
      %767 = vmatprep.subr.bf16.mxu0 0
      %768 = vmatpush1.bf16.msra.mxu0 %v751
      %769 = vmatprep.subr.bf16.mxu0 0
      %770 = vmatpush1.bf16.msra.mxu0 %v752
      %771 = vmatprep.subr.bf16.mxu0 0
      %772 = vmatpush1.bf16.msra.mxu0 %v753
      %773 = vmatprep.subr.bf16.mxu0 0
      %774 = vmatpush1.bf16.msra.mxu0 %v754
      %775 = vmatprep.subr.bf16.mxu0 0
      %776 = vmatpush1.bf16.msra.mxu0 %v755
      %777 = vmatprep.subr.bf16.mxu0 0
      %778 = vmatpush1.bf16.msra.mxu0 %v756
      %779 = vmatprep.subr.bf16.mxu0 0
      %780 = vmatpush1.bf16.msra.mxu0 %v757
      %781 = vmatprep.subr.bf16.mxu0 0
      %782 = vmatpush1.bf16.msra.mxu0 %v758
      %783 = vmatprep.subr.bf16.mxu0 0
      %784 = vmatpush1.bf16.msra.mxu0 0
      %785 = vmatprep.subr.bf16.mxu0 0
      %786 = vmatpush1.bf16.msra.mxu0 0
      %787 = vmatprep.subr.bf16.mxu0 0
      %788 = vmatpush1.bf16.msra.mxu0 0
      %789 = vmatprep.subr.bf16.mxu0 0
      %790 = vmatpush1.bf16.msra.mxu0 0
      %791 = vmatprep.subr.bf16.mxu0 0
      %792 = vmatpush1.bf16.msra.mxu0 0
      %793 = vmatprep.subr.bf16.mxu0 0
      %794 = vmatpush1.bf16.msra.mxu0 0
      %795 = vmatprep.subr.bf16.mxu0 0
      %796 = vmatpush1.bf16.msra.mxu0 0
      %797 = vmatprep.subr.bf16.mxu0 0
      %798 = vmatpush1.bf16.msra.mxu0 0
      %799 = vmatprep.mubr.bf16.mxu0 0
      %800 = vmatmul.mubr.bf16.gmra.mrb[0].mxu0 %v701
      %v801 = vpop.f32.mrb[0].mxu0
      %v802 = vadd.f32 %v718, %v801
      %v803 = vpop.f32.mrb[0].mxu0
      %v804 = vpop.f32.mrb[0].mxu0
      %v805 = vpop.f32.mrb[0].mxu0
      %806 = vdwg.mxu0
      %v807 = vld [vmem:[%s4] sm:$0x1]
      %v808 = vld [vmem:[%s5] sm:$0x1]
      %vm809 = vcmask 261120
      %v810 = vsel %vm809, %v802, 0.0
      %811 = vadd.xlane.f32.xlu0 %v810
      %v812 = vpop.xlane.xlu0 %811
      %v813 = vrcp.pop 32.0
      %v814 = vmul.f32 %v812, %v813
      %v815 = vsub.f32 %v802, %v814
      %v816 = vmul.f32 %v815, %v815
      %v817 = vsel %vm809, %v816, 0.0
      %818 = vadd.xlane.f32.xlu0 %v817
      %v819 = vpop.xlane.xlu0 %818
      %v820 = vmul.f32 %v819, %v813
      %v821 = vadd.f32 %v820, 1e-12
      %v822 = vrsqrt.pop %v821
      %v823 = vmul.f32 %v815, %v822
      %v825 = vlaneseq
      %v826 = vshrl.u32 %v825, 7
      %v827 = vsub.s32 0, %v826
      %v828 = vrot.slane %v807, %v827
      %v830 = vmul.f32 %v823, %v828
      %v832 = vlaneseq
      %v833 = vshrl.u32 %v832, 7
      %v834 = vsub.s32 0, %v833
      %v835 = vrot.slane %v808, %v834
      %v837 = vadd.f32 %v830, %v835
      %v838 = vld [vmem:[%s687] sm:$0x1]
      %v840 = vlaneseq
      %v841 = vshrl.u32 %v840, 7
      %v842 = vsub.s32 0, %v841
      %v843 = vrot.slane %v838, %v842
      %v845 = vld [vmem:[%s6] sm:$0xf]
      %v846 = vld [vmem:[%s6 + $0x4] sm:$0xf]
      %v847 = vld [vmem:[%s6 + $0x8] sm:$0xf]
      %v848 = vld [vmem:[%s6 + $0xc] sm:$0xf]
      %v849 = vpack.c.bf16 %v837, %v837
      %v850 = vld [vmem:[%s7] sm:$0x1]
      %v852 = vlaneseq
      %v853 = vshrl.u32 %v852, 7
      %v854 = vsub.s32 0, %v853
      %v855 = vrot.slane %v850, %v854
      %v861 = vunpack.c.l.b16 %v845
      %v862 = vunpack.c.l.b16 %v846
      %v863 = vunpack.c.l.b16 %v847
      %v864 = vunpack.c.l.b16 %v848
      %v865 = vpack.c.b16 %v862, %v861
      %v866 = vpack.c.b16 %v864, %v863
      %v870 = vsel %vm809, %v849, 0
      %872 = vmatprep.subr.bf16.mxu0 0
      %873 = vmatpush1.bf16.msra.mxu0 %v865
      %874 = vmatprep.subr.bf16.mxu0 0
      %875 = vmatpush1.bf16.msra.mxu0 %v866
      %876 = vmatprep.subr.bf16.mxu0 0
      %877 = vmatpush1.bf16.msra.mxu0 0
      %878 = vmatprep.subr.bf16.mxu0 0
      %879 = vmatpush1.bf16.msra.mxu0 0
      %880 = vmatprep.subr.bf16.mxu0 0
      %881 = vmatpush1.bf16.msra.mxu0 0
      %882 = vmatprep.subr.bf16.mxu0 0
      %883 = vmatpush1.bf16.msra.mxu0 0
      %884 = vmatprep.subr.bf16.mxu0 0
      %885 = vmatpush1.bf16.msra.mxu0 0
      %886 = vmatprep.subr.bf16.mxu0 0
      %887 = vmatpush1.bf16.msra.mxu0 0
      %888 = vmatprep.subr.bf16.mxu0 0
      %889 = vmatpush1.bf16.msra.mxu0 0
      %890 = vmatprep.subr.bf16.mxu0 0
      %891 = vmatpush1.bf16.msra.mxu0 0
      %892 = vmatprep.subr.bf16.mxu0 0
      %893 = vmatpush1.bf16.msra.mxu0 0
      %894 = vmatprep.subr.bf16.mxu0 0
      %895 = vmatpush1.bf16.msra.mxu0 0
      %896 = vmatprep.subr.bf16.mxu0 0
      %897 = vmatpush1.bf16.msra.mxu0 0
      %898 = vmatprep.subr.bf16.mxu0 0
      %899 = vmatpush1.bf16.msra.mxu0 0
      %900 = vmatprep.subr.bf16.mxu0 0
      %901 = vmatpush1.bf16.msra.mxu0 0
      %902 = vmatprep.subr.bf16.mxu0 0
      %903 = vmatpush1.bf16.msra.mxu0 0
      %904 = vmatprep.mubr.bf16.mxu0 0
      %905 = vmatmul.mubr.bf16.gmra.mrb[0].mxu0 %v870
      %v906 = vpop.f32.mrb[0].mxu0
      %v907 = vadd.f32 %v855, %v906
      %v908 = vpop.f32.mrb[0].mxu0
      %v909 = vpop.f32.mrb[0].mxu0
      %v910 = vpop.f32.mrb[0].mxu0
      %911 = vdwg.mxu0
      %913 = vrot.lane.b32.xlu0 %v907, 112
      %v914 = vpop.permute.xlu0 %913
      %v916 = vpack.c.bf16 %v907, %v907
      %v917 = vpack.c.bf16 %v914, %v914
      %919 = vrot.lane.b32.xlu0 %v916, 96
      %v920 = vpop.permute.xlu0 %919
      %vm921 = vcmask 130048
      %v923 = vsel %vm921, %v916, 0
      %v926 = vsel %vm921, %v920, 0
      %928 = vmatprep.subr.bf16.mxu0 0
      %929 = vmatpush1.bf16.xpose.msra.mxu0 %v926
      %930 = vmatprep.subr.bf16.mxu0 0
      %931 = vmatpush1.bf16.xpose.msra.mxu0 0
      %932 = vmatprep.subr.bf16.mxu0 0
      %933 = vmatpush1.bf16.xpose.msra.mxu0 0
      %934 = vmatprep.subr.bf16.mxu0 0
      %935 = vmatpush1.bf16.xpose.msra.mxu0 0
      %936 = vmatprep.subr.bf16.mxu0 0
      %937 = vmatpush1.bf16.xpose.msra.mxu0 0
      %938 = vmatprep.subr.bf16.mxu0 0
      %939 = vmatpush1.bf16.xpose.msra.mxu0 0
      %940 = vmatprep.subr.bf16.mxu0 0
      %941 = vmatpush1.bf16.xpose.msra.mxu0 0
      %942 = vmatprep.subr.bf16.mxu0 0
      %943 = vmatpush1.bf16.xpose.msra.mxu0 0
      %944 = vmatprep.subr.bf16.mxu0 0
      %945 = vmatpush1.bf16.xpose.msra.mxu0 0
      %946 = vmatprep.subr.bf16.mxu0 0
      %947 = vmatpush1.bf16.xpose.msra.mxu0 0
      %948 = vmatprep.subr.bf16.mxu0 0
      %949 = vmatpush1.bf16.xpose.msra.mxu0 0
      %950 = vmatprep.subr.bf16.mxu0 0
      %951 = vmatpush1.bf16.xpose.msra.mxu0 0
      %952 = vmatprep.subr.bf16.mxu0 0
      %953 = vmatpush1.bf16.xpose.msra.mxu0 0
      %954 = vmatprep.subr.bf16.mxu0 0
      %955 = vmatpush1.bf16.xpose.msra.mxu0 0
      %956 = vmatprep.subr.bf16.mxu0 0
      %957 = vmatpush1.bf16.xpose.msra.mxu0 0
      %958 = vmatprep.subr.bf16.mxu0 0
      %959 = vmatpush1.bf16.xpose.msra.mxu0 0
      %960 = vmatprep.mubr.bf16.mxu0 0
      %961 = vmatmul.mubr.bf16.gmra.mrb[0].mxu0 %v923
      %v962 = vpop.f32.mrb[0].mxu0
      %v963 = vadd.f32 %v843, %v962
      %v964 = vpop.f32.mrb[0].mxu0
      %v965 = vpop.f32.mrb[0].mxu0
      %v966 = vpop.f32.mrb[0].mxu0
      %967 = vdwg.mxu0
      %969 = vrot.lane.b32.xlu0 %v917, 96
      %v970 = vpop.permute.xlu0 %969
      %v972 = vsel %vm921, %v917, 0
      %v975 = vsel %vm921, %v970, 0
      %977 = vmatprep.subr.bf16.mxu0 0
      %978 = vmatpush1.bf16.xpose.msra.mxu0 %v975
      %979 = vmatprep.subr.bf16.mxu0 0
      %980 = vmatpush1.bf16.xpose.msra.mxu0 0
      %981 = vmatprep.subr.bf16.mxu0 0
      %982 = vmatpush1.bf16.xpose.msra.mxu0 0
      %983 = vmatprep.subr.bf16.mxu0 0
      %984 = vmatpush1.bf16.xpose.msra.mxu0 0
      %985 = vmatprep.subr.bf16.mxu0 0
      %986 = vmatpush1.bf16.xpose.msra.mxu0 0
      %987 = vmatprep.subr.bf16.mxu0 0
      %988 = vmatpush1.bf16.xpose.msra.mxu0 0
      %989 = vmatprep.subr.bf16.mxu0 0
      %990 = vmatpush1.bf16.xpose.msra.mxu0 0
      %991 = vmatprep.subr.bf16.mxu0 0
      %992 = vmatpush1.bf16.xpose.msra.mxu0 0
      %993 = vmatprep.subr.bf16.mxu0 0
      %994 = vmatpush1.bf16.xpose.msra.mxu0 0
      %995 = vmatprep.subr.bf16.mxu0 0
      %996 = vmatpush1.bf16.xpose.msra.mxu0 0
      %997 = vmatprep.subr.bf16.mxu0 0
      %998 = vmatpush1.bf16.xpose.msra.mxu0 0
      %999 = vmatprep.subr.bf16.mxu0 0
      %1000 = vmatpush1.bf16.xpose.msra.mxu0 0
      %1001 = vmatprep.subr.bf16.mxu0 0
      %1002 = vmatpush1.bf16.xpose.msra.mxu0 0
      %1003 = vmatprep.subr.bf16.mxu0 0
      %1004 = vmatpush1.bf16.xpose.msra.mxu0 0
      %1005 = vmatprep.subr.bf16.mxu0 0
      %1006 = vmatpush1.bf16.xpose.msra.mxu0 0
      %1007 = vmatprep.subr.bf16.mxu0 0
      %1008 = vmatpush1.bf16.xpose.msra.mxu0 0
      %1009 = vmatprep.mubr.bf16.mxu0 0
      %1010 = vmatmul.mubr.bf16.gmra.mrb[0].mxu0 %v972
      %v1011 = vpop.f32.mrb[0].mxu0
      %v1012 = vadd.f32 %v843, %v1011
      %v1013 = vpop.f32.mrb[0].mxu0
      %v1014 = vpop.f32.mrb[0].mxu0
      %v1015 = vpop.f32.mrb[0].mxu0
      %1016 = vdwg.mxu0
      %vm1017 = vcmask 64512
      %v1018 = vsel %vm1017, %v963, -inf
      %1019 = vmax.xlane.f32.xlu0 %v1018
      %v1020 = vpop.xlane.xlu0 %1019
      %v1021 = vsel %vm1017, %v1012, -inf
      %1022 = vmax.xlane.f32.xlu0 %v1021
      %v1023 = vpop.xlane.xlu0 %1022
      %v1024 = vsub.f32 %v963, %v1020
      %v1025 = vsub.f32 %v1012, %v1023
      %v1026 = vmul.f32 %v1024, 1.442695
      %v1027 = vpow.pop %v1026
      %v1028 = vmul.f32 %v1025, 1.442695
      %v1029 = vpow.pop %v1028
      %v1030 = vsel %vm1017, %v1027, 0.0
      %1031 = vadd.xlane.f32.xlu0 %v1030
      %v1032 = vpop.xlane.xlu0 %1031
      %v1033 = vsel %vm1017, %v1029, 0.0
      %1034 = vadd.xlane.f32.xlu0 %v1033
      %v1035 = vpop.xlane.xlu0 %1034
      %v1036 = vrcp.pop %v1032
      %v1037 = vmul.f32 %v1027, %v1036
      %v1038 = vrcp.pop %v1035
      %v1039 = vmul.f32 %v1029, %v1038
      %v1040 = vpack.c.bf16 %v1037, %v1037
      %v1041 = vpack.c.bf16 %v1039, %v1039
      %1042 = vrot.lane.b32.xlu0 %v916, 64
      %v1043 = vpop.permute.xlu0 %1042
      %v1045 = vsel %vm1017, %v1040, 0
      %vm1047 = vcmask 1043456
      %v1049 = vsel %vm1047, %v1043, 0
      %1051 = vmatprep.subr.bf16.mxu0 0
      %1052 = vmatpush1.bf16.msra.mxu0 %v1049
      %1053 = vmatprep.subr.bf16.mxu0 0
      %1054 = vmatpush1.bf16.msra.mxu0 0
      %1055 = vmatprep.subr.bf16.mxu0 0
      %1056 = vmatpush1.bf16.msra.mxu0 0
      %1057 = vmatprep.subr.bf16.mxu0 0
      %1058 = vmatpush1.bf16.msra.mxu0 0
      %1059 = vmatprep.subr.bf16.mxu0 0
      %1060 = vmatpush1.bf16.msra.mxu0 0
      %1061 = vmatprep.subr.bf16.mxu0 0
      %1062 = vmatpush1.bf16.msra.mxu0 0
      %1063 = vmatprep.subr.bf16.mxu0 0
      %1064 = vmatpush1.bf16.msra.mxu0 0
      %1065 = vmatprep.subr.bf16.mxu0 0
      %1066 = vmatpush1.bf16.msra.mxu0 0
      %1067 = vmatprep.subr.bf16.mxu0 0
      %1068 = vmatpush1.bf16.msra.mxu0 0
      %1069 = vmatprep.subr.bf16.mxu0 0
      %1070 = vmatpush1.bf16.msra.mxu0 0
      %1071 = vmatprep.subr.bf16.mxu0 0
      %1072 = vmatpush1.bf16.msra.mxu0 0
      %1073 = vmatprep.subr.bf16.mxu0 0
      %1074 = vmatpush1.bf16.msra.mxu0 0
      %1075 = vmatprep.subr.bf16.mxu0 0
      %1076 = vmatpush1.bf16.msra.mxu0 0
      %1077 = vmatprep.subr.bf16.mxu0 0
      %1078 = vmatpush1.bf16.msra.mxu0 0
      %1079 = vmatprep.subr.bf16.mxu0 0
      %1080 = vmatpush1.bf16.msra.mxu0 0
      %1081 = vmatprep.subr.bf16.mxu0 0
      %1082 = vmatpush1.bf16.msra.mxu0 0
      %1083 = vmatprep.mubr.bf16.mxu0 0
      %1084 = vmatmul.mubr.bf16.gmra.mrb[0].mxu0 %v1045
      %v1085 = vpop.f32.mrb[0].mxu0
      %v1086 = vadd.f32 0.0, %v1085
      %v1087 = vpop.f32.mrb[0].mxu0
      %v1088 = vpop.f32.mrb[0].mxu0
      %v1089 = vpop.f32.mrb[0].mxu0
      %1090 = vdwg.mxu0
      %1091 = vrot.lane.b32.xlu0 %v917, 64
      %v1092 = vpop.permute.xlu0 %1091
      %v1094 = vsel %vm1017, %v1041, 0
      %v1097 = vsel %vm1047, %v1092, 0
      %1099 = vmatprep.subr.bf16.mxu0 0
      %1100 = vmatpush1.bf16.msra.mxu0 %v1097
      %1101 = vmatprep.subr.bf16.mxu0 0
      %1102 = vmatpush1.bf16.msra.mxu0 0
      %1103 = vmatprep.subr.bf16.mxu0 0
      %1104 = vmatpush1.bf16.msra.mxu0 0
      %1105 = vmatprep.subr.bf16.mxu0 0
      %1106 = vmatpush1.bf16.msra.mxu0 0
      %1107 = vmatprep.subr.bf16.mxu0 0
      %1108 = vmatpush1.bf16.msra.mxu0 0
      %1109 = vmatprep.subr.bf16.mxu0 0
      %1110 = vmatpush1.bf16.msra.mxu0 0
      %1111 = vmatprep.subr.bf16.mxu0 0
      %1112 = vmatpush1.bf16.msra.mxu0 0
      %1113 = vmatprep.subr.bf16.mxu0 0
      %1114 = vmatpush1.bf16.msra.mxu0 0
      %1115 = vmatprep.subr.bf16.mxu0 0
      %1116 = vmatpush1.bf16.msra.mxu0 0
      %1117 = vmatprep.subr.bf16.mxu0 0
      %1118 = vmatpush1.bf16.msra.mxu0 0
      %1119 = vmatprep.subr.bf16.mxu0 0
      %1120 = vmatpush1.bf16.msra.mxu0 0
      %1121 = vmatprep.subr.bf16.mxu0 0
      %1122 = vmatpush1.bf16.msra.mxu0 0
      %1123 = vmatprep.subr.bf16.mxu0 0
      %1124 = vmatpush1.bf16.msra.mxu0 0
      %1125 = vmatprep.subr.bf16.mxu0 0
      %1126 = vmatpush1.bf16.msra.mxu0 0
      %1127 = vmatprep.subr.bf16.mxu0 0
      %1128 = vmatpush1.bf16.msra.mxu0 0
      %1129 = vmatprep.subr.bf16.mxu0 0
      %1130 = vmatpush1.bf16.msra.mxu0 0
      %1131 = vmatprep.mubr.bf16.mxu0 0
      %1132 = vmatmul.mubr.bf16.gmra.mrb[0].mxu0 %v1094
      %v1133 = vpop.f32.mrb[0].mxu0
      %v1134 = vadd.f32 0.0, %v1133
      %v1135 = vpop.f32.mrb[0].mxu0
      %v1136 = vpop.f32.mrb[0].mxu0
      %v1137 = vpop.f32.mrb[0].mxu0
      %1138 = vdwg.mxu0
      %1140 = vrot.lane.b32.xlu0 %v1134, 16
      %v1141 = vpop.permute.xlu0 %1140
      %v1143 = vsel %vm921, %v1086, %v1141
      %v1144 = vld [vmem:[%s8] sm:$0xf]
      %v1145 = vld [vmem:[%s8 + $0x4] sm:$0xf]
      %v1146 = vld [vmem:[%s8 + $0x8] sm:$0xf]
      %v1147 = vld [vmem:[%s8 + $0xc] sm:$0xf]
      %v1148 = vpack.c.bf16 %v1143, %v1143
      %v1149 = vld [vmem:[%s9] sm:$0x1]
      %v1151 = vlaneseq
      %v1152 = vshrl.u32 %v1151, 7
      %v1153 = vsub.s32 0, %v1152
      %v1154 = vrot.slane %v1149, %v1153
      %v1160 = vunpack.c.l.b16 %v1144
      %v1161 = vunpack.c.l.b16 %v1145
      %v1162 = vunpack.c.l.b16 %v1146
      %v1163 = vunpack.c.l.b16 %v1147
      %v1164 = vpack.c.b16 %v1161, %v1160
      %v1165 = vpack.c.b16 %v1163, %v1162
      %v1169 = vsel %vm809, %v1148, 0
      %1171 = vmatprep.subr.bf16.mxu0 0
      %1172 = vmatpush1.bf16.msra.mxu0 %v1164
      %1173 = vmatprep.subr.bf16.mxu0 0
      %1174 = vmatpush1.bf16.msra.mxu0 %v1165
      %1175 = vmatprep.subr.bf16.mxu0 0
      %1176 = vmatpush1.bf16.msra.mxu0 0
      %1177 = vmatprep.subr.bf16.mxu0 0
      %1178 = vmatpush1.bf16.msra.mxu0 0
      %1179 = vmatprep.subr.bf16.mxu0 0
      %1180 = vmatpush1.bf16.msra.mxu0 0
      %1181 = vmatprep.subr.bf16.mxu0 0
      %1182 = vmatpush1.bf16.msra.mxu0 0
      %1183 = vmatprep.subr.bf16.mxu0 0
      %1184 = vmatpush1.bf16.msra.mxu0 0
      %1185 = vmatprep.subr.bf16.mxu0 0
      %1186 = vmatpush1.bf16.msra.mxu0 0
      %1187 = vmatprep.subr.bf16.mxu0 0
      %1188 = vmatpush1.bf16.msra.mxu0 0
      %1189 = vmatprep.subr.bf16.mxu0 0
      %1190 = vmatpush1.bf16.msra.mxu0 0
      %1191 = vmatprep.subr.bf16.mxu0 0
      %1192 = vmatpush1.bf16.msra.mxu0 0
      %1193 = vmatprep.subr.bf16.mxu0 0
      %1194 = vmatpush1.bf16.msra.mxu0 0
      %1195 = vmatprep.subr.bf16.mxu0 0
      %1196 = vmatpush1.bf16.msra.mxu0 0
      %1197 = vmatprep.subr.bf16.mxu0 0
      %1198 = vmatpush1.bf16.msra.mxu0 0
      %1199 = vmatprep.subr.bf16.mxu0 0
      %1200 = vmatpush1.bf16.msra.mxu0 0
      %1201 = vmatprep.subr.bf16.mxu0 0
      %1202 = vmatpush1.bf16.msra.mxu0 0
      %1203 = vmatprep.mubr.bf16.mxu0 0
      %1204 = vmatmul.mubr.bf16.gmra.mrb[0].mxu0 %v1169
      %v1205 = vpop.f32.mrb[0].mxu0
      %v1206 = vadd.f32 %v1154, %v1205
      %v1207 = vpop.f32.mrb[0].mxu0
      %v1208 = vpop.f32.mrb[0].mxu0
      %v1209 = vpop.f32.mrb[0].mxu0
      %1210 = vdwg.mxu0
      %v1211 = vadd.f32 %v1206, %v837
      %v1212 = vld [vmem:[%s10] sm:$0x1]
      %v1213 = vld [vmem:[%s11] sm:$0x1]
      %v1214 = vsel %vm809, %v1211, 0.0
      %1215 = vadd.xlane.f32.xlu0 %v1214
      %v1216 = vpop.xlane.xlu0 %1215
      %v1217 = vmul.f32 %v1216, %v813
      %v1218 = vsub.f32 %v1211, %v1217
      %v1219 = vmul.f32 %v1218, %v1218
      %v1220 = vsel %vm809, %v1219, 0.0
      %1221 = vadd.xlane.f32.xlu0 %v1220
      %v1222 = vpop.xlane.xlu0 %1221
      %v1223 = vmul.f32 %v1222, %v813
      %v1224 = vadd.f32 %v1223, 1e-12
      %v1225 = vrsqrt.pop %v1224
      %v1226 = vmul.f32 %v1218, %v1225
      %v1228 = vlaneseq
      %v1229 = vshrl.u32 %v1228, 7
      %v1230 = vsub.s32 0, %v1229
      %v1231 = vrot.slane %v1212, %v1230
      %v1233 = vmul.f32 %v1226, %v1231
      %v1235 = vlaneseq
      %v1236 = vshrl.u32 %v1235, 7
      %v1237 = vsub.s32 0, %v1236
      %v1238 = vrot.slane %v1213, %v1237
      %v1240 = vadd.f32 %v1233, %v1238
      %v1241 = vld [vmem:[%s12] sm:$0xf]
      %v1242 = vld [vmem:[%s12 + $0x4] sm:$0xf]
      %v1243 = vld [vmem:[%s12 + $0x8] sm:$0xf]
      %v1244 = vld [vmem:[%s12 + $0xc] sm:$0xf]
      %v1245 = vpack.c.bf16 %v1240, %v1240
      %v1246 = vld [vmem:[%s13] sm:$0x1]
      %v1248 = vlaneseq
      %v1249 = vshrl.u32 %v1248, 7
      %v1250 = vsub.s32 0, %v1249
      %v1251 = vrot.slane %v1246, %v1250
      %v1257 = vunpack.c.l.b16 %v1241
      %v1258 = vunpack.c.l.b16 %v1242
      %v1259 = vunpack.c.l.b16 %v1243
      %v1260 = vunpack.c.l.b16 %v1244
      %v1261 = vpack.c.b16 %v1258, %v1257
      %v1262 = vpack.c.b16 %v1260, %v1259
      %v1266 = vsel %vm809, %v1245, 0
      %1268 = vmatprep.subr.bf16.mxu0 0
      %1269 = vmatpush1.bf16.msra.mxu0 %v1261
      %1270 = vmatprep.subr.bf16.mxu0 0
      %1271 = vmatpush1.bf16.msra.mxu0 %v1262
      %1272 = vmatprep.subr.bf16.mxu0 0
      %1273 = vmatpush1.bf16.msra.mxu0 0
      %1274 = vmatprep.subr.bf16.mxu0 0
      %1275 = vmatpush1.bf16.msra.mxu0 0
      %1276 = vmatprep.subr.bf16.mxu0 0
      %1277 = vmatpush1.bf16.msra.mxu0 0
      %1278 = vmatprep.subr.bf16.mxu0 0
      %1279 = vmatpush1.bf16.msra.mxu0 0
      %1280 = vmatprep.subr.bf16.mxu0 0
      %1281 = vmatpush1.bf16.msra.mxu0 0
      %1282 = vmatprep.subr.bf16.mxu0 0
      %1283 = vmatpush1.bf16.msra.mxu0 0
      %1284 = vmatprep.subr.bf16.mxu0 0
      %1285 = vmatpush1.bf16.msra.mxu0 0
      %1286 = vmatprep.subr.bf16.mxu0 0
      %1287 = vmatpush1.bf16.msra.mxu0 0
      %1288 = vmatprep.subr.bf16.mxu0 0
      %1289 = vmatpush1.bf16.msra.mxu0 0
      %1290 = vmatprep.subr.bf16.mxu0 0
      %1291 = vmatpush1.bf16.msra.mxu0 0
      %1292 = vmatprep.subr.bf16.mxu0 0
      %1293 = vmatpush1.bf16.msra.mxu0 0
      %1294 = vmatprep.subr.bf16.mxu0 0
      %1295 = vmatpush1.bf16.msra.mxu0 0
      %1296 = vmatprep.subr.bf16.mxu0 0
      %1297 = vmatpush1.bf16.msra.mxu0 0
      %1298 = vmatprep.subr.bf16.mxu0 0
      %1299 = vmatpush1.bf16.msra.mxu0 0
      %1300 = vmatprep.mubr.bf16.mxu0 0
      %1301 = vmatmul.mubr.bf16.gmra.mrb[0].mxu0 %v1266
      %v1302 = vpop.f32.mrb[0].mxu0
      %v1303 = vadd.f32 %v1251, %v1302
      %v1304 = vpop.f32.mrb[0].mxu0
      %v1305 = vpop.f32.mrb[0].mxu0
      %v1306 = vpop.f32.mrb[0].mxu0
      %1307 = vdwg.mxu0
      %v1308 = vmul.f32 %v1303, 0.5
      %v1309 = vmul.f32 %v1303, 0.044715
      %v1310 = vmul.f32 %v1309, %v1303
      %v1311 = vmul.f32 %v1310, %v1303
      %v1312 = vadd.f32 %v1303, %v1311
      %v1313 = vmul.f32 %v1312, 0.7978846
      %v1314 = vtanh.pop %v1313
      %v1315 = vadd.f32 %v1314, 1.0
      %v1316 = vmul.f32 %v1308, %v1315
      %v1317 = vld [vmem:[%s14] sm:$0xf]
      %v1318 = vld [vmem:[%s14 + $0x4] sm:$0xf]
      %v1319 = vld [vmem:[%s14 + $0x8] sm:$0xf]
      %v1320 = vld [vmem:[%s14 + $0xc] sm:$0xf]
      %v1321 = vld [vmem:[%s14 + $0x10] sm:$0xf]
      %v1322 = vld [vmem:[%s14 + $0x14] sm:$0xf]
      %v1323 = vld [vmem:[%s14 + $0x18] sm:$0xf]
      %v1324 = vld [vmem:[%s14 + $0x1c] sm:$0xf]
      %v1325 = vpack.c.bf16 %v1316, %v1316
      %v1326 = vld [vmem:[%s15] sm:$0x1]
      %v1328 = vlaneseq
      %v1329 = vshrl.u32 %v1328, 7
      %v1330 = vsub.s32 0, %v1329
      %v1331 = vrot.slane %v1326, %v1330
      %v1341 = vunpack.c.l.b16 %v1317
      %v1342 = vunpack.c.l.b16 %v1318
      %v1343 = vunpack.c.l.b16 %v1319
      %v1344 = vunpack.c.l.b16 %v1320
      %v1345 = vunpack.c.l.b16 %v1321
      %v1346 = vunpack.c.l.b16 %v1322
      %v1347 = vunpack.c.l.b16 %v1323
      %v1348 = vunpack.c.l.b16 %v1324
      %v1349 = vpack.c.b16 %v1342, %v1341
      %v1350 = vpack.c.b16 %v1344, %v1343
      %v1351 = vpack.c.b16 %v1346, %v1345
      %v1352 = vpack.c.b16 %v1348, %v1347
      %vm1357 = vcmask 523264
      %v1359 = vsel %vm1357, %v1325, 0
      %1361 = vmatprep.subr.bf16.mxu0 0
      %1362 = vmatpush1.bf16.msra.mxu0 %v1349
      %1363 = vmatprep.subr.bf16.mxu0 0
      %1364 = vmatpush1.bf16.msra.mxu0 %v1350
      %1365 = vmatprep.subr.bf16.mxu0 0
      %1366 = vmatpush1.bf16.msra.mxu0 %v1351
      %1367 = vmatprep.subr.bf16.mxu0 0
      %1368 = vmatpush1.bf16.msra.mxu0 %v1352
      %1369 = vmatprep.subr.bf16.mxu0 0
      %1370 = vmatpush1.bf16.msra.mxu0 0
      %1371 = vmatprep.subr.bf16.mxu0 0
      %1372 = vmatpush1.bf16.msra.mxu0 0
      %1373 = vmatprep.subr.bf16.mxu0 0
      %1374 = vmatpush1.bf16.msra.mxu0 0
      %1375 = vmatprep.subr.bf16.mxu0 0
      %1376 = vmatpush1.bf16.msra.mxu0 0
      %1377 = vmatprep.subr.bf16.mxu0 0
      %1378 = vmatpush1.bf16.msra.mxu0 0
      %1379 = vmatprep.subr.bf16.mxu0 0
      %1380 = vmatpush1.bf16.msra.mxu0 0
      %1381 = vmatprep.subr.bf16.mxu0 0
      %1382 = vmatpush1.bf16.msra.mxu0 0
      %1383 = vmatprep.subr.bf16.mxu0 0
      %1384 = vmatpush1.bf16.msra.mxu0 0
      %1385 = vmatprep.subr.bf16.mxu0 0
      %1386 = vmatpush1.bf16.msra.mxu0 0
      %1387 = vmatprep.subr.bf16.mxu0 0
      %1388 = vmatpush1.bf16.msra.mxu0 0
      %1389 = vmatprep.subr.bf16.mxu0 0
      %1390 = vmatpush1.bf16.msra.mxu0 0
      %1391 = vmatprep.subr.bf16.mxu0 0
      %1392 = vmatpush1.bf16.msra.mxu0 0
      %1393 = vmatprep.mubr.bf16.mxu0 0
      %1394 = vmatmul.mubr.bf16.gmra.mrb[0].mxu0 %v1359
      %v1395 = vpop.f32.mrb[0].mxu0
      %v1396 = vadd.f32 %v1331, %v1395
      %v1397 = vpop.f32.mrb[0].mxu0
      %v1398 = vpop.f32.mrb[0].mxu0
      %v1399 = vpop.f32.mrb[0].mxu0
      %1400 = vdwg.mxu0
      %v1401 = vadd.f32 %v1396, %v1240
      %v1402 = vld [vmem:[%s16] sm:$0x1]
      %v1403 = vld [vmem:[%s17] sm:$0x1]
      %v1404 = vsel %vm809, %v1401, 0.0
      %1405 = vadd.xlane.f32.xlu0 %v1404
      %v1406 = vpop.xlane.xlu0 %1405
      %v1407 = vmul.f32 %v1406, %v813
      %v1408 = vsub.f32 %v1401, %v1407
      %v1409 = vmul.f32 %v1408, %v1408
      %v1410 = vsel %vm809, %v1409, 0.0
      %1411 = vadd.xlane.f32.xlu0 %v1410
      %v1412 = vpop.xlane.xlu0 %1411
      %v1413 = vmul.f32 %v1412, %v813
      %v1414 = vadd.f32 %v1413, 1e-12
      %v1415 = vrsqrt.pop %v1414
      %v1416 = vmul.f32 %v1408, %v1415
      %v1418 = vlaneseq
      %v1419 = vshrl.u32 %v1418, 7
      %v1420 = vsub.s32 0, %v1419
      %v1421 = vrot.slane %v1402, %v1420
      %v1423 = vmul.f32 %v1416, %v1421
      %v1425 = vlaneseq
      %v1426 = vshrl.u32 %v1425, 7
      %v1427 = vsub.s32 0, %v1426
      %v1428 = vrot.slane %v1403, %v1427
      %v1430 = vadd.f32 %v1423, %v1428
      %s1431 = scalar_lea.vmem %s6, 16
      %v1432 = vld [vmem:[%s1431] sm:$0xf]
      %v1433 = vld [vmem:[%s1431 + $0x4] sm:$0xf]
      %v1434 = vld [vmem:[%s1431 + $0x8] sm:$0xf]
      %v1435 = vld [vmem:[%s1431 + $0xc] sm:$0xf]
      %v1436 = vpack.c.bf16 %v1430, %v1430
      %s1437 = scalar_lea.vmem %s7, 1
      %v1438 = vld [vmem:[%s1437] sm:$0x1]
      %v1440 = vlaneseq
      %v1441 = vshrl.u32 %v1440, 7
      %v1442 = vsub.s32 0, %v1441
      %v1443 = vrot.slane %v1438, %v1442
      %v1449 = vunpack.c.l.b16 %v1432
      %v1450 = vunpack.c.l.b16 %v1433
      %v1451 = vunpack.c.l.b16 %v1434
      %v1452 = vunpack.c.l.b16 %v1435
      %v1453 = vpack.c.b16 %v1450, %v1449
      %v1454 = vpack.c.b16 %v1452, %v1451
      %v1458 = vsel %vm809, %v1436, 0
      %1460 = vmatprep.subr.bf16.mxu0 0
      %1461 = vmatpush1.bf16.msra.mxu0 %v1453
      %1462 = vmatprep.subr.bf16.mxu0 0
      %1463 = vmatpush1.bf16.msra.mxu0 %v1454
      %1464 = vmatprep.subr.bf16.mxu0 0
      %1465 = vmatpush1.bf16.msra.mxu0 0
      %1466 = vmatprep.subr.bf16.mxu0 0
      %1467 = vmatpush1.bf16.msra.mxu0 0
      %1468 = vmatprep.subr.bf16.mxu0 0
      %1469 = vmatpush1.bf16.msra.mxu0 0
      %1470 = vmatprep.subr.bf16.mxu0 0
      %1471 = vmatpush1.bf16.msra.mxu0 0
      %1472 = vmatprep.subr.bf16.mxu0 0
      %1473 = vmatpush1.bf16.msra.mxu0 0
      %1474 = vmatprep.subr.bf16.mxu0 0
      %1475 = vmatpush1.bf16.msra.mxu0 0
      %1476 = vmatprep.subr.bf16.mxu0 0
      %1477 = vmatpush1.bf16.msra.mxu0 0
      %1478 = vmatprep.subr.bf16.mxu0 0
      %1479 = vmatpush1.bf16.msra.mxu0 0
      %1480 = vmatprep.subr.bf16.mxu0 0
      %1481 = vmatpush1.bf16.msra.mxu0 0
      %1482 = vmatprep.subr.bf16.mxu0 0
      %1483 = vmatpush1.bf16.msra.mxu0 0
      %1484 = vmatprep.subr.bf16.mxu0 0
      %1485 = vmatpush1.bf16.msra.mxu0 0
      %1486 = vmatprep.subr.bf16.mxu0 0
      %1487 = vmatpush1.bf16.msra.mxu0 0
      %1488 = vmatprep.subr.bf16.mxu0 0
      %1489 = vmatpush1.bf16.msra.mxu0 0
      %1490 = vmatprep.subr.bf16.mxu0 0
      %1491 = vmatpush1.bf16.msra.mxu0 0
      %1492 = vmatprep.mubr.bf16.mxu0 0
      %1493 = vmatmul.mubr.bf16.gmra.mrb[0].mxu0 %v1458
      %v1494 = vpop.f32.mrb[0].mxu0
      %v1495 = vadd.f32 %v1443, %v1494
      %v1496 = vpop.f32.mrb[0].mxu0
      %v1497 = vpop.f32.mrb[0].mxu0
      %v1498 = vpop.f32.mrb[0].mxu0
      %1499 = vdwg.mxu0
      %1501 = vrot.lane.b32.xlu0 %v1495, 112
      %v1502 = vpop.permute.xlu0 %1501
      %v1504 = vpack.c.bf16 %v1495, %v1495
      %v1505 = vpack.c.bf16 %v1502, %v1502
      %1507 = vrot.lane.b32.xlu0 %v1504, 96
      %v1508 = vpop.permute.xlu0 %1507
      %v1510 = vsel %vm921, %v1504, 0
      %v1513 = vsel %vm921, %v1508, 0
      %1515 = vmatprep.subr.bf16.mxu0 0
      %1516 = vmatpush1.bf16.xpose.msra.mxu0 %v1513
      %1517 = vmatprep.subr.bf16.mxu0 0
      %1518 = vmatpush1.bf16.xpose.msra.mxu0 0
      %1519 = vmatprep.subr.bf16.mxu0 0
      %1520 = vmatpush1.bf16.xpose.msra.mxu0 0
      %1521 = vmatprep.subr.bf16.mxu0 0
      %1522 = vmatpush1.bf16.xpose.msra.mxu0 0
      %1523 = vmatprep.subr.bf16.mxu0 0
      %1524 = vmatpush1.bf16.xpose.msra.mxu0 0
      %1525 = vmatprep.subr.bf16.mxu0 0
      %1526 = vmatpush1.bf16.xpose.msra.mxu0 0
      %1527 = vmatprep.subr.bf16.mxu0 0
      %1528 = vmatpush1.bf16.xpose.msra.mxu0 0
      %1529 = vmatprep.subr.bf16.mxu0 0
      %1530 = vmatpush1.bf16.xpose.msra.mxu0 0
      %1531 = vmatprep.subr.bf16.mxu0 0
      %1532 = vmatpush1.bf16.xpose.msra.mxu0 0
      %1533 = vmatprep.subr.bf16.mxu0 0
      %1534 = vmatpush1.bf16.xpose.msra.mxu0 0
      %1535 = vmatprep.subr.bf16.mxu0 0
      %1536 = vmatpush1.bf16.xpose.msra.mxu0 0
      %1537 = vmatprep.subr.bf16.mxu0 0
      %1538 = vmatpush1.bf16.xpose.msra.mxu0 0
      %1539 = vmatprep.subr.bf16.mxu0 0
      %1540 = vmatpush1.bf16.xpose.msra.mxu0 0
      %1541 = vmatprep.subr.bf16.mxu0 0
      %1542 = vmatpush1.bf16.xpose.msra.mxu0 0
      %1543 = vmatprep.subr.bf16.mxu0 0
      %1544 = vmatpush1.bf16.xpose.msra.mxu0 0
      %1545 = vmatprep.subr.bf16.mxu0 0
      %1546 = vmatpush1.bf16.xpose.msra.mxu0 0
      %1547 = vmatprep.mubr.bf16.mxu0 0
      %1548 = vmatmul.mubr.bf16.gmra.mrb[0].mxu0 %v1510
      %v1549 = vpop.f32.mrb[0].mxu0
      %v1550 = vadd.f32 %v843, %v1549
      %v1551 = vpop.f32.mrb[0].mxu0
      %v1552 = vpop.f32.mrb[0].mxu0
      %v1553 = vpop.f32.mrb[0].mxu0
      %1554 = vdwg.mxu0
      %1556 = vrot.lane.b32.xlu0 %v1505, 96
      %v1557 = vpop.permute.xlu0 %1556
      %v1559 = vsel %vm921, %v1505, 0
      %v1562 = vsel %vm921, %v1557, 0
      %1564 = vmatprep.subr.bf16.mxu0 0
      %1565 = vmatpush1.bf16.xpose.msra.mxu0 %v1562
      %1566 = vmatprep.subr.bf16.mxu0 0
      %1567 = vmatpush1.bf16.xpose.msra.mxu0 0
      %1568 = vmatprep.subr.bf16.mxu0 0
      %1569 = vmatpush1.bf16.xpose.msra.mxu0 0
      %1570 = vmatprep.subr.bf16.mxu0 0
      %1571 = vmatpush1.bf16.xpose.msra.mxu0 0
      %1572 = vmatprep.subr.bf16.mxu0 0
      %1573 = vmatpush1.bf16.xpose.msra.mxu0 0
      %1574 = vmatprep.subr.bf16.mxu0 0
      %1575 = vmatpush1.bf16.xpose.msra.mxu0 0
      %1576 = vmatprep.subr.bf16.mxu0 0
      %1577 = vmatpush1.bf16.xpose.msra.mxu0 0
      %1578 = vmatprep.subr.bf16.mxu0 0
      %1579 = vmatpush1.bf16.xpose.msra.mxu0 0
      %1580 = vmatprep.subr.bf16.mxu0 0
      %1581 = vmatpush1.bf16.xpose.msra.mxu0 0
      %1582 = vmatprep.subr.bf16.mxu0 0
      %1583 = vmatpush1.bf16.xpose.msra.mxu0 0
      %1584 = vmatprep.subr.bf16.mxu0 0
      %1585 = vmatpush1.bf16.xpose.msra.mxu0 0
      %1586 = vmatprep.subr.bf16.mxu0 0
      %1587 = vmatpush1.bf16.xpose.msra.mxu0 0
      %1588 = vmatprep.subr.bf16.mxu0 0
      %1589 = vmatpush1.bf16.xpose.msra.mxu0 0
      %1590 = vmatprep.subr.bf16.mxu0 0
      %1591 = vmatpush1.bf16.xpose.msra.mxu0 0
      %1592 = vmatprep.subr.bf16.mxu0 0
      %1593 = vmatpush1.bf16.xpose.msra.mxu0 0
      %1594 = vmatprep.subr.bf16.mxu0 0
      %1595 = vmatpush1.bf16.xpose.msra.mxu0 0
      %1596 = vmatprep.mubr.bf16.mxu0 0
      %1597 = vmatmul.mubr.bf16.gmra.mrb[0].mxu0 %v1559
      %v1598 = vpop.f32.mrb[0].mxu0
      %v1599 = vadd.f32 %v843, %v1598
      %v1600 = vpop.f32.mrb[0].mxu0
      %v1601 = vpop.f32.mrb[0].mxu0
      %v1602 = vpop.f32.mrb[0].mxu0
      %1603 = vdwg.mxu0
      %v1604 = vsel %vm1017, %v1550, -inf
      %1605 = vmax.xlane.f32.xlu0 %v1604
      %v1606 = vpop.xlane.xlu0 %1605
      %v1607 = vsel %vm1017, %v1599, -inf
      %1608 = vmax.xlane.f32.xlu0 %v1607
      %v1609 = vpop.xlane.xlu0 %1608
      %v1610 = vsub.f32 %v1550, %v1606
      %v1611 = vsub.f32 %v1599, %v1609
      %v1612 = vmul.f32 %v1610, 1.442695
      %v1613 = vpow.pop %v1612
      %v1614 = vmul.f32 %v1611, 1.442695
      %v1615 = vpow.pop %v1614
      %v1616 = vsel %vm1017, %v1613, 0.0
      %1617 = vadd.xlane.f32.xlu0 %v1616
      %v1618 = vpop.xlane.xlu0 %1617
      %v1619 = vsel %vm1017, %v1615, 0.0
      %1620 = vadd.xlane.f32.xlu0 %v1619
      %v1621 = vpop.xlane.xlu0 %1620
      %v1622 = vrcp.pop %v1618
      %v1623 = vmul.f32 %v1613, %v1622
      %v1624 = vrcp.pop %v1621
      %v1625 = vmul.f32 %v1615, %v1624
      %v1626 = vpack.c.bf16 %v1623, %v1623
      %v1627 = vpack.c.bf16 %v1625, %v1625
      %1628 = vrot.lane.b32.xlu0 %v1504, 64
      %v1629 = vpop.permute.xlu0 %1628
      %v1631 = vsel %vm1017, %v1626, 0
      %v1634 = vsel %vm1047, %v1629, 0
      %1636 = vmatprep.subr.bf16.mxu0 0
      %1637 = vmatpush1.bf16.msra.mxu0 %v1634
      %1638 = vmatprep.subr.bf16.mxu0 0
      %1639 = vmatpush1.bf16.msra.mxu0 0
      %1640 = vmatprep.subr.bf16.mxu0 0
      %1641 = vmatpush1.bf16.msra.mxu0 0
      %1642 = vmatprep.subr.bf16.mxu0 0
      %1643 = vmatpush1.bf16.msra.mxu0 0
      %1644 = vmatprep.subr.bf16.mxu0 0
      %1645 = vmatpush1.bf16.msra.mxu0 0
      %1646 = vmatprep.subr.bf16.mxu0 0
      %1647 = vmatpush1.bf16.msra.mxu0 0
      %1648 = vmatprep.subr.bf16.mxu0 0
      %1649 = vmatpush1.bf16.msra.mxu0 0
      %1650 = vmatprep.subr.bf16.mxu0 0
      %1651 = vmatpush1.bf16.msra.mxu0 0
      %1652 = vmatprep.subr.bf16.mxu0 0
      %1653 = vmatpush1.bf16.msra.mxu0 0
      %1654 = vmatprep.subr.bf16.mxu0 0
      %1655 = vmatpush1.bf16.msra.mxu0 0
      %1656 = vmatprep.subr.bf16.mxu0 0
      %1657 = vmatpush1.bf16.msra.mxu0 0
      %1658 = vmatprep.subr.bf16.mxu0 0
      %1659 = vmatpush1.bf16.msra.mxu0 0
      %1660 = vmatprep.subr.bf16.mxu0 0
      %1661 = vmatpush1.bf16.msra.mxu0 0
      %1662 = vmatprep.subr.bf16.mxu0 0
      %1663 = vmatpush1.bf16.msra.mxu0 0
      %1664 = vmatprep.subr.bf16.mxu0 0
      %1665 = vmatpush1.bf16.msra.mxu0 0
      %1666 = vmatprep.subr.bf16.mxu0 0
      %1667 = vmatpush1.bf16.msra.mxu0 0
      %1668 = vmatprep.mubr.bf16.mxu0 0
      %1669 = vmatmul.mubr.bf16.gmra.mrb[0].mxu0 %v1631
      %v1670 = vpop.f32.mrb[0].mxu0
      %v1671 = vadd.f32 0.0, %v1670
      %v1672 = vpop.f32.mrb[0].mxu0
      %v1673 = vpop.f32.mrb[0].mxu0
      %v1674 = vpop.f32.mrb[0].mxu0
      %1675 = vdwg.mxu0
      %1676 = vrot.lane.b32.xlu0 %v1505, 64
      %v1677 = vpop.permute.xlu0 %1676
      %v1679 = vsel %vm1017, %v1627, 0
      %v1682 = vsel %vm1047, %v1677, 0
      %1684 = vmatprep.subr.bf16.mxu0 0
      %1685 = vmatpush1.bf16.msra.mxu0 %v1682
      %1686 = vmatprep.subr.bf16.mxu0 0
      %1687 = vmatpush1.bf16.msra.mxu0 0
      %1688 = vmatprep.subr.bf16.mxu0 0
      %1689 = vmatpush1.bf16.msra.mxu0 0
      %1690 = vmatprep.subr.bf16.mxu0 0
      %1691 = vmatpush1.bf16.msra.mxu0 0
      %1692 = vmatprep.subr.bf16.mxu0 0
      %1693 = vmatpush1.bf16.msra.mxu0 0
      %1694 = vmatprep.subr.bf16.mxu0 0
      %1695 = vmatpush1.bf16.msra.mxu0 0
      %1696 = vmatprep.subr.bf16.mxu0 0
      %1697 = vmatpush1.bf16.msra.mxu0 0
      %1698 = vmatprep.subr.bf16.mxu0 0
      %1699 = vmatpush1.bf16.msra.mxu0 0
      %1700 = vmatprep.subr.bf16.mxu0 0
      %1701 = vmatpush1.bf16.msra.mxu0 0
      %1702 = vmatprep.subr.bf16.mxu0 0
      %1703 = vmatpush1.bf16.msra.mxu0 0
      %1704 = vmatprep.subr.bf16.mxu0 0
      %1705 = vmatpush1.bf16.msra.mxu0 0
      %1706 = vmatprep.subr.bf16.mxu0 0
      %1707 = vmatpush1.bf16.msra.mxu0 0
      %1708 = vmatprep.subr.bf16.mxu0 0
      %1709 = vmatpush1.bf16.msra.mxu0 0
      %1710 = vmatprep.subr.bf16.mxu0 0
      %1711 = vmatpush1.bf16.msra.mxu0 0
      %1712 = vmatprep.subr.bf16.mxu0 0
      %1713 = vmatpush1.bf16.msra.mxu0 0
      %1714 = vmatprep.subr.bf16.mxu0 0
      %1715 = vmatpush1.bf16.msra.mxu0 0
      %1716 = vmatprep.mubr.bf16.mxu0 0
      %1717 = vmatmul.mubr.bf16.gmra.mrb[0].mxu0 %v1679
      %v1718 = vpop.f32.mrb[0].mxu0
      %v1719 = vadd.f32 0.0, %v1718
      %v1720 = vpop.f32.mrb[0].mxu0
      %v1721 = vpop.f32.mrb[0].mxu0
      %v1722 = vpop.f32.mrb[0].mxu0
      %1723 = vdwg.mxu0
      %1725 = vrot.lane.b32.xlu0 %v1719, 16
      %v1726 = vpop.permute.xlu0 %1725
      %v1728 = vsel %vm921, %v1671, %v1726
      %s1729 = scalar_lea.vmem %s8, 16
      %v1730 = vld [vmem:[%s1729] sm:$0xf]
      %v1731 = vld [vmem:[%s1729 + $0x4] sm:$0xf]
      %v1732 = vld [vmem:[%s1729 + $0x8] sm:$0xf]
      %v1733 = vld [vmem:[%s1729 + $0xc] sm:$0xf]
      %v1734 = vpack.c.bf16 %v1728, %v1728
      %s1735 = scalar_lea.vmem %s9, 1
      %v1736 = vld [vmem:[%s1735] sm:$0x1]
      %v1738 = vlaneseq
      %v1739 = vshrl.u32 %v1738, 7
      %v1740 = vsub.s32 0, %v1739
      %v1741 = vrot.slane %v1736, %v1740
      %v1747 = vunpack.c.l.b16 %v1730
      %v1748 = vunpack.c.l.b16 %v1731
      %v1749 = vunpack.c.l.b16 %v1732
      %v1750 = vunpack.c.l.b16 %v1733
      %v1751 = vpack.c.b16 %v1748, %v1747
      %v1752 = vpack.c.b16 %v1750, %v1749
      %v1756 = vsel %vm809, %v1734, 0
      %1758 = vmatprep.subr.bf16.mxu0 0
      %1759 = vmatpush1.bf16.msra.mxu0 %v1751
      %1760 = vmatprep.subr.bf16.mxu0 0
      %1761 = vmatpush1.bf16.msra.mxu0 %v1752
      %1762 = vmatprep.subr.bf16.mxu0 0
      %1763 = vmatpush1.bf16.msra.mxu0 0
      %1764 = vmatprep.subr.bf16.mxu0 0
      %1765 = vmatpush1.bf16.msra.mxu0 0
      %1766 = vmatprep.subr.bf16.mxu0 0
      %1767 = vmatpush1.bf16.msra.mxu0 0
      %1768 = vmatprep.subr.bf16.mxu0 0
      %1769 = vmatpush1.bf16.msra.mxu0 0
      %1770 = vmatprep.subr.bf16.mxu0 0
      %1771 = vmatpush1.bf16.msra.mxu0 0
      %1772 = vmatprep.subr.bf16.mxu0 0
      %1773 = vmatpush1.bf16.msra.mxu0 0
      %1774 = vmatprep.subr.bf16.mxu0 0
      %1775 = vmatpush1.bf16.msra.mxu0 0
      %1776 = vmatprep.subr.bf16.mxu0 0
      %1777 = vmatpush1.bf16.msra.mxu0 0
      %1778 = vmatprep.subr.bf16.mxu0 0
      %1779 = vmatpush1.bf16.msra.mxu0 0
      %1780 = vmatprep.subr.bf16.mxu0 0
      %1781 = vmatpush1.bf16.msra.mxu0 0
      %1782 = vmatprep.subr.bf16.mxu0 0
      %1783 = vmatpush1.bf16.msra.mxu0 0
      %1784 = vmatprep.subr.bf16.mxu0 0
      %1785 = vmatpush1.bf16.msra.mxu0 0
      %1786 = vmatprep.subr.bf16.mxu0 0
      %1787 = vmatpush1.bf16.msra.mxu0 0
      %1788 = vmatprep.subr.bf16.mxu0 0
      %1789 = vmatpush1.bf16.msra.mxu0 0
      %1790 = vmatprep.mubr.bf16.mxu0 0
      %1791 = vmatmul.mubr.bf16.gmra.mrb[0].mxu0 %v1756
      %v1792 = vpop.f32.mrb[0].mxu0
      %v1793 = vadd.f32 %v1741, %v1792
      %v1794 = vpop.f32.mrb[0].mxu0
      %v1795 = vpop.f32.mrb[0].mxu0
      %v1796 = vpop.f32.mrb[0].mxu0
      %1797 = vdwg.mxu0
      %v1798 = vadd.f32 %v1793, %v1430
      %s1799 = scalar_lea.vmem %s10, 1
      %v1800 = vld [vmem:[%s1799] sm:$0x1]
      %s1801 = scalar_lea.vmem %s11, 1
      %v1802 = vld [vmem:[%s1801] sm:$0x1]
      %v1803 = vsel %vm809, %v1798, 0.0
      %1804 = vadd.xlane.f32.xlu0 %v1803
      %v1805 = vpop.xlane.xlu0 %1804
      %v1806 = vmul.f32 %v1805, %v813
      %v1807 = vsub.f32 %v1798, %v1806
      %v1808 = vmul.f32 %v1807, %v1807
      %v1809 = vsel %vm809, %v1808, 0.0
      %1810 = vadd.xlane.f32.xlu0 %v1809
      %v1811 = vpop.xlane.xlu0 %1810
      %v1812 = vmul.f32 %v1811, %v813
      %v1813 = vadd.f32 %v1812, 1e-12
      %v1814 = vrsqrt.pop %v1813
      %v1815 = vmul.f32 %v1807, %v1814
      %v1817 = vlaneseq
      %v1818 = vshrl.u32 %v1817, 7
      %v1819 = vsub.s32 0, %v1818
      %v1820 = vrot.slane %v1800, %v1819
      %v1822 = vmul.f32 %v1815, %v1820
      %v1824 = vlaneseq
      %v1825 = vshrl.u32 %v1824, 7
      %v1826 = vsub.s32 0, %v1825
      %v1827 = vrot.slane %v1802, %v1826
      %v1829 = vadd.f32 %v1822, %v1827
      %s1830 = scalar_lea.vmem %s12, 16
      %v1831 = vld [vmem:[%s1830] sm:$0xf]
      %v1832 = vld [vmem:[%s1830 + $0x4] sm:$0xf]
      %v1833 = vld [vmem:[%s1830 + $0x8] sm:$0xf]
      %v1834 = vld [vmem:[%s1830 + $0xc] sm:$0xf]
      %v1835 = vpack.c.bf16 %v1829, %v1829
      %s1836 = scalar_lea.vmem %s13, 1
      %v1837 = vld [vmem:[%s1836] sm:$0x1]
      %v1839 = vlaneseq
      %v1840 = vshrl.u32 %v1839, 7
      %v1841 = vsub.s32 0, %v1840
      %v1842 = vrot.slane %v1837, %v1841
      %v1848 = vunpack.c.l.b16 %v1831
      %v1849 = vunpack.c.l.b16 %v1832
      %v1850 = vunpack.c.l.b16 %v1833
      %v1851 = vunpack.c.l.b16 %v1834
      %v1852 = vpack.c.b16 %v1849, %v1848
      %v1853 = vpack.c.b16 %v1851, %v1850
      %v1857 = vsel %vm809, %v1835, 0
      %1859 = vmatprep.subr.bf16.mxu0 0
      %1860 = vmatpush1.bf16.msra.mxu0 %v1852
      %1861 = vmatprep.subr.bf16.mxu0 0
      %1862 = vmatpush1.bf16.msra.mxu0 %v1853
      %1863 = vmatprep.subr.bf16.mxu0 0
      %1864 = vmatpush1.bf16.msra.mxu0 0
      %1865 = vmatprep.subr.bf16.mxu0 0
      %1866 = vmatpush1.bf16.msra.mxu0 0
      %1867 = vmatprep.subr.bf16.mxu0 0
      %1868 = vmatpush1.bf16.msra.mxu0 0
      %1869 = vmatprep.subr.bf16.mxu0 0
      %1870 = vmatpush1.bf16.msra.mxu0 0
      %1871 = vmatprep.subr.bf16.mxu0 0
      %1872 = vmatpush1.bf16.msra.mxu0 0
      %1873 = vmatprep.subr.bf16.mxu0 0
      %1874 = vmatpush1.bf16.msra.mxu0 0
      %1875 = vmatprep.subr.bf16.mxu0 0
      %1876 = vmatpush1.bf16.msra.mxu0 0
      %1877 = vmatprep.subr.bf16.mxu0 0
      %1878 = vmatpush1.bf16.msra.mxu0 0
      %1879 = vmatprep.subr.bf16.mxu0 0
      %1880 = vmatpush1.bf16.msra.mxu0 0
      %1881 = vmatprep.subr.bf16.mxu0 0
      %1882 = vmatpush1.bf16.msra.mxu0 0
      %1883 = vmatprep.subr.bf16.mxu0 0
      %1884 = vmatpush1.bf16.msra.mxu0 0
      %1885 = vmatprep.subr.bf16.mxu0 0
      %1886 = vmatpush1.bf16.msra.mxu0 0
      %1887 = vmatprep.subr.bf16.mxu0 0
      %1888 = vmatpush1.bf16.msra.mxu0 0
      %1889 = vmatprep.subr.bf16.mxu0 0
      %1890 = vmatpush1.bf16.msra.mxu0 0
      %1891 = vmatprep.mubr.bf16.mxu0 0
      %1892 = vmatmul.mubr.bf16.gmra.mrb[0].mxu0 %v1857
      %v1893 = vpop.f32.mrb[0].mxu0
      %v1894 = vadd.f32 %v1842, %v1893
      %v1895 = vpop.f32.mrb[0].mxu0
      %v1896 = vpop.f32.mrb[0].mxu0
      %v1897 = vpop.f32.mrb[0].mxu0
      %1898 = vdwg.mxu0
      %v1899 = vmul.f32 %v1894, 0.5
      %v1900 = vmul.f32 %v1894, 0.044715
      %v1901 = vmul.f32 %v1900, %v1894
      %v1902 = vmul.f32 %v1901, %v1894
      %v1903 = vadd.f32 %v1894, %v1902
      %v1904 = vmul.f32 %v1903, 0.7978846
      %v1905 = vtanh.pop %v1904
      %v1906 = vadd.f32 %v1905, 1.0
      %v1907 = vmul.f32 %v1899, %v1906
      %s1908 = scalar_lea.vmem %s14, 32
      %v1909 = vld [vmem:[%s1908] sm:$0xf]
      %v1910 = vld [vmem:[%s1908 + $0x4] sm:$0xf]
      %v1911 = vld [vmem:[%s1908 + $0x8] sm:$0xf]
      %v1912 = vld [vmem:[%s1908 + $0xc] sm:$0xf]
      %v1913 = vld [vmem:[%s1908 + $0x10] sm:$0xf]
      %v1914 = vld [vmem:[%s1908 + $0x14] sm:$0xf]
      %v1915 = vld [vmem:[%s1908 + $0x18] sm:$0xf]
      %v1916 = vld [vmem:[%s1908 + $0x1c] sm:$0xf]
      %v1917 = vpack.c.bf16 %v1907, %v1907
      %s1918 = scalar_lea.vmem %s15, 1
      %v1919 = vld [vmem:[%s1918] sm:$0x1]
      %v1921 = vlaneseq
      %v1922 = vshrl.u32 %v1921, 7
      %v1923 = vsub.s32 0, %v1922
      %v1924 = vrot.slane %v1919, %v1923
      %v1934 = vunpack.c.l.b16 %v1909
      %v1935 = vunpack.c.l.b16 %v1910
      %v1936 = vunpack.c.l.b16 %v1911
      %v1937 = vunpack.c.l.b16 %v1912
      %v1938 = vunpack.c.l.b16 %v1913
      %v1939 = vunpack.c.l.b16 %v1914
      %v1940 = vunpack.c.l.b16 %v1915
      %v1941 = vunpack.c.l.b16 %v1916
      %v1942 = vpack.c.b16 %v1935, %v1934
      %v1943 = vpack.c.b16 %v1937, %v1936
      %v1944 = vpack.c.b16 %v1939, %v1938
      %v1945 = vpack.c.b16 %v1941, %v1940
      %v1951 = vsel %vm1357, %v1917, 0
      %1953 = vmatprep.subr.bf16.mxu0 0
      %1954 = vmatpush1.bf16.msra.mxu0 %v1942
      %1955 = vmatprep.subr.bf16.mxu0 0
      %1956 = vmatpush1.bf16.msra.mxu0 %v1943
      %1957 = vmatprep.subr.bf16.mxu0 0
      %1958 = vmatpush1.bf16.msra.mxu0 %v1944
      %1959 = vmatprep.subr.bf16.mxu0 0
      %1960 = vmatpush1.bf16.msra.mxu0 %v1945
      %1961 = vmatprep.subr.bf16.mxu0 0
      %1962 = vmatpush1.bf16.msra.mxu0 0
      %1963 = vmatprep.subr.bf16.mxu0 0
      %1964 = vmatpush1.bf16.msra.mxu0 0
      %1965 = vmatprep.subr.bf16.mxu0 0
      %1966 = vmatpush1.bf16.msra.mxu0 0
      %1967 = vmatprep.subr.bf16.mxu0 0
      %1968 = vmatpush1.bf16.msra.mxu0 0
      %1969 = vmatprep.subr.bf16.mxu0 0
      %1970 = vmatpush1.bf16.msra.mxu0 0
      %1971 = vmatprep.subr.bf16.mxu0 0
      %1972 = vmatpush1.bf16.msra.mxu0 0
      %1973 = vmatprep.subr.bf16.mxu0 0
      %1974 = vmatpush1.bf16.msra.mxu0 0
      %1975 = vmatprep.subr.bf16.mxu0 0
      %1976 = vmatpush1.bf16.msra.mxu0 0
      %1977 = vmatprep.subr.bf16.mxu0 0
      %1978 = vmatpush1.bf16.msra.mxu0 0
      %1979 = vmatprep.subr.bf16.mxu0 0
      %1980 = vmatpush1.bf16.msra.mxu0 0
      %1981 = vmatprep.subr.bf16.mxu0 0
      %1982 = vmatpush1.bf16.msra.mxu0 0
      %1983 = vmatprep.subr.bf16.mxu0 0
      %1984 = vmatpush1.bf16.msra.mxu0 0
      %1985 = vmatprep.mubr.bf16.mxu0 0
      %1986 = vmatmul.mubr.bf16.gmra.mrb[0].mxu0 %v1951
      %v1987 = vpop.f32.mrb[0].mxu0
      %v1988 = vadd.f32 %v1924, %v1987
      %v1989 = vpop.f32.mrb[0].mxu0
      %v1990 = vpop.f32.mrb[0].mxu0
      %v1991 = vpop.f32.mrb[0].mxu0
      %1992 = vdwg.mxu0
      %v1993 = vadd.f32 %v1988, %v1829
      %s1994 = scalar_lea.vmem %s16, 1
      %v1995 = vld [vmem:[%s1994] sm:$0x1]
      %s1996 = scalar_lea.vmem %s17, 1
      %v1997 = vld [vmem:[%s1996] sm:$0x1]
      %v1998 = vsel %vm809, %v1993, 0.0
      %1999 = vadd.xlane.f32.xlu0 %v1998
      %v2000 = vpop.xlane.xlu0 %1999
      %v2001 = vmul.f32 %v2000, %v813
      %v2002 = vsub.f32 %v1993, %v2001
      %v2003 = vmul.f32 %v2002, %v2002
      %v2004 = vsel %vm809, %v2003, 0.0
      %2005 = vadd.xlane.f32.xlu0 %v2004
      %v2006 = vpop.xlane.xlu0 %2005
      %v2007 = vmul.f32 %v2006, %v813
      %v2008 = vadd.f32 %v2007, 1e-12
      %v2009 = vrsqrt.pop %v2008
      %v2010 = vmul.f32 %v2002, %v2009
      %v2012 = vlaneseq
      %v2013 = vshrl.u32 %v2012, 7
      %v2014 = vsub.s32 0, %v2013
      %v2015 = vrot.slane %v1995, %v2014
      %v2017 = vmul.f32 %v2010, %v2015
      %v2019 = vlaneseq
      %v2020 = vshrl.u32 %v2019, 7
      %v2021 = vsub.s32 0, %v2020
      %v2022 = vrot.slane %v1997, %v2021
      %v2024 = vadd.f32 %v2017, %v2022
      %v2025 = vld [vmem:[%s18] sm:$0xf]
      %v2026 = vld [vmem:[%s18 + $0x4] sm:$0xf]
      %v2027 = vld [vmem:[%s18 + $0x8] sm:$0xf]
      %v2028 = vld [vmem:[%s18 + $0xc] sm:$0xf]
      %v2029 = vpack.c.bf16 %v2024, %v2024
      %v2030 = vld [vmem:[%s19] sm:$0x1]
      %v2035 = vunpack.c.l.b16 %v2025
      %v2036 = vunpack.c.l.b16 %v2026
      %v2037 = vunpack.c.l.b16 %v2027
      %v2038 = vunpack.c.l.b16 %v2028
      %v2039 = vpack.c.b16 %v2036, %v2035
      %v2040 = vpack.c.b16 %v2038, %v2037
      %v2044 = vsel %vm809, %v2029, 0
      %2046 = vmatprep.subr.bf16.mxu0 0
      %2047 = vmatpush1.bf16.msra.mxu0 %v2039
      %2048 = vmatprep.subr.bf16.mxu0 0
      %2049 = vmatpush1.bf16.msra.mxu0 %v2040
      %2050 = vmatprep.subr.bf16.mxu0 0
      %2051 = vmatpush1.bf16.msra.mxu0 0
      %2052 = vmatprep.subr.bf16.mxu0 0
      %2053 = vmatpush1.bf16.msra.mxu0 0
      %2054 = vmatprep.subr.bf16.mxu0 0
      %2055 = vmatpush1.bf16.msra.mxu0 0
      %2056 = vmatprep.subr.bf16.mxu0 0
      %2057 = vmatpush1.bf16.msra.mxu0 0
      %2058 = vmatprep.subr.bf16.mxu0 0
      %2059 = vmatpush1.bf16.msra.mxu0 0
      %2060 = vmatprep.subr.bf16.mxu0 0
      %2061 = vmatpush1.bf16.msra.mxu0 0
      %2062 = vmatprep.subr.bf16.mxu0 0
      %2063 = vmatpush1.bf16.msra.mxu0 0
      %2064 = vmatprep.subr.bf16.mxu0 0
      %2065 = vmatpush1.bf16.msra.mxu0 0
      %2066 = vmatprep.subr.bf16.mxu0 0
      %2067 = vmatpush1.bf16.msra.mxu0 0
      %2068 = vmatprep.subr.bf16.mxu0 0
      %2069 = vmatpush1.bf16.msra.mxu0 0
      %2070 = vmatprep.subr.bf16.mxu0 0
      %2071 = vmatpush1.bf16.msra.mxu0 0
      %2072 = vmatprep.subr.bf16.mxu0 0
      %2073 = vmatpush1.bf16.msra.mxu0 0
      %2074 = vmatprep.subr.bf16.mxu0 0
      %2075 = vmatpush1.bf16.msra.mxu0 0
      %2076 = vmatprep.subr.bf16.mxu0 0
      %2077 = vmatpush1.bf16.msra.mxu0 0
      %2078 = vmatprep.mubr.bf16.mxu0 0
      %2079 = vmatmul.mubr.bf16.gmra.mrb[0].mxu0 %v2044
      %v2080 = vpop.f32.mrb[0].mxu0
      %v2081 = vadd.f32 %v2030, %v2080
      %v2082 = vpop.f32.mrb[0].mxu0
      %v2083 = vpop.f32.mrb[0].mxu0
      %v2084 = vpop.f32.mrb[0].mxu0
      %2085 = vdwg.mxu0
      %v2086 = vtanh.pop %v2081
      %v2087 = vld [vmem:[%s20] sm:$0xf]
      %v2088 = vld [vmem:[%s20 + $0x4] sm:$0xf]
      %v2089 = vld [vmem:[%s20 + $0x8] sm:$0xf]
      %v2090 = vld [vmem:[%s20 + $0xc] sm:$0xf]
      %v2091 = vpack.c.bf16 %v2086, %v2086
      %v2092 = vld [vmem:[%s21] sm:$0x1]
      %v2097 = vunpack.c.l.b16 %v2087
      %v2098 = vunpack.c.l.b16 %v2088
      %v2099 = vunpack.c.l.b16 %v2089
      %v2100 = vunpack.c.l.b16 %v2090
      %v2101 = vpack.c.b16 %v2098, %v2097
      %v2102 = vpack.c.b16 %v2100, %v2099
      %v2106 = vsel %vm809, %v2091, 0
      %2108 = vmatprep.subr.bf16.mxu0 0
      %2109 = vmatpush1.bf16.msra.mxu0 %v2101
      %2110 = vmatprep.subr.bf16.mxu0 0
      %2111 = vmatpush1.bf16.msra.mxu0 %v2102
      %2112 = vmatprep.subr.bf16.mxu0 0
      %2113 = vmatpush1.bf16.msra.mxu0 0
      %2114 = vmatprep.subr.bf16.mxu0 0
      %2115 = vmatpush1.bf16.msra.mxu0 0
      %2116 = vmatprep.subr.bf16.mxu0 0
      %2117 = vmatpush1.bf16.msra.mxu0 0
      %2118 = vmatprep.subr.bf16.mxu0 0
      %2119 = vmatpush1.bf16.msra.mxu0 0
      %2120 = vmatprep.subr.bf16.mxu0 0
      %2121 = vmatpush1.bf16.msra.mxu0 0
      %2122 = vmatprep.subr.bf16.mxu0 0
      %2123 = vmatpush1.bf16.msra.mxu0 0
      %2124 = vmatprep.subr.bf16.mxu0 0
      %2125 = vmatpush1.bf16.msra.mxu0 0
      %2126 = vmatprep.subr.bf16.mxu0 0
      %2127 = vmatpush1.bf16.msra.mxu0 0
      %2128 = vmatprep.subr.bf16.mxu0 0
      %2129 = vmatpush1.bf16.msra.mxu0 0
      %2130 = vmatprep.subr.bf16.mxu0 0
      %2131 = vmatpush1.bf16.msra.mxu0 0
      %2132 = vmatprep.subr.bf16.mxu0 0
      %2133 = vmatpush1.bf16.msra.mxu0 0
      %2134 = vmatprep.subr.bf16.mxu0 0
      %2135 = vmatpush1.bf16.msra.mxu0 0
      %2136 = vmatprep.subr.bf16.mxu0 0
      %2137 = vmatpush1.bf16.msra.mxu0 0
      %2138 = vmatprep.subr.bf16.mxu0 0
      %2139 = vmatpush1.bf16.msra.mxu0 0
      %2140 = vmatprep.mubr.bf16.mxu0 0
      %2141 = vmatmul.mubr.bf16.gmra.mrb[0].mxu0 %v2106
      %v2142 = vpop.f32.mrb[0].mxu0
      %v2143 = vadd.f32 %v2092, %v2142
      %v2144 = vpop.f32.mrb[0].mxu0
      %v2145 = vpop.f32.mrb[0].mxu0
      %v2146 = vpop.f32.mrb[0].mxu0
      %2147 = vdwg.mxu0
      %vm2148 = vcmp.ge.s32.totalorder %v694, 0
      %vm2149 = vcmp.lt.s32.totalorder %v694, 3
      %vm2150 = vmand %vm2148, %vm2149
      %v2151 = vsel %vm2150, %v2143, -1e+30
      %vm2152 = vcmask 1040384
      %v2153 = vsel %vm2152, %v2151, -inf
      %2154 = vmax.xlane.f32.xlu0 %v2153
      %v2155 = vpop.xlane.xlu0 %2154
      %v2156 = vsub.f32 %v2151, %v2155
      %v2157 = vmul.f32 %v2156, 1.442695
      %v2158 = vpow.pop %v2157
      %v2159 = vsel %vm2150, %v2158, 0.0
      %v2160 = vsel %vm2152, %v2159, 0.0
      %2161 = vadd.xlane.f32.xlu0 %v2160
      %v2162 = vpop.xlane.xlu0 %2161
      %v2163 = vrcp.pop %v2162
      %v2164 = vmul.f32 %v2159, %v2163
      %v2165 = vsel %vm2150, %v2164, 0.0
      %vm2166 = vcmp.ge.s32.totalorder %v694, 3
      %vm2167 = vcmp.lt.s32.totalorder %v694, 8
      %vm2168 = vmand %vm2166, %vm2167
      %v2169 = vsel %vm2168, %v2143, -1e+30
      %v2170 = vsel %vm2152, %v2169, -inf
      %2171 = vmax.xlane.f32.xlu0 %v2170
      %v2172 = vpop.xlane.xlu0 %2171
      %v2173 = vsub.f32 %v2169, %v2172
      %v2174 = vmul.f32 %v2173, 1.442695
      %v2175 = vpow.pop %v2174
      %v2176 = vsel %vm2168, %v2175, 0.0
      %v2177 = vsel %vm2152, %v2176, 0.0
      %2178 = vadd.xlane.f32.xlu0 %v2177
      %v2179 = vpop.xlane.xlu0 %2178
      %v2180 = vrcp.pop %v2179
      %v2181 = vmul.f32 %v2176, %v2180
      %v2182 = vsel %vm2168, %v2181, %v2165
      %2183 = vst [vmem:[%s690] sm:$0x1] %v2182
      %p2184 = scmp.lt.s32.totalorder %s33, 1
      %s2185 = scalar_select %p2184, %s33, 1
      %s2186 = scalar_lea.vmem %s22, %s2185
      // Predicated region
      $region109: #{multitask_bert_forward.1} parent=107 // pred_check
        %p2187 = pneg %p523
      $region110: #{multitask_bert_forward.1} parent=107 // pred_check_branch
        %2189 = sbr.rel (%p2187) target = $region112
      $region111: #{multitask_bert_forward.1} parent=107 // pred_region
        _
      $region112: #{multitask_bert_forward.1} parent=107 // pred_fallthru
        _
    $region108: #{multitask_bert_forward.1} parent=5 // pred_fallthru
      _
    %p2190 = scmp.le.s32.totalorder 2, %s28
    // Predicated region
    $region113: #{multitask_bert_forward.1} parent=5 // pred_check
      %p2191 = pneg %p2190
    $region114: #{multitask_bert_forward.1} parent=5 // pred_check_branch
      %2193 = sbr.rel (%p2191) target = $region116
    $region115: #{multitask_bert_forward.1} parent=5 // pred_region
      %s2194 = ssub.s32 %s28, 2
      // Predicated region
      $region117: #{multitask_bert_forward.1} parent=115 // pred_check
        %p2195 = pneg %p529
      $region118: #{multitask_bert_forward.1} parent=115 // pred_check_branch
        %2197 = sbr.rel (%p2195) target = $region120
      $region119: #{multitask_bert_forward.1} parent=115 // pred_region
        %p2198 = scmp.lt.s32.totalorder %s34, 1
        %s2199 = scalar_select %p2198, %s34, 1
        %s2200 = scalar_lea.vmem %s22, %s2199
      $region120: #{multitask_bert_forward.1} parent=115 // pred_fallthru
        _
    $region116: #{multitask_bert_forward.1} parent=5 // pred_fallthru
      _
  $region6: #{multitask_bert_forward.1} parent=0 // loop_footer
    %s32 = sadd.s32 1, %s28
  $region7: #{multitask_bert_forward.1} parent=0 // loop_footer_branch
    %27 = sbr.rel target = $region3
  $region8: #{multitask_bert_forward.1} parent=0 // loop_exit
    _

</llo_original>
